<compile_context>
chip_gen: v5e
topology: v5e:2x2
jax: 0.10.0
libtpu: 0.0.40
codegen_flags: <defaults>
</compile_context>

<pallas_src>
import functools

import jax
import jax.numpy as jnp
from jax import lax
from jax.experimental import pallas as pl
from jax.experimental.pallas import tpu as pltpu


# ----------------------------- in-kernel helpers -----------------------------

def _erf_approx(x):
    # Abramowitz & Stegun 7.1.26 polynomial, |err| < 1.5e-7 — exact-GELU path
    # that lowers cleanly inside the Mosaic kernel.
    a1, a2, a3, a4, a5 = 0.254829592, -0.284496736, 1.421413741, -1.453152027, 1.061405429
    p = 0.3275911
    sgn = jnp.where(x >= 0.0, 1.0, -1.0)
    ax = jnp.abs(x)
    t = 1.0 / (1.0 + p * ax)
    poly = ((((a5 * t + a4) * t + a3) * t + a2) * t + a1) * t
    return sgn * (1.0 - poly * jnp.exp(-ax * ax))


def _gelu_exact(x):
    return 0.5 * x * (1.0 + _erf_approx(x * 0.7071067811865475))


def _round_up(x, m):
    return (x + m - 1) // m * m


# --------------------------------- kernel ------------------------------------

def pcnn_kernel(x_ref, pos_ref, wconv_ref, wres_ref, w1_ref, w2t_ref, vecs_ref,
                fcol_ref, o_ref, *, k, Wp, activation):
    """Feature-major layout: every 2-D tile is (features, q) with the flattened,
    lane-padded spatial axis q on the 128-lane axis.

    q-space: q = h*Wp + w (w < W are real pixels; the rest is discarded by the
    wrapper), and tap(dy, dx)[q] = x_flat[q + dy*Wp + dx] — a pure lane shift.
    """
    Cout, Lq = o_ref.shape
    P = pos_ref.shape[0]
    pad = k // 2
    f32 = jnp.float32
    cdt = x_ref.dtype                       # matmul operand dtype (f32 or bf16)

    vecs = vecs_ref[...]                    # (Cout, 5): ln_w, ln_b, b1, b2, res_b

    # --- k*k 'same' conv: k*k lane-shifted views of the resident x tile, each
    #     consumed by an accumulated MXU matmul.  No im2col slab in HBM/VMEM.
    #     The 1x1 residual conv reuses the centre tap. -------------------------
    conv = None
    res = None
    for dy in range(k):
        for dx in range(k):
            off = dy * Wp + dx
            tap = x_ref[:, off:off + Lq]                        # (Cin, Lq)
            part = jnp.dot(wconv_ref[dy * k + dx], tap,
                           preferred_element_type=f32)
            conv = part if conv is None else conv + part
            if dy == pad and dx == pad:
                res = jnp.dot(wres_ref[...], tap, preferred_element_type=f32)
    res = res + vecs[:, 4:5]

    # --- LayerNorm over the channel axis (axis 0), eps=1e-5, affine -----------
    mean = jnp.mean(conv, axis=0, keepdims=True)
    d = conv - mean
    var = jnp.mean(d * d, axis=0, keepdims=True)
    xn = d * lax.rsqrt(var + 1e-5) * vecs[:, 0:1] + vecs[:, 1:2]

    # --- PositionEncoder: in-kernel NeRF sin/cos (EUP), ONE stacked matmul for
    #     the first Linear, then exact GELU and the second Linear. -------------
    fcol = fcol_ref[...]                                        # (Fp, 1) = |s| * 2**f
    pos = pos_ref[...]                                          # (P, Lq), f32
    pf = jnp.concatenate([pos[p:p + 1, :] * fcol for p in range(P)], axis=0)
    feats = jnp.concatenate([jnp.sin(pf), jnp.cos(pf)], axis=0)  # (2*P*Fp, Lq)
    h = jnp.dot(w1_ref[...], feats.astype(cdt),
                preferred_element_type=f32) + vecs[:, 2:3]
    h = _gelu_exact(h)
    pos_feat = jnp.dot(w2t_ref[...], h.astype(cdt),
                       preferred_element_type=f32) + vecs[:, 3:4]

    # --- add positional features + activation; dropout = eval-mode identity ---
    y = xn + pos_feat
    if activation == "relu":
        y = jnp.maximum(y, 0.0)
    elif activation == "gelu":
        y = _gelu_exact(y)
    elif activation == "silu":
        y = y * jax.nn.sigmoid(y)
    else:
        raise ValueError(activation)

    o_ref[...] = (y + res).astype(o_ref.dtype)      # lane-dense unmasked store


# -------------------------------- wrapper -------------------------------------

def _pick_vmem_limit(footprint_bytes):
    try:
        cap = int(pltpu.get_tpu_info().vmem_capacity_bytes)
    except Exception:
        cap = 64 * 1024 * 1024                 # conservative: v7x per-TC VMEM
    budget = cap - 16 * 1024 * 1024            # headroom for Mosaic internal scratch
    if footprint_bytes > budget:
        # TODO(synk): halo'd row tiling (manual DMA) for images that do not fit.
        raise ValueError(
            f"PCNN single-image VMEM footprint {footprint_bytes / 1e6:.1f} MB exceeds "
            f"the per-core budget {budget / 1e6:.1f} MB on this chip")
    return int(min(budget, max(2 * footprint_bytes + (8 << 20), 32 << 20)))


def pcnn_layer_forward(x_nchw, positions, params, *, kernel_size, activation="relu",
                       num_freq_bands=6, compute_dtype=jnp.float32,
                       out_dtype=jnp.float32):
    """x_nchw: (B, Cin, H, W); positions: (B, H, W, P)  ->  (B, Cout, H, W).

    For the PyTorch Identity-residual case (Cin == Cout) pass res_w = I, res_b = 0.
    """
    B, Cin, H, W = x_nchw.shape
    Cout = params["ln_w"].shape[-1]
    k = kernel_size
    assert k % 2 == 1, "same-padded conv assumes odd kernel_size"
    pad = k // 2
    P = positions.shape[-1]
    F = num_freq_bands
    Fp = _round_up(F, 8)       # pad freq axis so sublane concats stay tile aligned
    KK = k * k
    cdt = compute_dtype

    Wp, Hp = W + 2 * pad, H + 2 * pad
    # q-space length (output/compute), lane-padded; x-space needs the extra
    # (k-1)*(Wp+1) lanes so every tap slice stays in bounds.
    Lq = _round_up(H * Wp, 128)
    Lx = _round_up(Lq + (k - 1) * (Wp + 1), 128)

    # ---- x: zero-pad H/W once (≈1.0-1.3x bytes vs 9x for an HBM im2col slab) ----
    x_pad = jnp.pad(x_nchw.astype(jnp.float32),
                    ((0, 0), (0, 0), (pad, pad), (pad, pad)))
    x_flat = x_pad.reshape(B, Cin, Hp * Wp)
    x_flat = jnp.pad(x_flat, ((0, 0), (0, 0), (0, Lx - Hp * Wp))).astype(cdt)

    # ---- positions in the same q-space (kept f32 for sin/cos accuracy) ---------
    pos_q = jnp.transpose(positions.astype(jnp.float32), (0, 3, 1, 2))   # (B,P,H,W)
    pos_q = jnp.pad(pos_q, ((0, 0), (0, 0), (0, 0), (0, Wp - W)))
    pos_q = jnp.pad(pos_q.reshape(B, P, H * Wp),
                    ((0, 0), (0, 0), (0, Lq - H * Wp)))

    # ---- weights ----
    w_conv = jnp.transpose(params["conv_w"], (0, 2, 1)).astype(cdt)       # (KK,Cout,Cin)
    w_res = params["res_w"].T.astype(cdt)                                  # (Cout,Cin)

    # PE W1: (E, Cout) with E ordered (p, [sin f.., cos f..]) -> kernel order
    # (sc, p, f) with f padded to Fp (zero columns for the padded slots).
    w1 = params["mlp_w1"].reshape(P, 2, F, Cout)
    w1 = jnp.pad(w1, ((0, 0), (0, 0), (0, Fp - F), (0, 0)))
    w1 = jnp.transpose(w1, (3, 1, 0, 2)).reshape(Cout, 2 * P * Fp).astype(cdt)
    w2t = params["mlp_w2"].T.astype(cdt)                                   # (Cout,Cout)

    # exact |scale| * 2**f computed once in the wrapper (no per-step iota/exp)
    sfreq = jnp.abs(params["pos_scale"].astype(jnp.float32)) \
        * (2.0 ** jnp.arange(F, dtype=jnp.float32))
    fcol = jnp.pad(sfreq, (0, Fp - F)).reshape(Fp, 1)

    # consolidated per-channel vectors: [ln_w, ln_b, mlp_b1, mlp_b2, res_b]
    vecs = jnp.stack([params["ln_w"][0], params["ln_b"][0], params["mlp_b1"][0],
                      params["mlp_b2"][0], params["res_b"][0]],
                     axis=1).astype(jnp.float32)                            # (Cout, 5)

    # ---- per-chip VMEM budget / limit -------------------------------------------
    isz = jnp.dtype(cdt).itemsize
    footprint = (
        2 * Cin * Lx * isz                                   # x (double-buffered)
        + 2 * P * Lq * 4                                     # positions
        + 2 * Cout * Lq * jnp.dtype(out_dtype).itemsize      # output
        + 2 * (KK * Cout * Cin + Cout * Cin
               + Cout * 2 * P * Fp + Cout * Cout) * isz      # weights (2 buffers)
        + 2 * (Cout * 5 + Fp) * 4
        + (2 * Cin + 6 * Cout + 5 * P * Fp) * Lq * 4)        # rough live temporaries
    vmem_limit = _pick_vmem_limit(footprint)

    grid_spec = pltpu.PrefetchScalarGridSpec(
        num_scalar_prefetch=0,
        grid=(B,),                  # one flat parallel axis (megacore friendly)
        in_specs=[
            pl.BlockSpec((None, Cin, Lx), lambda b: (b, 0, 0)),       # x (full image)
            pl.BlockSpec((None, P, Lq), lambda b: (b, 0, 0)),         # positions
            pl.BlockSpec((KK, Cout, Cin), lambda b: (0, 0, 0)),       # conv weights
            pl.BlockSpec((Cout, Cin), lambda b: (0, 0)),              # residual weights
            pl.BlockSpec((Cout, 2 * P * Fp), lambda b: (0, 0)),       # PE W1 (stacked)
            pl.BlockSpec((Cout, Cout), lambda b: (0, 0)),             # PE W2^T
            pl.BlockSpec((Cout, 5), lambda b: (0, 0)),                # per-channel vecs
            pl.BlockSpec((Fp, 1), lambda b: (0, 0)),                  # |s| * 2**f
        ],
        out_specs=pl.BlockSpec((None, Cout, Lq), lambda b: (b, 0, 0)),
    )

    out = pl.pallas_call(
        functools.partial(pcnn_kernel, k=k, Wp=Wp, activation=activation),
        out_shape=jax.ShapeDtypeStruct((B, Cout, Lq), out_dtype),
        grid_spec=grid_spec,
        compiler_params=pltpu.CompilerParams(
            dimension_semantics=("parallel",),
            vmem_limit_bytes=vmem_limit),
    )(x_flat, pos_q, w_conv, w_res, w1, w2t, vecs, fcol)

    # back to NCHW: drop the lane pad, un-flatten, drop the width pad — all cheap.
    return out[:, :, :H * Wp].reshape(B, Cout, H, Wp)[:, :, :, :W]


# ----------------------------- pure-JAX reference -----------------------------

def pcnn_ref(x_nchw, positions, params, *, kernel_size, activation, num_freq_bands=6):
    B, Cin, H, W = x_nchw.shape
    k = kernel_size
    Cout = params["ln_w"].shape[-1]

    w_oihw = jnp.transpose(params["conv_w"].reshape(k, k, Cin, Cout), (3, 2, 0, 1))
    conv = lax.conv_general_dilated(
        x_nchw, w_oihw, (1, 1), [(k // 2, k // 2)] * 2,
        dimension_numbers=("NCHW", "OIHW", "NCHW"))

    xh = jnp.transpose(conv, (0, 2, 3, 1))
    mean = xh.mean(-1, keepdims=True)
    var = ((xh - mean) ** 2).mean(-1, keepdims=True)
    xn = (xh - mean) / jnp.sqrt(var + 1e-5) * params["ln_w"][0] + params["ln_b"][0]

    freq = 2.0 ** jnp.linspace(0.0, num_freq_bands - 1, num_freq_bands)
    s = jnp.abs(params["pos_scale"])
    p = positions[..., None] * freq
    enc = jnp.concatenate([jnp.sin(p * s), jnp.cos(p * s)], -1).reshape(B, H, W, -1)
    h = enc @ params["mlp_w1"] + params["mlp_b1"][0]
    h = jax.nn.gelu(h, approximate=False)
    pf = h @ params["mlp_w2"] + params["mlp_b2"][0]

    y = xn + pf
    if activation == "relu":
        y = jax.nn.relu(y)
    elif activation == "gelu":
        y = jax.nn.gelu(y, approximate=False)
    else:
        y = jax.nn.silu(y)

    res = jnp.einsum("bchw,co->bohw", x_nchw, params["res_w"]) \
        + params["res_b"][0].reshape(1, Cout, 1, 1)
    return jnp.transpose(y, (0, 3, 1, 2)) + res


# ----------------------------------- main --------------------------------------

if __name__ == "__main__":
    B, Cin, Cout, H, W = 2, 4, 8, 16, 16
    k, P, F = 3, 2, 6
    E = P * 2 * F
    stage = 1

    key = jax.random.PRNGKey(0)
    ks = jax.random.split(key, 12)
    x = jax.random.normal(ks[0], (B, Cin, H, W), jnp.float32)
    positions = jax.random.uniform(ks[1], (B, H, W, P), jnp.float32)

    params = dict(
        conv_w=jax.random.normal(ks[2], (k * k, Cin, Cout), jnp.float32) / (Cin * k * k) ** 0.5,
        res_w=jax.random.normal(ks[3], (Cin, Cout), jnp.float32) / Cin ** 0.5,
        res_b=0.1 * jax.random.normal(ks[4], (1, Cout), jnp.float32),
        ln_w=1.0 + 0.1 * jax.random.normal(ks[5], (1, Cout), jnp.float32),
        ln_b=0.1 * jax.random.normal(ks[6], (1, Cout), jnp.float32),
        mlp_w1=jax.random.normal(ks[7], (E, Cout), jnp.float32) / E ** 0.5,
        mlp_b1=0.1 * jax.random.normal(ks[8], (1, Cout), jnp.float32),
        mlp_w2=jax.random.normal(ks[9], (Cout, Cout), jnp.float32) / Cout ** 0.5,
        mlp_b2=0.1 * jax.random.normal(ks[10], (1, Cout), jnp.float32),
        pos_scale=jnp.float32(1.0 / stage),
    )

    # f32 operands by default so the result matches the f32 PyTorch module to
    # <1e-3; pass compute_dtype=jnp.bfloat16 for halved HBM traffic / bf16 MXU.
    out = pcnn_layer_forward(x, positions, params, kernel_size=k, activation="relu")
    out = jax.block_until_ready(out)
    assert out.shape == (B, Cout, H, W)

    ref = pcnn_ref(x, positions, params, kernel_size=k, activation="relu")
    max_err = float(jnp.max(jnp.abs(out - ref)))
    assert max_err < 1e-3, f"max abs error too large: {max_err}"

    print("KERNEL_OK")
</pallas_src>

<mosaic_0001>
module attributes {stable_mosaic.version = 11 : i64} {
  func.func @pcnn_kernel(%arg0: i32, %arg1: memref<1x4x512xf32, #tpu.memory_space<vmem>>, %arg2: memref<1x2x384xf32, #tpu.memory_space<vmem>>, %arg3: memref<9x8x4xf32, #tpu.memory_space<vmem>>, %arg4: memref<8x4xf32, #tpu.memory_space<vmem>>, %arg5: memref<8x32xf32, #tpu.memory_space<vmem>>, %arg6: memref<8x8xf32, #tpu.memory_space<vmem>>, %arg7: memref<8x5xf32, #tpu.memory_space<vmem>>, %arg8: memref<8x1xf32, #tpu.memory_space<vmem>>, %arg9: memref<1x8x384xf32, #tpu.memory_space<vmem>>) attributes {dimension_semantics = [#tpu.dimension_semantics<parallel>], iteration_bounds = array<i64: 2>, scalar_prefetch = 0 : i64, scratch_operands = 0 : i64, tpu.core_type = #tpu.core_type<tc>, window_params = [{transform_indices = @transform_0, window_bounds = array<i64: 1, 4, 512>}, {transform_indices = @transform_1, window_bounds = array<i64: 1, 2, 384>}, {pipeline_mode = #tpu.pipeline_mode<synchronous>, transform_indices = @transform_2, window_bounds = array<i64: 9, 8, 4>}, {pipeline_mode = #tpu.pipeline_mode<synchronous>, transform_indices = @transform_3, window_bounds = array<i64: 8, 4>}, {pipeline_mode = #tpu.pipeline_mode<synchronous>, transform_indices = @transform_4, window_bounds = array<i64: 8, 32>}, {pipeline_mode = #tpu.pipeline_mode<synchronous>, transform_indices = @transform_5, window_bounds = array<i64: 8, 8>}, {pipeline_mode = #tpu.pipeline_mode<synchronous>, transform_indices = @transform_6, window_bounds = array<i64: 8, 5>}, {pipeline_mode = #tpu.pipeline_mode<synchronous>, transform_indices = @transform_7, window_bounds = array<i64: 8, 1>}, {transform_indices = @transform_8, window_bounds = array<i64: 1, 8, 384>}]} {
    %c0 = arith.constant 0 : index
    %c0_0 = arith.constant 0 : index
    %0 = vector.load %arg7[%c0, %c0_0] : memref<8x5xf32, #tpu.memory_space<vmem>>, vector<8x5xf32>
    %c0_1 = arith.constant 0 : index
    %c0_2 = arith.constant 0 : index
    %c0_3 = arith.constant 0 : index
    %1 = vector.load %arg1[%c0_1, %c0_2, %c0_3] : memref<1x4x512xf32, #tpu.memory_space<vmem>>, vector<1x4x384xf32>
    %2 = vector.shape_cast %1 : vector<1x4x384xf32> to vector<4x384xf32>
    %c0_4 = arith.constant 0 : index
    %c0_5 = arith.constant 0 : index
    %c0_6 = arith.constant 0 : index
    %3 = vector.load %arg3[%c0_4, %c0_5, %c0_6] : memref<9x8x4xf32, #tpu.memory_space<vmem>>, vector<1x8x4xf32>
    %4 = vector.shape_cast %3 : vector<1x8x4xf32> to vector<8x4xf32>
    %cst = arith.constant dense<0.000000e+00> : vector<8x384xf32>
    %5 = tpu.matmul %4, %2, %cst {dimension_numbers = #tpu.dot_dimension_numbers<[1], [0], [0], [1], [0, 0, 1, 1], [], []>} : vector<8x4xf32>, vector<4x384xf32>, vector<8x384xf32> -> vector<8x384xf32>
    %c0_7 = arith.constant 0 : index
    %c0_8 = arith.constant 0 : index
    %c1 = arith.constant 1 : index
    %6 = vector.load %arg1[%c0_7, %c0_8, %c1] : memref<1x4x512xf32, #tpu.memory_space<vmem>>, vector<1x4x384xf32>
    %7 = vector.shape_cast %6 : vector<1x4x384xf32> to vector<4x384xf32>
    %c1_9 = arith.constant 1 : index
    %c0_10 = arith.constant 0 : index
    %c0_11 = arith.constant 0 : index
    %8 = vector.load %arg3[%c1_9, %c0_10, %c0_11] : memref<9x8x4xf32, #tpu.memory_space<vmem>>, vector<1x8x4xf32>
    %9 = vector.shape_cast %8 : vector<1x8x4xf32> to vector<8x4xf32>
    %cst_12 = arith.constant dense<0.000000e+00> : vector<8x384xf32>
    %10 = tpu.matmul %9, %7, %cst_12 {dimension_numbers = #tpu.dot_dimension_numbers<[1], [0], [0], [1], [0, 0, 1, 1], [], []>} : vector<8x4xf32>, vector<4x384xf32>, vector<8x384xf32> -> vector<8x384xf32>
    %11 = arith.addf %5, %10 : vector<8x384xf32>
    %c0_13 = arith.constant 0 : index
    %c0_14 = arith.constant 0 : index
    %c2 = arith.constant 2 : index
    %12 = vector.load %arg1[%c0_13, %c0_14, %c2] : memref<1x4x512xf32, #tpu.memory_space<vmem>>, vector<1x4x384xf32>
    %13 = vector.shape_cast %12 : vector<1x4x384xf32> to vector<4x384xf32>
    %c2_15 = arith.constant 2 : index
    %c0_16 = arith.constant 0 : index
    %c0_17 = arith.constant 0 : index
    %14 = vector.load %arg3[%c2_15, %c0_16, %c0_17] : memref<9x8x4xf32, #tpu.memory_space<vmem>>, vector<1x8x4xf32>
    %15 = vector.shape_cast %14 : vector<1x8x4xf32> to vector<8x4xf32>
    %cst_18 = arith.constant dense<0.000000e+00> : vector<8x384xf32>
    %16 = tpu.matmul %15, %13, %cst_18 {dimension_numbers = #tpu.dot_dimension_numbers<[1], [0], [0], [1], [0, 0, 1, 1], [], []>} : vector<8x4xf32>, vector<4x384xf32>, vector<8x384xf32> -> vector<8x384xf32>
    %17 = arith.addf %11, %16 : vector<8x384xf32>
    %c0_19 = arith.constant 0 : index
    %c0_20 = arith.constant 0 : index
    %c18 = arith.constant 18 : index
    %18 = vector.load %arg1[%c0_19, %c0_20, %c18] : memref<1x4x512xf32, #tpu.memory_space<vmem>>, vector<1x4x384xf32>
    %19 = vector.shape_cast %18 : vector<1x4x384xf32> to vector<4x384xf32>
    %c3 = arith.constant 3 : index
    %c0_21 = arith.constant 0 : index
    %c0_22 = arith.constant 0 : index
    %20 = vector.load %arg3[%c3, %c0_21, %c0_22] : memref<9x8x4xf32, #tpu.memory_space<vmem>>, vector<1x8x4xf32>
    %21 = vector.shape_cast %20 : vector<1x8x4xf32> to vector<8x4xf32>
    %cst_23 = arith.constant dense<0.000000e+00> : vector<8x384xf32>
    %22 = tpu.matmul %21, %19, %cst_23 {dimension_numbers = #tpu.dot_dimension_numbers<[1], [0], [0], [1], [0, 0, 1, 1], [], []>} : vector<8x4xf32>, vector<4x384xf32>, vector<8x384xf32> -> vector<8x384xf32>
    %23 = arith.addf %17, %22 : vector<8x384xf32>
    %c0_24 = arith.constant 0 : index
    %c0_25 = arith.constant 0 : index
    %c19 = arith.constant 19 : index
    %24 = vector.load %arg1[%c0_24, %c0_25, %c19] : memref<1x4x512xf32, #tpu.memory_space<vmem>>, vector<1x4x384xf32>
    %25 = vector.shape_cast %24 : vector<1x4x384xf32> to vector<4x384xf32>
    %c4 = arith.constant 4 : index
    %c0_26 = arith.constant 0 : index
    %c0_27 = arith.constant 0 : index
    %26 = vector.load %arg3[%c4, %c0_26, %c0_27] : memref<9x8x4xf32, #tpu.memory_space<vmem>>, vector<1x8x4xf32>
    %27 = vector.shape_cast %26 : vector<1x8x4xf32> to vector<8x4xf32>
    %cst_28 = arith.constant dense<0.000000e+00> : vector<8x384xf32>
    %28 = tpu.matmul %27, %25, %cst_28 {dimension_numbers = #tpu.dot_dimension_numbers<[1], [0], [0], [1], [0, 0, 1, 1], [], []>} : vector<8x4xf32>, vector<4x384xf32>, vector<8x384xf32> -> vector<8x384xf32>
    %29 = arith.addf %23, %28 : vector<8x384xf32>
    %c0_29 = arith.constant 0 : index
    %c0_30 = arith.constant 0 : index
    %30 = vector.load %arg4[%c0_29, %c0_30] : memref<8x4xf32, #tpu.memory_space<vmem>>, vector<8x4xf32>
    %cst_31 = arith.constant dense<0.000000e+00> : vector<8x384xf32>
    %31 = tpu.matmul %30, %25, %cst_31 {dimension_numbers = #tpu.dot_dimension_numbers<[1], [0], [0], [1], [0, 0, 1, 1], [], []>} : vector<8x4xf32>, vector<4x384xf32>, vector<8x384xf32> -> vector<8x384xf32>
    %c0_32 = arith.constant 0 : index
    %c0_33 = arith.constant 0 : index
    %c20 = arith.constant 20 : index
    %32 = vector.load %arg1[%c0_32, %c0_33, %c20] : memref<1x4x512xf32, #tpu.memory_space<vmem>>, vector<1x4x384xf32>
    %33 = vector.shape_cast %32 : vector<1x4x384xf32> to vector<4x384xf32>
    %c5 = arith.constant 5 : index
    %c0_34 = arith.constant 0 : index
    %c0_35 = arith.constant 0 : index
    %34 = vector.load %arg3[%c5, %c0_34, %c0_35] : memref<9x8x4xf32, #tpu.memory_space<vmem>>, vector<1x8x4xf32>
    %35 = vector.shape_cast %34 : vector<1x8x4xf32> to vector<8x4xf32>
    %cst_36 = arith.constant dense<0.000000e+00> : vector<8x384xf32>
    %36 = tpu.matmul %35, %33, %cst_36 {dimension_numbers = #tpu.dot_dimension_numbers<[1], [0], [0], [1], [0, 0, 1, 1], [], []>} : vector<8x4xf32>, vector<4x384xf32>, vector<8x384xf32> -> vector<8x384xf32>
    %37 = arith.addf %29, %36 : vector<8x384xf32>
    %c0_37 = arith.constant 0 : index
    %c0_38 = arith.constant 0 : index
    %c36 = arith.constant 36 : index
    %38 = vector.load %arg1[%c0_37, %c0_38, %c36] : memref<1x4x512xf32, #tpu.memory_space<vmem>>, vector<1x4x384xf32>
    %39 = vector.shape_cast %38 : vector<1x4x384xf32> to vector<4x384xf32>
    %c6 = arith.constant 6 : index
    %c0_39 = arith.constant 0 : index
    %c0_40 = arith.constant 0 : index
    %40 = vector.load %arg3[%c6, %c0_39, %c0_40] : memref<9x8x4xf32, #tpu.memory_space<vmem>>, vector<1x8x4xf32>
    %41 = vector.shape_cast %40 : vector<1x8x4xf32> to vector<8x4xf32>
    %cst_41 = arith.constant dense<0.000000e+00> : vector<8x384xf32>
    %42 = tpu.matmul %41, %39, %cst_41 {dimension_numbers = #tpu.dot_dimension_numbers<[1], [0], [0], [1], [0, 0, 1, 1], [], []>} : vector<8x4xf32>, vector<4x384xf32>, vector<8x384xf32> -> vector<8x384xf32>
    %43 = arith.addf %37, %42 : vector<8x384xf32>
    %c0_42 = arith.constant 0 : index
    %c0_43 = arith.constant 0 : index
    %c37 = arith.constant 37 : index
    %44 = vector.load %arg1[%c0_42, %c0_43, %c37] : memref<1x4x512xf32, #tpu.memory_space<vmem>>, vector<1x4x384xf32>
    %45 = vector.shape_cast %44 : vector<1x4x384xf32> to vector<4x384xf32>
    %c7 = arith.constant 7 : index
    %c0_44 = arith.constant 0 : index
    %c0_45 = arith.constant 0 : index
    %46 = vector.load %arg3[%c7, %c0_44, %c0_45] : memref<9x8x4xf32, #tpu.memory_space<vmem>>, vector<1x8x4xf32>
    %47 = vector.shape_cast %46 : vector<1x8x4xf32> to vector<8x4xf32>
    %cst_46 = arith.constant dense<0.000000e+00> : vector<8x384xf32>
    %48 = tpu.matmul %47, %45, %cst_46 {dimension_numbers = #tpu.dot_dimension_numbers<[1], [0], [0], [1], [0, 0, 1, 1], [], []>} : vector<8x4xf32>, vector<4x384xf32>, vector<8x384xf32> -> vector<8x384xf32>
    %49 = arith.addf %43, %48 : vector<8x384xf32>
    %c0_47 = arith.constant 0 : index
    %c0_48 = arith.constant 0 : index
    %c38 = arith.constant 38 : index
    %50 = vector.load %arg1[%c0_47, %c0_48, %c38] : memref<1x4x512xf32, #tpu.memory_space<vmem>>, vector<1x4x384xf32>
    %51 = vector.shape_cast %50 : vector<1x4x384xf32> to vector<4x384xf32>
    %c8 = arith.constant 8 : index
    %c0_49 = arith.constant 0 : index
    %c0_50 = arith.constant 0 : index
    %52 = vector.load %arg3[%c8, %c0_49, %c0_50] : memref<9x8x4xf32, #tpu.memory_space<vmem>>, vector<1x8x4xf32>
    %53 = vector.shape_cast %52 : vector<1x8x4xf32> to vector<8x4xf32>
    %cst_51 = arith.constant dense<0.000000e+00> : vector<8x384xf32>
    %54 = tpu.matmul %53, %51, %cst_51 {dimension_numbers = #tpu.dot_dimension_numbers<[1], [0], [0], [1], [0, 0, 1, 1], [], []>} : vector<8x4xf32>, vector<4x384xf32>, vector<8x384xf32> -> vector<8x384xf32>
    %55 = arith.addf %49, %54 : vector<8x384xf32>
    %56 = vector.extract_strided_slice %0 {offsets = [0, 4], sizes = [8, 1], strides = [1, 1]} : vector<8x5xf32> to vector<8x1xf32>
    %57 = vector.broadcast %56 : vector<8x1xf32> to vector<8x384xf32>
    %58 = arith.addf %31, %57 : vector<8x384xf32>
    %cst_52 = arith.constant dense<0.000000e+00> : vector<384xf32>
    %59 = vector.multi_reduction <add>, %55, %cst_52 [0] : vector<8x384xf32> to vector<384xf32>
    %60 = vector.shape_cast %59 : vector<384xf32> to vector<1x384xf32>
    %cst_53 = arith.constant 8.000000e+00 : f32
    %61 = vector.broadcast %cst_53 : f32 to vector<1x384xf32>
    %62 = arith.divf %60, %61 : vector<1x384xf32>
    %63 = vector.broadcast %62 : vector<1x384xf32> to vector<8x384xf32>
    %64 = arith.subf %55, %63 : vector<8x384xf32>
    %65 = arith.mulf %64, %64 : vector<8x384xf32>
    %cst_54 = arith.constant dense<0.000000e+00> : vector<384xf32>
    %66 = vector.multi_reduction <add>, %65, %cst_54 [0] : vector<8x384xf32> to vector<384xf32>
    %67 = vector.shape_cast %66 : vector<384xf32> to vector<1x384xf32>
    %cst_55 = arith.constant 8.000000e+00 : f32
    %68 = vector.broadcast %cst_55 : f32 to vector<1x384xf32>
    %69 = arith.divf %67, %68 : vector<1x384xf32>
    %cst_56 = arith.constant 9.99999974E-6 : f32
    %70 = vector.broadcast %cst_56 : f32 to vector<1x384xf32>
    %71 = arith.addf %69, %70 : vector<1x384xf32>
    %72 = math.rsqrt %71 : vector<1x384xf32>
    %73 = vector.broadcast %72 : vector<1x384xf32> to vector<8x384xf32>
    %74 = arith.mulf %64, %73 : vector<8x384xf32>
    %75 = vector.extract_strided_slice %0 {offsets = [0, 0], sizes = [8, 1], strides = [1, 1]} : vector<8x5xf32> to vector<8x1xf32>
    %76 = vector.broadcast %75 : vector<8x1xf32> to vector<8x384xf32>
    %77 = arith.mulf %74, %76 : vector<8x384xf32>
    %78 = vector.extract_strided_slice %0 {offsets = [0, 1], sizes = [8, 1], strides = [1, 1]} : vector<8x5xf32> to vector<8x1xf32>
    %79 = vector.broadcast %78 : vector<8x1xf32> to vector<8x384xf32>
    %80 = arith.addf %77, %79 : vector<8x384xf32>
    %c0_57 = arith.constant 0 : index
    %c0_58 = arith.constant 0 : index
    %81 = vector.load %arg8[%c0_57, %c0_58] : memref<8x1xf32, #tpu.memory_space<vmem>>, vector<8x1xf32>
    %c0_59 = arith.constant 0 : index
    %c0_60 = arith.constant 0 : index
    %c0_61 = arith.constant 0 : index
    %82 = vector.load %arg2[%c0_59, %c0_60, %c0_61] : memref<1x2x384xf32, #tpu.memory_space<vmem>>, vector<1x2x384xf32>
    %83 = vector.shape_cast %82 : vector<1x2x384xf32> to vector<2x384xf32>
    %84 = vector.extract_strided_slice %83 {offsets = [0, 0], sizes = [1, 384], strides = [1, 1]} : vector<2x384xf32> to vector<1x384xf32>
    %85 = vector.broadcast %84 : vector<1x384xf32> to vector<8x384xf32>
    %86 = vector.broadcast %81 : vector<8x1xf32> to vector<8x384xf32>
    %87 = arith.mulf %85, %86 : vector<8x384xf32>
    %88 = vector.extract_strided_slice %83 {offsets = [1, 0], sizes = [1, 384], strides = [1, 1]} : vector<2x384xf32> to vector<1x384xf32>
    %89 = vector.broadcast %88 : vector<1x384xf32> to vector<8x384xf32>
    %90 = vector.broadcast %81 : vector<8x1xf32> to vector<8x384xf32>
    %91 = arith.mulf %89, %90 : vector<8x384xf32>
    %92 = tpu.concatenate %87, %91 in 0 : vector<8x384xf32>, vector<8x384xf32> -> vector<16x384xf32>
    %93 = math.sin %92 : vector<16x384xf32>
    %94 = math.cos %92 : vector<16x384xf32>
    %95 = tpu.concatenate %93, %94 in 0 : vector<16x384xf32>, vector<16x384xf32> -> vector<32x384xf32>
    %c0_62 = arith.constant 0 : index
    %c0_63 = arith.constant 0 : index
    %96 = vector.load %arg5[%c0_62, %c0_63] : memref<8x32xf32, #tpu.memory_space<vmem>>, vector<8x32xf32>
    %cst_64 = arith.constant dense<0.000000e+00> : vector<8x384xf32>
    %97 = tpu.matmul %96, %95, %cst_64 {dimension_numbers = #tpu.dot_dimension_numbers<[1], [0], [0], [1], [0, 0, 1, 1], [], []>} : vector<8x32xf32>, vector<32x384xf32>, vector<8x384xf32> -> vector<8x384xf32>
    %98 = vector.extract_strided_slice %0 {offsets = [0, 2], sizes = [8, 1], strides = [1, 1]} : vector<8x5xf32> to vector<8x1xf32>
    %99 = vector.broadcast %98 : vector<8x1xf32> to vector<8x384xf32>
    %100 = arith.addf %97, %99 : vector<8x384xf32>
    %cst_65 = arith.constant 5.000000e-01 : f32
    %101 = vector.broadcast %cst_65 : f32 to vector<8x384xf32>
    %102 = arith.mulf %101, %100 : vector<8x384xf32>
    %cst_66 = arith.constant 0.707106769 : f32
    %103 = vector.broadcast %cst_66 : f32 to vector<8x384xf32>
    %104 = arith.mulf %100, %103 : vector<8x384xf32>
    %cst_67 = arith.constant 0.000000e+00 : f32
    %105 = vector.broadcast %cst_67 : f32 to vector<8x384xf32>
    %106 = arith.cmpf oge, %104, %105 : vector<8x384xf32>
    %cst_68 = arith.constant 1.000000e+00 : f32
    %cst_69 = arith.constant -1.000000e+00 : f32
    %107 = vector.broadcast %cst_68 : f32 to vector<8x384xf32>
    %108 = vector.broadcast %cst_69 : f32 to vector<8x384xf32>
    %109 = arith.select %106, %107, %108 : vector<8x384xi1>, vector<8x384xf32>
    %110 = math.absf %104 : vector<8x384xf32>
    %cst_70 = arith.constant 0.327591091 : f32
    %111 = vector.broadcast %cst_70 : f32 to vector<8x384xf32>
    %112 = arith.mulf %111, %110 : vector<8x384xf32>
    %cst_71 = arith.constant 1.000000e+00 : f32
    %113 = vector.broadcast %cst_71 : f32 to vector<8x384xf32>
    %114 = arith.addf %113, %112 : vector<8x384xf32>
    %cst_72 = arith.constant 1.000000e+00 : f32
    %115 = vector.broadcast %cst_72 : f32 to vector<8x384xf32>
    %116 = arith.divf %115, %114 : vector<8x384xf32>
    %cst_73 = arith.constant 1.06140542 : f32
    %117 = vector.broadcast %cst_73 : f32 to vector<8x384xf32>
    %118 = arith.mulf %117, %116 : vector<8x384xf32>
    %cst_74 = arith.constant -1.45315206 : f32
    %119 = vector.broadcast %cst_74 : f32 to vector<8x384xf32>
    %120 = arith.addf %118, %119 : vector<8x384xf32>
    %121 = arith.mulf %120, %116 : vector<8x384xf32>
    %cst_75 = arith.constant 1.42141378 : f32
    %122 = vector.broadcast %cst_75 : f32 to vector<8x384xf32>
    %123 = arith.addf %121, %122 : vector<8x384xf32>
    %124 = arith.mulf %123, %116 : vector<8x384xf32>
    %cst_76 = arith.constant -0.284496725 : f32
    %125 = vector.broadcast %cst_76 : f32 to vector<8x384xf32>
    %126 = arith.addf %124, %125 : vector<8x384xf32>
    %127 = arith.mulf %126, %116 : vector<8x384xf32>
    %cst_77 = arith.constant 0.254829586 : f32
    %128 = vector.broadcast %cst_77 : f32 to vector<8x384xf32>
    %129 = arith.addf %127, %128 : vector<8x384xf32>
    %130 = arith.mulf %129, %116 : vector<8x384xf32>
    %cst_78 = arith.constant 0.000000e+00 : f32
    %131 = vector.broadcast %cst_78 : f32 to vector<8x384xf32>
    %132 = arith.subf %131, %110 : vector<8x384xf32>
    %133 = arith.mulf %132, %110 : vector<8x384xf32>
    %134 = math.exp %133 : vector<8x384xf32>
    %135 = arith.mulf %130, %134 : vector<8x384xf32>
    %cst_79 = arith.constant 1.000000e+00 : f32
    %136 = vector.broadcast %cst_79 : f32 to vector<8x384xf32>
    %137 = arith.subf %136, %135 : vector<8x384xf32>
    %138 = arith.mulf %109, %137 : vector<8x384xf32>
    %cst_80 = arith.constant 1.000000e+00 : f32
    %139 = vector.broadcast %cst_80 : f32 to vector<8x384xf32>
    %140 = arith.addf %139, %138 : vector<8x384xf32>
    %141 = arith.mulf %102, %140 : vector<8x384xf32>
    %c0_81 = arith.constant 0 : index
    %c0_82 = arith.constant 0 : index
    %142 = vector.load %arg6[%c0_81, %c0_82] : memref<8x8xf32, #tpu.memory_space<vmem>>, vector<8x8xf32>
    %cst_83 = arith.constant dense<0.000000e+00> : vector<8x384xf32>
    %143 = tpu.matmul %142, %141, %cst_83 {dimension_numbers = #tpu.dot_dimension_numbers<[1], [0], [0], [1], [0, 0, 1, 1], [], []>} : vector<8x8xf32>, vector<8x384xf32>, vector<8x384xf32> -> vector<8x384xf32>
    %144 = vector.extract_strided_slice %0 {offsets = [0, 3], sizes = [8, 1], strides = [1, 1]} : vector<8x5xf32> to vector<8x1xf32>
    %145 = vector.broadcast %144 : vector<8x1xf32> to vector<8x384xf32>
    %146 = arith.addf %143, %145 : vector<8x384xf32>
    %147 = arith.addf %80, %146 : vector<8x384xf32>
    %cst_84 = arith.constant 0.000000e+00 : f32
    %148 = vector.broadcast %cst_84 : f32 to vector<8x384xf32>
    %149 = arith.maximumf %147, %148 : vector<8x384xf32>
    %150 = arith.addf %149, %58 : vector<8x384xf32>
    %c0_85 = arith.constant 0 : index
    %c0_86 = arith.constant 0 : index
    %c0_87 = arith.constant 0 : index
    %151 = vector.load %arg9[%c0_85, %c0_86, %c0_87] : memref<1x8x384xf32, #tpu.memory_space<vmem>>, vector<1x8x384xf32>
    %152 = vector.shape_cast %151 : vector<1x8x384xf32> to vector<8x384xf32>
    %153 = vector.shape_cast %150 : vector<8x384xf32> to vector<1x8x384xf32>
    tpu.vector_store %arg9[%c0_85, %c0_86, %c0_87], %153 {strides = array<i32>} : memref<1x8x384xf32, #tpu.memory_space<vmem>>, vector<1x8x384xf32>,
    return
  }
  func.func @transform_0(%arg0: i32) -> (i32, i32, i32) {
    %c0_i32 = arith.constant 0 : i32
    %c0_i32_0 = arith.constant 0 : i32
    %c0_i32_1 = arith.constant 0 : i32
    return %arg0, %c0_i32, %c0_i32_0 : i32, i32, i32
  }
  func.func @transform_1(%arg0: i32) -> (i32, i32, i32) {
    %c0_i32 = arith.constant 0 : i32
    %c0_i32_0 = arith.constant 0 : i32
    %c0_i32_1 = arith.constant 0 : i32
    return %arg0, %c0_i32, %c0_i32_0 : i32, i32, i32
  }
  func.func @transform_2(%arg0: i32) -> (i32, i32, i32) {
    %c0_i32 = arith.constant 0 : i32
    %c0_i32_0 = arith.constant 0 : i32
    %c0_i32_1 = arith.constant 0 : i32
    %c0_i32_2 = arith.constant 0 : i32
    return %c0_i32, %c0_i32_0, %c0_i32_1 : i32, i32, i32
  }
  func.func @transform_3(%arg0: i32) -> (i32, i32) {
    %c0_i32 = arith.constant 0 : i32
    %c0_i32_0 = arith.constant 0 : i32
    %c0_i32_1 = arith.constant 0 : i32
    return %c0_i32, %c0_i32_0 : i32, i32
  }
  func.func @transform_4(%arg0: i32) -> (i32, i32) {
    %c0_i32 = arith.constant 0 : i32
    %c0_i32_0 = arith.constant 0 : i32
    %c0_i32_1 = arith.constant 0 : i32
    return %c0_i32, %c0_i32_0 : i32, i32
  }
  func.func @transform_5(%arg0: i32) -> (i32, i32) {
    %c0_i32 = arith.constant 0 : i32
    %c0_i32_0 = arith.constant 0 : i32
    %c0_i32_1 = arith.constant 0 : i32
    return %c0_i32, %c0_i32_0 : i32, i32
  }
  func.func @transform_6(%arg0: i32) -> (i32, i32) {
    %c0_i32 = arith.constant 0 : i32
    %c0_i32_0 = arith.constant 0 : i32
    %c0_i32_1 = arith.constant 0 : i32
    return %c0_i32, %c0_i32_0 : i32, i32
  }
  func.func @transform_7(%arg0: i32) -> (i32, i32) {
    %c0_i32 = arith.constant 0 : i32
    %c0_i32_0 = arith.constant 0 : i32
    %c0_i32_1 = arith.constant 0 : i32
    return %c0_i32, %c0_i32_0 : i32, i32
  }
  func.func @transform_8(%arg0: i32) -> (i32, i32, i32) {
    %c0_i32 = arith.constant 0 : i32
    %c0_i32_0 = arith.constant 0 : i32
    %c0_i32_1 = arith.constant 0 : i32
    return %arg0, %c0_i32, %c0_i32_0 : i32, i32, i32
  }
}

</mosaic_0001>

<llo_original>
// kernel: tpu_custom_call.1
$region0: #{tpu_custom_call.1}
  #allocation0 [shape = 'u32[]', space=smem, size = 0x4, offset = 0x4, fixed_abs, tag = 'smem constant byte address 0x4 - core index']
  #allocation1 [shape = 'u32[72,128]{1,0:T(1,128)}', space=vmem, size = 0x9000, scoped, tag = 'internal scratch']
  %s0 = inlined_call_operand.vmem [shape: f32[2,4,512], index: 0, kind: input, shape index: {}]
  %s1 = inlined_call_operand.vmem [shape: f32[2,2,384], index: 1, kind: input, shape index: {}]
  %s2 = inlined_call_operand.vmem [shape: f32[9,8,4], index: 2, kind: input, shape index: {}]
  %s3 = inlined_call_operand.vmem [shape: f32[8,4], index: 3, kind: input, shape index: {}]
  %s4 = inlined_call_operand.vmem [shape: f32[8,32], index: 4, kind: input, shape index: {}]
  %s5 = inlined_call_operand.vmem [shape: f32[8,8], index: 5, kind: input, shape index: {}]
  %s6 = inlined_call_operand.vmem [shape: f32[8,5], index: 6, kind: input, shape index: {}]
  %s7 = inlined_call_operand.vmem [shape: f32[8,1], index: 7, kind: input, shape index: {}]
  %s8 = inlined_call_operand.hbm [shape: f32[2,8,384], index: 8, kind: output, shape index: {}]
  %s9 = sld [smem:[#allocation0]]
  $region65: #{tpu_custom_call.1} parent=0
    _
  %s11 = ssub.s32 1, %s9
  %s12 = scalar_select 0, %s11, %s9
  $region1: #{tpu_custom_call.1} parent=0
    #allocation2 [shape = 'u8[24576]{0}', space=vmem, size = 0x6000, scoped, tag = 'output window, operand 0']
    #allocation3 [shape = 's32[2]{0}', space=sflag, size = 0x8, scoped, tag = 'scoped memory for tpu_custom_call.1']
    %13 = vsyncpa [#allocation3], 0
    %s14 = scalar_lea.sflag [#allocation3], 1
    %15 = vsyncpa %s14, 0
    loop: start=0, step=1, limit=4
    $region2: #{tpu_custom_call.1} parent=1 // loop_pre_header
      _
    $region3: #{tpu_custom_call.1} parent=1 // loop_header
      %s17 = sphi 0, %s21
      %p18 = scmp.ge.s32.totalorder %s17, 4
      %s27 = sphi 0, %s29
      %s30 = sphi 0, %s27
      %s31 = sphi 0, %s30
      %s47 = sphi 0, %s31
      %s53 = sphi 0, %s55
      %s56 = sphi 0, %s53
      %s57 = sphi 0, %s56
      %s73 = sphi 0, %s57
      %s77 = sphi 0, %s77
      %s79 = sphi 0, %s77
      %s80 = sphi 0, %s79
      %s94 = sphi 0, %s80
      %s98 = sphi 0, %s98
      %s100 = sphi 0, %s98
      %s101 = sphi 0, %s100
      %s115 = sphi 0, %s101
      %s119 = sphi 0, %s119
      %s121 = sphi 0, %s119
      %s122 = sphi 0, %s121
      %s136 = sphi 0, %s122
      %s140 = sphi 0, %s140
      %s142 = sphi 0, %s140
      %s143 = sphi 0, %s142
      %s157 = sphi 0, %s143
      %s161 = sphi 0, %s161
      %s163 = sphi 0, %s161
      %s164 = sphi 0, %s163
      %s178 = sphi 0, %s164
      %s182 = sphi 0, %s182
      %s184 = sphi 0, %s182
      %s185 = sphi 0, %s184
      %s199 = sphi 0, %s185
      %s205 = sphi 0, %s207
      %s208 = sphi 0, %s205
      %s209 = sphi 0, %s208
      %s225 = sphi 0, %s209
    $region4: #{tpu_custom_call.1} parent=1 // loop_header_branch
      %20 = sbr.rel (%p18) target = $region8
    $region5: #{tpu_custom_call.1} parent=1 // loop_body
      %s22 = ssub.s32 %s17, 1
      %s23 = ssub.s32 %s17, 2
      %s24 = sadd.s32 %s17, 1
      %s25 = ssub.s32 %s17, %s24
      %p26 = scmp.eq.s32.totalorder %s25, 0
      %s28 = sadd.s32 %s27, 1
      %s29 = scalar_select %p26, %s27, %s28
      %p32 = pneg %p26
      %p33 = scmp.eq.s32.totalorder %s17, 1
      %p34 = por %p32, %p33
      %p35 = scmp.ne.s32.totalorder %s27, %s30
      %p36 = scmp.eq.s32.totalorder %s17, 0
      %p37 = por %p35, %p36
      %p38 = scmp.ne.s32.totalorder %s27, %s30
      %p39 = scmp.eq.s32.totalorder %s22, 1
      %p40 = por %p38, %p39
      %p41 = scmp.ne.s32.totalorder %s30, %s31
      %p42 = scmp.eq.s32.totalorder %s22, 0
      %p43 = por %p41, %p42
      %p44 = scmp.ne.s32.totalorder %s30, %s31
      %p45 = scmp.eq.s32.totalorder %s23, 1
      %p46 = por %p44, %p45
      %p48 = scmp.ne.s32.totalorder %s31, %s47
      %p49 = scmp.eq.s32.totalorder %s23, 0
      %p50 = por %p48, %p49
      %s51 = ssub.s32 %s17, %s24
      %p52 = scmp.eq.s32.totalorder %s51, 0
      %s54 = sadd.s32 %s53, 1
      %s55 = scalar_select %p52, %s53, %s54
      %p58 = pneg %p52
      %p59 = scmp.eq.s32.totalorder %s17, 1
      %p60 = por %p58, %p59
      %p61 = scmp.ne.s32.totalorder %s53, %s56
      %p62 = scmp.eq.s32.totalorder %s17, 0
      %p63 = por %p61, %p62
      %p64 = scmp.ne.s32.totalorder %s53, %s56
      %p65 = scmp.eq.s32.totalorder %s22, 1
      %p66 = por %p64, %p65
      %p67 = scmp.ne.s32.totalorder %s56, %s57
      %p68 = scmp.eq.s32.totalorder %s22, 0
      %p69 = por %p67, %p68
      %p70 = scmp.ne.s32.totalorder %s56, %s57
      %p71 = scmp.eq.s32.totalorder %s23, 1
      %p72 = por %p70, %p71
      %p74 = scmp.ne.s32.totalorder %s57, %s73
      %p75 = scmp.eq.s32.totalorder %s23, 0
      %p76 = por %p74, %p75
      %s78 = sadd.s32 %s77, 1
      %p81 = scmp.eq.s32.totalorder %s17, 1
      %p82 = scmp.ne.s32.totalorder %s77, %s79
      %p83 = scmp.eq.s32.totalorder %s17, 0
      %p84 = por %p82, %p83
      %p85 = scmp.ne.s32.totalorder %s77, %s79
      %p86 = scmp.eq.s32.totalorder %s22, 1
      %p87 = por %p85, %p86
      %p88 = scmp.ne.s32.totalorder %s79, %s80
      %p89 = scmp.eq.s32.totalorder %s22, 0
      %p90 = por %p88, %p89
      %p91 = scmp.ne.s32.totalorder %s79, %s80
      %p92 = scmp.eq.s32.totalorder %s23, 1
      %p93 = por %p91, %p92
      %p95 = scmp.ne.s32.totalorder %s80, %s94
      %p96 = scmp.eq.s32.totalorder %s23, 0
      %p97 = por %p95, %p96
      %s99 = sadd.s32 %s98, 1
      %p102 = scmp.eq.s32.totalorder %s17, 1
      %p103 = scmp.ne.s32.totalorder %s98, %s100
      %p104 = scmp.eq.s32.totalorder %s17, 0
      %p105 = por %p103, %p104
      %p106 = scmp.ne.s32.totalorder %s98, %s100
      %p107 = scmp.eq.s32.totalorder %s22, 1
      %p108 = por %p106, %p107
      %p109 = scmp.ne.s32.totalorder %s100, %s101
      %p110 = scmp.eq.s32.totalorder %s22, 0
      %p111 = por %p109, %p110
      %p112 = scmp.ne.s32.totalorder %s100, %s101
      %p113 = scmp.eq.s32.totalorder %s23, 1
      %p114 = por %p112, %p113
      %p116 = scmp.ne.s32.totalorder %s101, %s115
      %p117 = scmp.eq.s32.totalorder %s23, 0
      %p118 = por %p116, %p117
      %s120 = sadd.s32 %s119, 1
      %p123 = scmp.eq.s32.totalorder %s17, 1
      %p124 = scmp.ne.s32.totalorder %s119, %s121
      %p125 = scmp.eq.s32.totalorder %s17, 0
      %p126 = por %p124, %p125
      %p127 = scmp.ne.s32.totalorder %s119, %s121
      %p128 = scmp.eq.s32.totalorder %s22, 1
      %p129 = por %p127, %p128
      %p130 = scmp.ne.s32.totalorder %s121, %s122
      %p131 = scmp.eq.s32.totalorder %s22, 0
      %p132 = por %p130, %p131
      %p133 = scmp.ne.s32.totalorder %s121, %s122
      %p134 = scmp.eq.s32.totalorder %s23, 1
      %p135 = por %p133, %p134
      %p137 = scmp.ne.s32.totalorder %s122, %s136
      %p138 = scmp.eq.s32.totalorder %s23, 0
      %p139 = por %p137, %p138
      %s141 = sadd.s32 %s140, 1
      %p144 = scmp.eq.s32.totalorder %s17, 1
      %p145 = scmp.ne.s32.totalorder %s140, %s142
      %p146 = scmp.eq.s32.totalorder %s17, 0
      %p147 = por %p145, %p146
      %p148 = scmp.ne.s32.totalorder %s140, %s142
      %p149 = scmp.eq.s32.totalorder %s22, 1
      %p150 = por %p148, %p149
      %p151 = scmp.ne.s32.totalorder %s142, %s143
      %p152 = scmp.eq.s32.totalorder %s22, 0
      %p153 = por %p151, %p152
      %p154 = scmp.ne.s32.totalorder %s142, %s143
      %p155 = scmp.eq.s32.totalorder %s23, 1
      %p156 = por %p154, %p155
      %p158 = scmp.ne.s32.totalorder %s143, %s157
      %p159 = scmp.eq.s32.totalorder %s23, 0
      %p160 = por %p158, %p159
      %s162 = sadd.s32 %s161, 1
      %p165 = scmp.eq.s32.totalorder %s17, 1
      %p166 = scmp.ne.s32.totalorder %s161, %s163
      %p167 = scmp.eq.s32.totalorder %s17, 0
      %p168 = por %p166, %p167
      %p169 = scmp.ne.s32.totalorder %s161, %s163
      %p170 = scmp.eq.s32.totalorder %s22, 1
      %p171 = por %p169, %p170
      %p172 = scmp.ne.s32.totalorder %s163, %s164
      %p173 = scmp.eq.s32.totalorder %s22, 0
      %p174 = por %p172, %p173
      %p175 = scmp.ne.s32.totalorder %s163, %s164
      %p176 = scmp.eq.s32.totalorder %s23, 1
      %p177 = por %p175, %p176
      %p179 = scmp.ne.s32.totalorder %s164, %s178
      %p180 = scmp.eq.s32.totalorder %s23, 0
      %p181 = por %p179, %p180
      %s183 = sadd.s32 %s182, 1
      %p186 = scmp.eq.s32.totalorder %s17, 1
      %p187 = scmp.ne.s32.totalorder %s182, %s184
      %p188 = scmp.eq.s32.totalorder %s17, 0
      %p189 = por %p187, %p188
      %p190 = scmp.ne.s32.totalorder %s182, %s184
      %p191 = scmp.eq.s32.totalorder %s22, 1
      %p192 = por %p190, %p191
      %p193 = scmp.ne.s32.totalorder %s184, %s185
      %p194 = scmp.eq.s32.totalorder %s22, 0
      %p195 = por %p193, %p194
      %p196 = scmp.ne.s32.totalorder %s184, %s185
      %p197 = scmp.eq.s32.totalorder %s23, 1
      %p198 = por %p196, %p197
      %p200 = scmp.ne.s32.totalorder %s185, %s199
      %p201 = scmp.eq.s32.totalorder %s23, 0
      %p202 = por %p200, %p201
      %s203 = ssub.s32 %s17, %s24
      %p204 = scmp.eq.s32.totalorder %s203, 0
      %s206 = sadd.s32 %s205, 1
      %s207 = scalar_select %p204, %s205, %s206
      %p210 = pneg %p204
      %p211 = scmp.eq.s32.totalorder %s17, 1
      %p212 = por %p210, %p211
      %p213 = scmp.ne.s32.totalorder %s205, %s208
      %p214 = scmp.eq.s32.totalorder %s17, 0
      %p215 = por %p213, %p214
      %p216 = scmp.ne.s32.totalorder %s205, %s208
      %p217 = scmp.eq.s32.totalorder %s22, 1
      %p218 = por %p216, %p217
      %p219 = scmp.ne.s32.totalorder %s208, %s209
      %p220 = scmp.eq.s32.totalorder %s22, 0
      %p221 = por %p219, %p220
      %p222 = scmp.ne.s32.totalorder %s208, %s209
      %p223 = scmp.eq.s32.totalorder %s23, 1
      %p224 = por %p222, %p223
      %p226 = scmp.ne.s32.totalorder %s209, %s225
      %p227 = scmp.eq.s32.totalorder %s23, 0
      %p228 = por %p226, %p227
      %p229 = scmp.le.s32.totalorder 1, %s17
      %p230 = scmp.lt.s32.totalorder %s17, 3
      %p231 = pnand %p229, %p230
      %p232 = pneg %p231
      // Predicated region
      $region9: #{tpu_custom_call.1} parent=5 // pred_check
        _
      $region10: #{tpu_custom_call.1} parent=5 // pred_check_branch
        %234 = sbr.rel (%p231) target = $region12
      $region11: #{tpu_custom_call.1} parent=5 // pred_region
        %s235 = ssub.s32 %s17, 1
        // Predicated region
        $region13: #{tpu_custom_call.1} parent=11 // pred_check
          %p236 = pneg %p90
        $region14: #{tpu_custom_call.1} parent=11 // pred_check_branch
          %238 = sbr.rel (%p236) target = $region16
        $region15: #{tpu_custom_call.1} parent=11 // pred_region
          _
        $region16: #{tpu_custom_call.1} parent=11 // pred_fallthru
          _
        // Predicated region
        $region17: #{tpu_custom_call.1} parent=11 // pred_check
          %p239 = pneg %p111
        $region18: #{tpu_custom_call.1} parent=11 // pred_check_branch
          %241 = sbr.rel (%p239) target = $region20
        $region19: #{tpu_custom_call.1} parent=11 // pred_region
          _
        $region20: #{tpu_custom_call.1} parent=11 // pred_fallthru
          _
        // Predicated region
        $region21: #{tpu_custom_call.1} parent=11 // pred_check
          %p242 = pneg %p132
        $region22: #{tpu_custom_call.1} parent=11 // pred_check_branch
          %244 = sbr.rel (%p242) target = $region24
        $region23: #{tpu_custom_call.1} parent=11 // pred_region
          _
        $region24: #{tpu_custom_call.1} parent=11 // pred_fallthru
          _
        // Predicated region
        $region25: #{tpu_custom_call.1} parent=11 // pred_check
          %p245 = pneg %p153
        $region26: #{tpu_custom_call.1} parent=11 // pred_check_branch
          %247 = sbr.rel (%p245) target = $region28
        $region27: #{tpu_custom_call.1} parent=11 // pred_region
          _
        $region28: #{tpu_custom_call.1} parent=11 // pred_fallthru
          _
        // Predicated region
        $region29: #{tpu_custom_call.1} parent=11 // pred_check
          %p248 = pneg %p174
        $region30: #{tpu_custom_call.1} parent=11 // pred_check_branch
          %250 = sbr.rel (%p248) target = $region32
        $region31: #{tpu_custom_call.1} parent=11 // pred_region
          _
        $region32: #{tpu_custom_call.1} parent=11 // pred_fallthru
          _
        // Predicated region
        $region33: #{tpu_custom_call.1} parent=11 // pred_check
          %p251 = pneg %p195
        $region34: #{tpu_custom_call.1} parent=11 // pred_check_branch
          %253 = sbr.rel (%p251) target = $region36
        $region35: #{tpu_custom_call.1} parent=11 // pred_region
          _
        $region36: #{tpu_custom_call.1} parent=11 // pred_fallthru
          _
      $region12: #{tpu_custom_call.1} parent=5 // pred_fallthru
        _
      %p254 = scmp.lt.s32.totalorder %s17, 2
      // Predicated region
      $region37: #{tpu_custom_call.1} parent=5 // pred_check
        %p255 = pneg %p254
      $region38: #{tpu_custom_call.1} parent=5 // pred_check_branch
        %257 = sbr.rel (%p255) target = $region40
      $region39: #{tpu_custom_call.1} parent=5 // pred_region
        // Predicated region
        $region41: #{tpu_custom_call.1} parent=39 // pred_check
          %p258 = pneg %p37
        $region42: #{tpu_custom_call.1} parent=39 // pred_check_branch
          %260 = sbr.rel (%p258) target = $region44
        $region43: #{tpu_custom_call.1} parent=39 // pred_region
          %p261 = scmp.lt.s32.totalorder %s17, 1
          %s262 = scalar_select %p261, %s17, 1
          %s263 = smul.addr %s262, 4
          %s264 = smul.addr %s263, 4
          %s265 = scalar_lea.vmem %s0, %s264
        $region44: #{tpu_custom_call.1} parent=39 // pred_fallthru
          _
        // Predicated region
        $region45: #{tpu_custom_call.1} parent=39 // pred_check
          %p266 = pneg %p63
        $region46: #{tpu_custom_call.1} parent=39 // pred_check_branch
          %268 = sbr.rel (%p266) target = $region48
        $region47: #{tpu_custom_call.1} parent=39 // pred_region
          %p269 = scmp.lt.s32.totalorder %s17, 1
          %s270 = scalar_select %p269, %s17, 1
          %s271 = smul.addr %s270, 3
          %s272 = smul.addr %s271, 2
          %s273 = scalar_lea.vmem %s1, %s272
        $region48: #{tpu_custom_call.1} parent=39 // pred_fallthru
          _
      $region40: #{tpu_custom_call.1} parent=5 // pred_fallthru
        _
      %p274 = scmp.le.s32.totalorder 1, %s17
      %p275 = scmp.lt.s32.totalorder %s17, 3
      %p276 = pnand %p274, %p275
      %p277 = pneg %p276
      // Predicated region
      $region49: #{tpu_custom_call.1} parent=5 // pred_check
        _
      $region50: #{tpu_custom_call.1} parent=5 // pred_check_branch
        %279 = sbr.rel (%p276) target = $region52
      $region51: #{tpu_custom_call.1} parent=5 // pred_region
        %s280 = ssub.s32 %s17, 1
        %p281 = scmp.lt.s32.totalorder %s22, 1
        %s282 = scalar_select %p281, %s22, 1
        %s283 = smul.addr %s282, 4
        %s284 = smul.addr %s283, 4
        %s285 = scalar_lea.vmem %s0, %s284
        %p286 = pneg %p43
        %p287 = pneg %p40
        %p288 = scmp.lt.s32.totalorder %s22, 1
        %s289 = scalar_select %p288, %s22, 1
        %s290 = smul.addr %s289, 3
        %s291 = smul.addr %s290, 2
        %s292 = scalar_lea.vmem %s1, %s291
        %p293 = pneg %p69
        %p294 = pneg %p66
        %p295 = pneg %p90
        %p296 = pneg %p87
        %p297 = pneg %p111
        %p298 = pneg %p108
        %p299 = pneg %p132
        %p300 = pneg %p129
        %p301 = pneg %p153
        %p302 = pneg %p150
        %p303 = pneg %p174
        %p304 = pneg %p171
        %p305 = pneg %p195
        %p306 = pneg %p192
        %p307 = pneg %p221
        %p308 = pneg %p218
        %s309 = sand.u32 %s208, 1
        %s310 = scalar_lea.sflag [#allocation3], %s309
        %s311 = sand.u32 %s208, 1
        %s312 = smul.addr %s311, 24
        %s313 = scalar_lea.vmem [#allocation2], %s312
        %p314 = scmp.lt.s32.totalorder %s22, 1
        %s315 = scalar_select %p314, %s22, 1
        %s316 = smul.addr %s315, 4
        %s317 = smul.addr %s316, 4
        %s318 = scalar_lea.vmem %s0, %s317
        %p319 = scmp.lt.s32.totalorder %s22, 1
        %s320 = scalar_select %p319, %s22, 1
        %s321 = smul.addr %s320, 3
        %s322 = smul.addr %s321, 2
        %s323 = scalar_lea.vmem %s1, %s322
        %v324 = vld [vmem:[%s6] sm:$0xff]
        %v325 = vld [vmem:[%s318] sm:$0xff]
        %v326 = vld [vmem:[%s318 + $0x8] sm:$0xf]
        %v327 = vld [vmem:[%s2] sm:$0xff]
        %v328 = vld [vmem:[%s318] sm:$0xff]
        %v329 = vld [vmem:[%s318 + $0x8] sm:$0xff]
        %s330 = scalar_lea.vmem %s2, 8
        %v331 = vld [vmem:[%s330] sm:$0xff]
        %334 = vst [vmem:[#allocation1] ss:$2 sm:$0xff] %v328
        %s335 = scalar_lea.vmem [#allocation1], 16
        %336 = vst [vmem:[%s335] ss:$2 sm:$0xff] %v329
        %v337 = vld.sshfl [vmem:[#allocation1] sm:$0xff pattern:$0x75316420]
        %v338 = vld.sshfl [vmem:[#allocation1 + $0x8] sm:$0xff pattern:$0x75316420]
        %v339 = vld.sshfl [vmem:[#allocation1 + $0x10] sm:$0xff pattern:$0x75316420]
        %v340 = vld.sshfl [vmem:[#allocation1 + $0x18] sm:$0xff pattern:$0x75316420]
        %341 = vrot.lane.b32.xlu0 %v337, 127
        %v342 = vpop.permute.xlu0 %341
        %343 = vrot.lane.b32.xlu0 %v338, 127
        %v344 = vpop.permute.xlu0 %343
        %345 = vrot.lane.b32.xlu0 %v339, 127
        %v346 = vpop.permute.xlu0 %345
        %347 = vrot.lane.b32.xlu0 %v340, 127
        %v348 = vpop.permute.xlu0 %347
        %vm349 = vcmask 1039360
        %v350 = vsel %vm349, %v342, %v344
        %v351 = vsel %vm349, %v344, %v346
        %v352 = vsel %vm349, %v346, %v348
        %vm353 = vcmask 31744
        %v355 = vsel %vm353, %v331, 0
        %vm357 = vcmask 1043456
        %v358 = vsel %vm357, %v350, 0
        %v360 = vsel %vm357, %v351, 0
        %v362 = vsel %vm357, %v352, 0
        %364 = vmatpush.msra.mxu0 0.0
        %365 = vmatpush.msra.mxu0 0.0
        %366 = vmatpush.msra.mxu0 0.0
        %367 = vmatpush.msra.mxu0 0.0
        %368 = vmatpush.msra.mxu0 0.0
        %369 = vmatpush.msra.mxu0 0.0
        %370 = vmatpush.msra.mxu0 0.0
        %371 = vmatpush.msra.mxu0 0.0
        %372 = vmatpush.msra.mxu0 0.0
        %373 = vmatpush.msra.mxu0 0.0
        %374 = vmatpush.msra.mxu0 0.0
        %375 = vmatpush.msra.mxu0 0.0
        %376 = vmatpush.msra.mxu0 0.0
        %377 = vmatpush.msra.mxu0 0.0
        %378 = vmatpush.msra.mxu0 0.0
        %379 = vmatpush.msra.mxu0 %v358
        %380 = vmatmul.f32.gmra.mxu0 %v355
        %v381 = vpop.f32.mrf.mxu0
        %v382 = vadd.f32 0.0, %v381
        %383 = vdwg.mxu0
        %384 = vmatpush.msra.mxu0 0.0
        %385 = vmatpush.msra.mxu0 0.0
        %386 = vmatpush.msra.mxu0 0.0
        %387 = vmatpush.msra.mxu0 0.0
        %388 = vmatpush.msra.mxu0 0.0
        %389 = vmatpush.msra.mxu0 0.0
        %390 = vmatpush.msra.mxu0 0.0
        %391 = vmatpush.msra.mxu0 0.0
        %392 = vmatpush.msra.mxu0 0.0
        %393 = vmatpush.msra.mxu0 0.0
        %394 = vmatpush.msra.mxu0 0.0
        %395 = vmatpush.msra.mxu0 0.0
        %396 = vmatpush.msra.mxu0 0.0
        %397 = vmatpush.msra.mxu0 0.0
        %398 = vmatpush.msra.mxu0 0.0
        %399 = vmatpush.msra.mxu0 %v360
        %400 = vmatmul.f32.gmra.mxu0 %v355
        %v401 = vpop.f32.mrf.mxu0
        %v402 = vadd.f32 0.0, %v401
        %403 = vdwg.mxu0
        %404 = vmatpush.msra.mxu0 0.0
        %405 = vmatpush.msra.mxu0 0.0
        %406 = vmatpush.msra.mxu0 0.0
        %407 = vmatpush.msra.mxu0 0.0
        %408 = vmatpush.msra.mxu0 0.0
        %409 = vmatpush.msra.mxu0 0.0
        %410 = vmatpush.msra.mxu0 0.0
        %411 = vmatpush.msra.mxu0 0.0
        %412 = vmatpush.msra.mxu0 0.0
        %413 = vmatpush.msra.mxu0 0.0
        %414 = vmatpush.msra.mxu0 0.0
        %415 = vmatpush.msra.mxu0 0.0
        %416 = vmatpush.msra.mxu0 0.0
        %417 = vmatpush.msra.mxu0 0.0
        %418 = vmatpush.msra.mxu0 0.0
        %419 = vmatpush.msra.mxu0 %v362
        %420 = vmatmul.f32.gmra.mxu0 %v355
        %v421 = vpop.f32.mrf.mxu0
        %v422 = vadd.f32 0.0, %v421
        %423 = vdwg.mxu0
        %426 = vst [vmem:[#allocation1] ss:$2 sm:$0xff] %v325
        %s427 = scalar_lea.vmem [#allocation1], 16
        %428 = vst [vmem:[%s427] ss:$2 sm:$0xff] %v326
        %v429 = vld.sshfl [vmem:[#allocation1] sm:$0xff pattern:$0x75316420]
        %v430 = vld.sshfl [vmem:[#allocation1 + $0x8] sm:$0xff pattern:$0x75316420]
        %v431 = vld.sshfl [vmem:[#allocation1 + $0x10] sm:$0xff pattern:$0x75316420]
        %v433 = vsel %vm353, %v327, 0
        %v435 = vsel %vm357, %v429, 0
        %v437 = vsel %vm357, %v430, 0
        %v439 = vsel %vm357, %v431, 0
        %441 = vmatpush.msra.mxu0 0.0
        %442 = vmatpush.msra.mxu0 0.0
        %443 = vmatpush.msra.mxu0 0.0
        %444 = vmatpush.msra.mxu0 0.0
        %445 = vmatpush.msra.mxu0 0.0
        %446 = vmatpush.msra.mxu0 0.0
        %447 = vmatpush.msra.mxu0 0.0
        %448 = vmatpush.msra.mxu0 0.0
        %449 = vmatpush.msra.mxu0 0.0
        %450 = vmatpush.msra.mxu0 0.0
        %451 = vmatpush.msra.mxu0 0.0
        %452 = vmatpush.msra.mxu0 0.0
        %453 = vmatpush.msra.mxu0 0.0
        %454 = vmatpush.msra.mxu0 0.0
        %455 = vmatpush.msra.mxu0 0.0
        %456 = vmatpush.msra.mxu0 %v435
        %457 = vmatmul.f32.gmra.mxu0 %v433
        %v458 = vpop.f32.mrf.mxu0
        %v459 = vadd.f32 %v382, %v458
        %460 = vdwg.mxu0
        %461 = vmatpush.msra.mxu0 0.0
        %462 = vmatpush.msra.mxu0 0.0
        %463 = vmatpush.msra.mxu0 0.0
        %464 = vmatpush.msra.mxu0 0.0
        %465 = vmatpush.msra.mxu0 0.0
        %466 = vmatpush.msra.mxu0 0.0
        %467 = vmatpush.msra.mxu0 0.0
        %468 = vmatpush.msra.mxu0 0.0
        %469 = vmatpush.msra.mxu0 0.0
        %470 = vmatpush.msra.mxu0 0.0
        %471 = vmatpush.msra.mxu0 0.0
        %472 = vmatpush.msra.mxu0 0.0
        %473 = vmatpush.msra.mxu0 0.0
        %474 = vmatpush.msra.mxu0 0.0
        %475 = vmatpush.msra.mxu0 0.0
        %476 = vmatpush.msra.mxu0 %v437
        %477 = vmatmul.f32.gmra.mxu0 %v433
        %v478 = vpop.f32.mrf.mxu0
        %v479 = vadd.f32 %v402, %v478
        %480 = vdwg.mxu0
        %481 = vmatpush.msra.mxu0 0.0
        %482 = vmatpush.msra.mxu0 0.0
        %483 = vmatpush.msra.mxu0 0.0
        %484 = vmatpush.msra.mxu0 0.0
        %485 = vmatpush.msra.mxu0 0.0
        %486 = vmatpush.msra.mxu0 0.0
        %487 = vmatpush.msra.mxu0 0.0
        %488 = vmatpush.msra.mxu0 0.0
        %489 = vmatpush.msra.mxu0 0.0
        %490 = vmatpush.msra.mxu0 0.0
        %491 = vmatpush.msra.mxu0 0.0
        %492 = vmatpush.msra.mxu0 0.0
        %493 = vmatpush.msra.mxu0 0.0
        %494 = vmatpush.msra.mxu0 0.0
        %495 = vmatpush.msra.mxu0 0.0
        %496 = vmatpush.msra.mxu0 %v439
        %497 = vmatmul.f32.gmra.mxu0 %v433
        %v498 = vpop.f32.mrf.mxu0
        %v499 = vadd.f32 %v422, %v498
        %500 = vdwg.mxu0
        %v501 = vld [vmem:[%s318] sm:$0xff]
        %v502 = vld [vmem:[%s318 + $0x8] sm:$0xff]
        %s503 = scalar_lea.vmem %s2, 16
        %v504 = vld [vmem:[%s503] sm:$0xff]
        %507 = vst [vmem:[#allocation1] ss:$2 sm:$0xff] %v501
        %s508 = scalar_lea.vmem [#allocation1], 16
        %509 = vst [vmem:[%s508] ss:$2 sm:$0xff] %v502
        %v510 = vld.sshfl [vmem:[#allocation1] sm:$0xff pattern:$0x75316420]
        %v511 = vld.sshfl [vmem:[#allocation1 + $0x8] sm:$0xff pattern:$0x75316420]
        %v512 = vld.sshfl [vmem:[#allocation1 + $0x10] sm:$0xff pattern:$0x75316420]
        %v513 = vld.sshfl [vmem:[#allocation1 + $0x18] sm:$0xff pattern:$0x75316420]
        %514 = vrot.lane.b32.xlu0 %v510, 126
        %v515 = vpop.permute.xlu0 %514
        %516 = vrot.lane.b32.xlu0 %v511, 126
        %v517 = vpop.permute.xlu0 %516
        %518 = vrot.lane.b32.xlu0 %v512, 126
        %v519 = vpop.permute.xlu0 %518
        %520 = vrot.lane.b32.xlu0 %v513, 126
        %v521 = vpop.permute.xlu0 %520
        %vm522 = vcmask 1031168
        %v523 = vsel %vm522, %v515, %v517
        %v524 = vsel %vm522, %v517, %v519
        %v525 = vsel %vm522, %v519, %v521
        %v527 = vsel %vm353, %v504, 0
        %v529 = vsel %vm357, %v523, 0
        %v531 = vsel %vm357, %v524, 0
        %v533 = vsel %vm357, %v525, 0
        %535 = vmatpush.msra.mxu0 0.0
        %536 = vmatpush.msra.mxu0 0.0
        %537 = vmatpush.msra.mxu0 0.0
        %538 = vmatpush.msra.mxu0 0.0
        %539 = vmatpush.msra.mxu0 0.0
        %540 = vmatpush.msra.mxu0 0.0
        %541 = vmatpush.msra.mxu0 0.0
        %542 = vmatpush.msra.mxu0 0.0
        %543 = vmatpush.msra.mxu0 0.0
        %544 = vmatpush.msra.mxu0 0.0
        %545 = vmatpush.msra.mxu0 0.0
        %546 = vmatpush.msra.mxu0 0.0
        %547 = vmatpush.msra.mxu0 0.0
        %548 = vmatpush.msra.mxu0 0.0
        %549 = vmatpush.msra.mxu0 0.0
        %550 = vmatpush.msra.mxu0 %v529
        %551 = vmatmul.f32.gmra.mxu0 %v527
        %v552 = vpop.f32.mrf.mxu0
        %v553 = vadd.f32 0.0, %v552
        %554 = vdwg.mxu0
        %555 = vmatpush.msra.mxu0 0.0
        %556 = vmatpush.msra.mxu0 0.0
        %557 = vmatpush.msra.mxu0 0.0
        %558 = vmatpush.msra.mxu0 0.0
        %559 = vmatpush.msra.mxu0 0.0
        %560 = vmatpush.msra.mxu0 0.0
        %561 = vmatpush.msra.mxu0 0.0
        %562 = vmatpush.msra.mxu0 0.0
        %563 = vmatpush.msra.mxu0 0.0
        %564 = vmatpush.msra.mxu0 0.0
        %565 = vmatpush.msra.mxu0 0.0
        %566 = vmatpush.msra.mxu0 0.0
        %567 = vmatpush.msra.mxu0 0.0
        %568 = vmatpush.msra.mxu0 0.0
        %569 = vmatpush.msra.mxu0 0.0
        %570 = vmatpush.msra.mxu0 %v531
        %571 = vmatmul.f32.gmra.mxu0 %v527
        %v572 = vpop.f32.mrf.mxu0
        %v573 = vadd.f32 0.0, %v572
        %574 = vdwg.mxu0
        %575 = vmatpush.msra.mxu0 0.0
        %576 = vmatpush.msra.mxu0 0.0
        %577 = vmatpush.msra.mxu0 0.0
        %578 = vmatpush.msra.mxu0 0.0
        %579 = vmatpush.msra.mxu0 0.0
        %580 = vmatpush.msra.mxu0 0.0
        %581 = vmatpush.msra.mxu0 0.0
        %582 = vmatpush.msra.mxu0 0.0
        %583 = vmatpush.msra.mxu0 0.0
        %584 = vmatpush.msra.mxu0 0.0
        %585 = vmatpush.msra.mxu0 0.0
        %586 = vmatpush.msra.mxu0 0.0
        %587 = vmatpush.msra.mxu0 0.0
        %588 = vmatpush.msra.mxu0 0.0
        %589 = vmatpush.msra.mxu0 0.0
        %590 = vmatpush.msra.mxu0 %v533
        %591 = vmatmul.f32.gmra.mxu0 %v527
        %v592 = vpop.f32.mrf.mxu0
        %v593 = vadd.f32 0.0, %v592
        %594 = vdwg.mxu0
        %v595 = vadd.f32 %v459, %v553
        %v596 = vadd.f32 %v479, %v573
        %v597 = vadd.f32 %v499, %v593
        %v598 = vld [vmem:[%s318] sm:$0xff]
        %v599 = vld [vmem:[%s318 + $0x8] sm:$0xff]
        %s600 = scalar_lea.vmem %s2, 24
        %v601 = vld [vmem:[%s600] sm:$0xff]
        %604 = vst [vmem:[#allocation1] ss:$2 sm:$0xff] %v598
        %s605 = scalar_lea.vmem [#allocation1], 16
        %606 = vst [vmem:[%s605] ss:$2 sm:$0xff] %v599
        %v607 = vld.sshfl [vmem:[#allocation1] sm:$0xff pattern:$0x75316420]
        %v608 = vld.sshfl [vmem:[#allocation1 + $0x8] sm:$0xff pattern:$0x75316420]
        %v609 = vld.sshfl [vmem:[#allocation1 + $0x10] sm:$0xff pattern:$0x75316420]
        %v610 = vld.sshfl [vmem:[#allocation1 + $0x18] sm:$0xff pattern:$0x75316420]
        %611 = vrot.lane.b32.xlu0 %v607, 110
        %v612 = vpop.permute.xlu0 %611
        %613 = vrot.lane.b32.xlu0 %v608, 110
        %v614 = vpop.permute.xlu0 %613
        %615 = vrot.lane.b32.xlu0 %v609, 110
        %v616 = vpop.permute.xlu0 %615
        %617 = vrot.lane.b32.xlu0 %v610, 110
        %v618 = vpop.permute.xlu0 %617
        %vm619 = vcmask 900096
        %v620 = vsel %vm619, %v612, %v614
        %v621 = vsel %vm619, %v614, %v616
        %v622 = vsel %vm619, %v616, %v618
        %v624 = vsel %vm353, %v601, 0
        %v626 = vsel %vm357, %v620, 0
        %v628 = vsel %vm357, %v621, 0
        %v630 = vsel %vm357, %v622, 0
        %632 = vmatpush.msra.mxu0 0.0
        %633 = vmatpush.msra.mxu0 0.0
        %634 = vmatpush.msra.mxu0 0.0
        %635 = vmatpush.msra.mxu0 0.0
        %636 = vmatpush.msra.mxu0 0.0
        %637 = vmatpush.msra.mxu0 0.0
        %638 = vmatpush.msra.mxu0 0.0
        %639 = vmatpush.msra.mxu0 0.0
        %640 = vmatpush.msra.mxu0 0.0
        %641 = vmatpush.msra.mxu0 0.0
        %642 = vmatpush.msra.mxu0 0.0
        %643 = vmatpush.msra.mxu0 0.0
        %644 = vmatpush.msra.mxu0 0.0
        %645 = vmatpush.msra.mxu0 0.0
        %646 = vmatpush.msra.mxu0 0.0
        %647 = vmatpush.msra.mxu0 %v626
        %648 = vmatmul.f32.gmra.mxu0 %v624
        %v649 = vpop.f32.mrf.mxu0
        %v650 = vadd.f32 0.0, %v649
        %651 = vdwg.mxu0
        %652 = vmatpush.msra.mxu0 0.0
        %653 = vmatpush.msra.mxu0 0.0
        %654 = vmatpush.msra.mxu0 0.0
        %655 = vmatpush.msra.mxu0 0.0
        %656 = vmatpush.msra.mxu0 0.0
        %657 = vmatpush.msra.mxu0 0.0
        %658 = vmatpush.msra.mxu0 0.0
        %659 = vmatpush.msra.mxu0 0.0
        %660 = vmatpush.msra.mxu0 0.0
        %661 = vmatpush.msra.mxu0 0.0
        %662 = vmatpush.msra.mxu0 0.0
        %663 = vmatpush.msra.mxu0 0.0
        %664 = vmatpush.msra.mxu0 0.0
        %665 = vmatpush.msra.mxu0 0.0
        %666 = vmatpush.msra.mxu0 0.0
        %667 = vmatpush.msra.mxu0 %v628
        %668 = vmatmul.f32.gmra.mxu0 %v624
        %v669 = vpop.f32.mrf.mxu0
        %v670 = vadd.f32 0.0, %v669
        %671 = vdwg.mxu0
        %672 = vmatpush.msra.mxu0 0.0
        %673 = vmatpush.msra.mxu0 0.0
        %674 = vmatpush.msra.mxu0 0.0
        %675 = vmatpush.msra.mxu0 0.0
        %676 = vmatpush.msra.mxu0 0.0
        %677 = vmatpush.msra.mxu0 0.0
        %678 = vmatpush.msra.mxu0 0.0
        %679 = vmatpush.msra.mxu0 0.0
        %680 = vmatpush.msra.mxu0 0.0
        %681 = vmatpush.msra.mxu0 0.0
        %682 = vmatpush.msra.mxu0 0.0
        %683 = vmatpush.msra.mxu0 0.0
        %684 = vmatpush.msra.mxu0 0.0
        %685 = vmatpush.msra.mxu0 0.0
        %686 = vmatpush.msra.mxu0 0.0
        %687 = vmatpush.msra.mxu0 %v630
        %688 = vmatmul.f32.gmra.mxu0 %v624
        %v689 = vpop.f32.mrf.mxu0
        %v690 = vadd.f32 0.0, %v689
        %691 = vdwg.mxu0
        %v692 = vadd.f32 %v595, %v650
        %v693 = vadd.f32 %v596, %v670
        %v694 = vadd.f32 %v597, %v690
        %v695 = vld [vmem:[%s318] sm:$0xff]
        %v696 = vld [vmem:[%s318 + $0x8] sm:$0xff]
        %s697 = scalar_lea.vmem %s2, 32
        %v698 = vld [vmem:[%s697] sm:$0xff]
        %701 = vst [vmem:[#allocation1] ss:$2 sm:$0xff] %v695
        %s702 = scalar_lea.vmem [#allocation1], 16
        %703 = vst [vmem:[%s702] ss:$2 sm:$0xff] %v696
        %v704 = vld.sshfl [vmem:[#allocation1] sm:$0xff pattern:$0x75316420]
        %v705 = vld.sshfl [vmem:[#allocation1 + $0x8] sm:$0xff pattern:$0x75316420]
        %v706 = vld.sshfl [vmem:[#allocation1 + $0x10] sm:$0xff pattern:$0x75316420]
        %v707 = vld.sshfl [vmem:[#allocation1 + $0x18] sm:$0xff pattern:$0x75316420]
        %708 = vrot.lane.b32.xlu0 %v704, 109
        %v709 = vpop.permute.xlu0 %708
        %710 = vrot.lane.b32.xlu0 %v705, 109
        %v711 = vpop.permute.xlu0 %710
        %712 = vrot.lane.b32.xlu0 %v706, 109
        %v713 = vpop.permute.xlu0 %712
        %714 = vrot.lane.b32.xlu0 %v707, 109
        %v715 = vpop.permute.xlu0 %714
        %vm716 = vcmask 891904
        %v717 = vsel %vm716, %v709, %v711
        %v718 = vsel %vm716, %v711, %v713
        %v719 = vsel %vm716, %v713, %v715
        %v721 = vsel %vm353, %v698, 0
        %v723 = vsel %vm357, %v717, 0
        %v725 = vsel %vm357, %v718, 0
        %v727 = vsel %vm357, %v719, 0
        %729 = vmatpush.msra.mxu0 0.0
        %730 = vmatpush.msra.mxu0 0.0
        %731 = vmatpush.msra.mxu0 0.0
        %732 = vmatpush.msra.mxu0 0.0
        %733 = vmatpush.msra.mxu0 0.0
        %734 = vmatpush.msra.mxu0 0.0
        %735 = vmatpush.msra.mxu0 0.0
        %736 = vmatpush.msra.mxu0 0.0
        %737 = vmatpush.msra.mxu0 0.0
        %738 = vmatpush.msra.mxu0 0.0
        %739 = vmatpush.msra.mxu0 0.0
        %740 = vmatpush.msra.mxu0 0.0
        %741 = vmatpush.msra.mxu0 0.0
        %742 = vmatpush.msra.mxu0 0.0
        %743 = vmatpush.msra.mxu0 0.0
        %744 = vmatpush.msra.mxu0 %v723
        %745 = vmatmul.f32.gmra.mxu0 %v721
        %v746 = vpop.f32.mrf.mxu0
        %v747 = vadd.f32 0.0, %v746
        %748 = vdwg.mxu0
        %749 = vmatpush.msra.mxu0 0.0
        %750 = vmatpush.msra.mxu0 0.0
        %751 = vmatpush.msra.mxu0 0.0
        %752 = vmatpush.msra.mxu0 0.0
        %753 = vmatpush.msra.mxu0 0.0
        %754 = vmatpush.msra.mxu0 0.0
        %755 = vmatpush.msra.mxu0 0.0
        %756 = vmatpush.msra.mxu0 0.0
        %757 = vmatpush.msra.mxu0 0.0
        %758 = vmatpush.msra.mxu0 0.0
        %759 = vmatpush.msra.mxu0 0.0
        %760 = vmatpush.msra.mxu0 0.0
        %761 = vmatpush.msra.mxu0 0.0
        %762 = vmatpush.msra.mxu0 0.0
        %763 = vmatpush.msra.mxu0 0.0
        %764 = vmatpush.msra.mxu0 %v725
        %765 = vmatmul.f32.gmra.mxu0 %v721
        %v766 = vpop.f32.mrf.mxu0
        %v767 = vadd.f32 0.0, %v766
        %768 = vdwg.mxu0
        %769 = vmatpush.msra.mxu0 0.0
        %770 = vmatpush.msra.mxu0 0.0
        %771 = vmatpush.msra.mxu0 0.0
        %772 = vmatpush.msra.mxu0 0.0
        %773 = vmatpush.msra.mxu0 0.0
        %774 = vmatpush.msra.mxu0 0.0
        %775 = vmatpush.msra.mxu0 0.0
        %776 = vmatpush.msra.mxu0 0.0
        %777 = vmatpush.msra.mxu0 0.0
        %778 = vmatpush.msra.mxu0 0.0
        %779 = vmatpush.msra.mxu0 0.0
        %780 = vmatpush.msra.mxu0 0.0
        %781 = vmatpush.msra.mxu0 0.0
        %782 = vmatpush.msra.mxu0 0.0
        %783 = vmatpush.msra.mxu0 0.0
        %784 = vmatpush.msra.mxu0 %v727
        %785 = vmatmul.f32.gmra.mxu0 %v721
        %v786 = vpop.f32.mrf.mxu0
        %v787 = vadd.f32 0.0, %v786
        %788 = vdwg.mxu0
        %v789 = vadd.f32 %v692, %v747
        %v790 = vadd.f32 %v693, %v767
        %v791 = vadd.f32 %v694, %v787
        %v792 = vld [vmem:[%s3] sm:$0xff]
        %v793 = vld [vmem:[%s318] sm:$0xff]
        %v794 = vld [vmem:[%s318 + $0x8] sm:$0xff]
        %s795 = scalar_lea.vmem %s2, 40
        %v796 = vld [vmem:[%s795] sm:$0xff]
        %799 = vst [vmem:[#allocation1] ss:$2 sm:$0xff] %v793
        %s800 = scalar_lea.vmem [#allocation1], 16
        %801 = vst [vmem:[%s800] ss:$2 sm:$0xff] %v794
        %v802 = vld.sshfl [vmem:[#allocation1] sm:$0xff pattern:$0x75316420]
        %v803 = vld.sshfl [vmem:[#allocation1 + $0x8] sm:$0xff pattern:$0x75316420]
        %v804 = vld.sshfl [vmem:[#allocation1 + $0x10] sm:$0xff pattern:$0x75316420]
        %v805 = vld.sshfl [vmem:[#allocation1 + $0x18] sm:$0xff pattern:$0x75316420]
        %806 = vrot.lane.b32.xlu0 %v802, 108
        %v807 = vpop.permute.xlu0 %806
        %808 = vrot.lane.b32.xlu0 %v803, 108
        %v809 = vpop.permute.xlu0 %808
        %810 = vrot.lane.b32.xlu0 %v804, 108
        %v811 = vpop.permute.xlu0 %810
        %812 = vrot.lane.b32.xlu0 %v805, 108
        %v813 = vpop.permute.xlu0 %812
        %vm814 = vcmask 883712
        %v815 = vsel %vm814, %v807, %v809
        %v816 = vsel %vm814, %v809, %v811
        %v817 = vsel %vm814, %v811, %v813
        %v819 = vsel %vm353, %v796, 0
        %v821 = vsel %vm357, %v815, 0
        %v823 = vsel %vm357, %v816, 0
        %v825 = vsel %vm357, %v817, 0
        %827 = vmatpush.msra.mxu0 0.0
        %828 = vmatpush.msra.mxu0 0.0
        %829 = vmatpush.msra.mxu0 0.0
        %830 = vmatpush.msra.mxu0 0.0
        %831 = vmatpush.msra.mxu0 0.0
        %832 = vmatpush.msra.mxu0 0.0
        %833 = vmatpush.msra.mxu0 0.0
        %834 = vmatpush.msra.mxu0 0.0
        %835 = vmatpush.msra.mxu0 0.0
        %836 = vmatpush.msra.mxu0 0.0
        %837 = vmatpush.msra.mxu0 0.0
        %838 = vmatpush.msra.mxu0 0.0
        %839 = vmatpush.msra.mxu0 0.0
        %840 = vmatpush.msra.mxu0 0.0
        %841 = vmatpush.msra.mxu0 0.0
        %842 = vmatpush.msra.mxu0 %v821
        %843 = vmatmul.f32.gmra.mxu0 %v819
        %v844 = vpop.f32.mrf.mxu0
        %v845 = vadd.f32 0.0, %v844
        %846 = vdwg.mxu0
        %847 = vmatpush.msra.mxu0 0.0
        %848 = vmatpush.msra.mxu0 0.0
        %849 = vmatpush.msra.mxu0 0.0
        %850 = vmatpush.msra.mxu0 0.0
        %851 = vmatpush.msra.mxu0 0.0
        %852 = vmatpush.msra.mxu0 0.0
        %853 = vmatpush.msra.mxu0 0.0
        %854 = vmatpush.msra.mxu0 0.0
        %855 = vmatpush.msra.mxu0 0.0
        %856 = vmatpush.msra.mxu0 0.0
        %857 = vmatpush.msra.mxu0 0.0
        %858 = vmatpush.msra.mxu0 0.0
        %859 = vmatpush.msra.mxu0 0.0
        %860 = vmatpush.msra.mxu0 0.0
        %861 = vmatpush.msra.mxu0 0.0
        %862 = vmatpush.msra.mxu0 %v823
        %863 = vmatmul.f32.gmra.mxu0 %v819
        %v864 = vpop.f32.mrf.mxu0
        %v865 = vadd.f32 0.0, %v864
        %866 = vdwg.mxu0
        %867 = vmatpush.msra.mxu0 0.0
        %868 = vmatpush.msra.mxu0 0.0
        %869 = vmatpush.msra.mxu0 0.0
        %870 = vmatpush.msra.mxu0 0.0
        %871 = vmatpush.msra.mxu0 0.0
        %872 = vmatpush.msra.mxu0 0.0
        %873 = vmatpush.msra.mxu0 0.0
        %874 = vmatpush.msra.mxu0 0.0
        %875 = vmatpush.msra.mxu0 0.0
        %876 = vmatpush.msra.mxu0 0.0
        %877 = vmatpush.msra.mxu0 0.0
        %878 = vmatpush.msra.mxu0 0.0
        %879 = vmatpush.msra.mxu0 0.0
        %880 = vmatpush.msra.mxu0 0.0
        %881 = vmatpush.msra.mxu0 0.0
        %882 = vmatpush.msra.mxu0 %v825
        %883 = vmatmul.f32.gmra.mxu0 %v819
        %v884 = vpop.f32.mrf.mxu0
        %v885 = vadd.f32 0.0, %v884
        %886 = vdwg.mxu0
        %v887 = vadd.f32 %v789, %v845
        %v888 = vadd.f32 %v790, %v865
        %v889 = vadd.f32 %v791, %v885
        %v890 = vld [vmem:[%s318] sm:$0xff]
        %v891 = vld [vmem:[%s318 + $0x8] sm:$0xff]
        %s892 = scalar_lea.vmem %s2, 48
        %v893 = vld [vmem:[%s892] sm:$0xff]
        %896 = vst [vmem:[#allocation1] ss:$2 sm:$0xff] %v890
        %s897 = scalar_lea.vmem [#allocation1], 16
        %898 = vst [vmem:[%s897] ss:$2 sm:$0xff] %v891
        %v899 = vld.sshfl [vmem:[#allocation1] sm:$0xff pattern:$0x75316420]
        %v900 = vld.sshfl [vmem:[#allocation1 + $0x8] sm:$0xff pattern:$0x75316420]
        %v901 = vld.sshfl [vmem:[#allocation1 + $0x10] sm:$0xff pattern:$0x75316420]
        %v902 = vld.sshfl [vmem:[#allocation1 + $0x18] sm:$0xff pattern:$0x75316420]
        %903 = vrot.lane.b32.xlu0 %v899, 92
        %v904 = vpop.permute.xlu0 %903
        %905 = vrot.lane.b32.xlu0 %v900, 92
        %v906 = vpop.permute.xlu0 %905
        %907 = vrot.lane.b32.xlu0 %v901, 92
        %v908 = vpop.permute.xlu0 %907
        %909 = vrot.lane.b32.xlu0 %v902, 92
        %v910 = vpop.permute.xlu0 %909
        %vm911 = vcmask 752640
        %v912 = vsel %vm911, %v904, %v906
        %v913 = vsel %vm911, %v906, %v908
        %v914 = vsel %vm911, %v908, %v910
        %v916 = vsel %vm353, %v893, 0
        %v918 = vsel %vm357, %v912, 0
        %v920 = vsel %vm357, %v913, 0
        %v922 = vsel %vm357, %v914, 0
        %924 = vmatpush.msra.mxu0 0.0
        %925 = vmatpush.msra.mxu0 0.0
        %926 = vmatpush.msra.mxu0 0.0
        %927 = vmatpush.msra.mxu0 0.0
        %928 = vmatpush.msra.mxu0 0.0
        %929 = vmatpush.msra.mxu0 0.0
        %930 = vmatpush.msra.mxu0 0.0
        %931 = vmatpush.msra.mxu0 0.0
        %932 = vmatpush.msra.mxu0 0.0
        %933 = vmatpush.msra.mxu0 0.0
        %934 = vmatpush.msra.mxu0 0.0
        %935 = vmatpush.msra.mxu0 0.0
        %936 = vmatpush.msra.mxu0 0.0
        %937 = vmatpush.msra.mxu0 0.0
        %938 = vmatpush.msra.mxu0 0.0
        %939 = vmatpush.msra.mxu0 %v918
        %940 = vmatmul.f32.gmra.mxu0 %v916
        %v941 = vpop.f32.mrf.mxu0
        %v942 = vadd.f32 0.0, %v941
        %943 = vdwg.mxu0
        %944 = vmatpush.msra.mxu0 0.0
        %945 = vmatpush.msra.mxu0 0.0
        %946 = vmatpush.msra.mxu0 0.0
        %947 = vmatpush.msra.mxu0 0.0
        %948 = vmatpush.msra.mxu0 0.0
        %949 = vmatpush.msra.mxu0 0.0
        %950 = vmatpush.msra.mxu0 0.0
        %951 = vmatpush.msra.mxu0 0.0
        %952 = vmatpush.msra.mxu0 0.0
        %953 = vmatpush.msra.mxu0 0.0
        %954 = vmatpush.msra.mxu0 0.0
        %955 = vmatpush.msra.mxu0 0.0
        %956 = vmatpush.msra.mxu0 0.0
        %957 = vmatpush.msra.mxu0 0.0
        %958 = vmatpush.msra.mxu0 0.0
        %959 = vmatpush.msra.mxu0 %v920
        %960 = vmatmul.f32.gmra.mxu0 %v916
        %v961 = vpop.f32.mrf.mxu0
        %v962 = vadd.f32 0.0, %v961
        %963 = vdwg.mxu0
        %964 = vmatpush.msra.mxu0 0.0
        %965 = vmatpush.msra.mxu0 0.0
        %966 = vmatpush.msra.mxu0 0.0
        %967 = vmatpush.msra.mxu0 0.0
        %968 = vmatpush.msra.mxu0 0.0
        %969 = vmatpush.msra.mxu0 0.0
        %970 = vmatpush.msra.mxu0 0.0
        %971 = vmatpush.msra.mxu0 0.0
        %972 = vmatpush.msra.mxu0 0.0
        %973 = vmatpush.msra.mxu0 0.0
        %974 = vmatpush.msra.mxu0 0.0
        %975 = vmatpush.msra.mxu0 0.0
        %976 = vmatpush.msra.mxu0 0.0
        %977 = vmatpush.msra.mxu0 0.0
        %978 = vmatpush.msra.mxu0 0.0
        %979 = vmatpush.msra.mxu0 %v922
        %980 = vmatmul.f32.gmra.mxu0 %v916
        %v981 = vpop.f32.mrf.mxu0
        %v982 = vadd.f32 0.0, %v981
        %983 = vdwg.mxu0
        %v984 = vadd.f32 %v887, %v942
        %v985 = vadd.f32 %v888, %v962
        %v986 = vadd.f32 %v889, %v982
        %v987 = vld [vmem:[%s318] sm:$0xff]
        %v988 = vld [vmem:[%s318 + $0x8] sm:$0xff]
        %s989 = scalar_lea.vmem %s2, 56
        %v990 = vld [vmem:[%s989] sm:$0xff]
        %993 = vst [vmem:[#allocation1] ss:$2 sm:$0xff] %v987
        %s994 = scalar_lea.vmem [#allocation1], 16
        %995 = vst [vmem:[%s994] ss:$2 sm:$0xff] %v988
        %v996 = vld.sshfl [vmem:[#allocation1] sm:$0xff pattern:$0x75316420]
        %v997 = vld.sshfl [vmem:[#allocation1 + $0x8] sm:$0xff pattern:$0x75316420]
        %v998 = vld.sshfl [vmem:[#allocation1 + $0x10] sm:$0xff pattern:$0x75316420]
        %v999 = vld.sshfl [vmem:[#allocation1 + $0x18] sm:$0xff pattern:$0x75316420]
        %1000 = vrot.lane.b32.xlu0 %v996, 91
        %v1001 = vpop.permute.xlu0 %1000
        %1002 = vrot.lane.b32.xlu0 %v997, 91
        %v1003 = vpop.permute.xlu0 %1002
        %1004 = vrot.lane.b32.xlu0 %v998, 91
        %v1005 = vpop.permute.xlu0 %1004
        %1006 = vrot.lane.b32.xlu0 %v999, 91
        %v1007 = vpop.permute.xlu0 %1006
        %vm1008 = vcmask 744448
        %v1009 = vsel %vm1008, %v1001, %v1003
        %v1010 = vsel %vm1008, %v1003, %v1005
        %v1011 = vsel %vm1008, %v1005, %v1007
        %v1013 = vsel %vm353, %v990, 0
        %v1015 = vsel %vm357, %v1009, 0
        %v1017 = vsel %vm357, %v1010, 0
        %v1019 = vsel %vm357, %v1011, 0
        %1021 = vmatpush.msra.mxu0 0.0
        %1022 = vmatpush.msra.mxu0 0.0
        %1023 = vmatpush.msra.mxu0 0.0
        %1024 = vmatpush.msra.mxu0 0.0
        %1025 = vmatpush.msra.mxu0 0.0
        %1026 = vmatpush.msra.mxu0 0.0
        %1027 = vmatpush.msra.mxu0 0.0
        %1028 = vmatpush.msra.mxu0 0.0
        %1029 = vmatpush.msra.mxu0 0.0
        %1030 = vmatpush.msra.mxu0 0.0
        %1031 = vmatpush.msra.mxu0 0.0
        %1032 = vmatpush.msra.mxu0 0.0
        %1033 = vmatpush.msra.mxu0 0.0
        %1034 = vmatpush.msra.mxu0 0.0
        %1035 = vmatpush.msra.mxu0 0.0
        %1036 = vmatpush.msra.mxu0 %v1015
        %1037 = vmatmul.f32.gmra.mxu0 %v1013
        %v1038 = vpop.f32.mrf.mxu0
        %v1039 = vadd.f32 0.0, %v1038
        %1040 = vdwg.mxu0
        %1041 = vmatpush.msra.mxu0 0.0
        %1042 = vmatpush.msra.mxu0 0.0
        %1043 = vmatpush.msra.mxu0 0.0
        %1044 = vmatpush.msra.mxu0 0.0
        %1045 = vmatpush.msra.mxu0 0.0
        %1046 = vmatpush.msra.mxu0 0.0
        %1047 = vmatpush.msra.mxu0 0.0
        %1048 = vmatpush.msra.mxu0 0.0
        %1049 = vmatpush.msra.mxu0 0.0
        %1050 = vmatpush.msra.mxu0 0.0
        %1051 = vmatpush.msra.mxu0 0.0
        %1052 = vmatpush.msra.mxu0 0.0
        %1053 = vmatpush.msra.mxu0 0.0
        %1054 = vmatpush.msra.mxu0 0.0
        %1055 = vmatpush.msra.mxu0 0.0
        %1056 = vmatpush.msra.mxu0 %v1017
        %1057 = vmatmul.f32.gmra.mxu0 %v1013
        %v1058 = vpop.f32.mrf.mxu0
        %v1059 = vadd.f32 0.0, %v1058
        %1060 = vdwg.mxu0
        %1061 = vmatpush.msra.mxu0 0.0
        %1062 = vmatpush.msra.mxu0 0.0
        %1063 = vmatpush.msra.mxu0 0.0
        %1064 = vmatpush.msra.mxu0 0.0
        %1065 = vmatpush.msra.mxu0 0.0
        %1066 = vmatpush.msra.mxu0 0.0
        %1067 = vmatpush.msra.mxu0 0.0
        %1068 = vmatpush.msra.mxu0 0.0
        %1069 = vmatpush.msra.mxu0 0.0
        %1070 = vmatpush.msra.mxu0 0.0
        %1071 = vmatpush.msra.mxu0 0.0
        %1072 = vmatpush.msra.mxu0 0.0
        %1073 = vmatpush.msra.mxu0 0.0
        %1074 = vmatpush.msra.mxu0 0.0
        %1075 = vmatpush.msra.mxu0 0.0
        %1076 = vmatpush.msra.mxu0 %v1019
        %1077 = vmatmul.f32.gmra.mxu0 %v1013
        %v1078 = vpop.f32.mrf.mxu0
        %v1079 = vadd.f32 0.0, %v1078
        %1080 = vdwg.mxu0
        %v1081 = vadd.f32 %v984, %v1039
        %v1082 = vadd.f32 %v985, %v1059
        %v1083 = vadd.f32 %v986, %v1079
        %v1084 = vld [vmem:[%s318] sm:$0xff]
        %v1085 = vld [vmem:[%s318 + $0x8] sm:$0xff]
        %s1086 = scalar_lea.vmem %s2, 64
        %v1087 = vld [vmem:[%s1086] sm:$0xff]
        %1090 = vst [vmem:[#allocation1] ss:$2 sm:$0xff] %v1084
        %s1091 = scalar_lea.vmem [#allocation1], 16
        %1092 = vst [vmem:[%s1091] ss:$2 sm:$0xff] %v1085
        %v1093 = vld.sshfl [vmem:[#allocation1] sm:$0xff pattern:$0x75316420]
        %v1094 = vld.sshfl [vmem:[#allocation1 + $0x8] sm:$0xff pattern:$0x75316420]
        %v1095 = vld.sshfl [vmem:[#allocation1 + $0x10] sm:$0xff pattern:$0x75316420]
        %v1096 = vld.sshfl [vmem:[#allocation1 + $0x18] sm:$0xff pattern:$0x75316420]
        %1097 = vrot.lane.b32.xlu0 %v1093, 90
        %v1098 = vpop.permute.xlu0 %1097
        %1099 = vrot.lane.b32.xlu0 %v1094, 90
        %v1100 = vpop.permute.xlu0 %1099
        %1101 = vrot.lane.b32.xlu0 %v1095, 90
        %v1102 = vpop.permute.xlu0 %1101
        %1103 = vrot.lane.b32.xlu0 %v1096, 90
        %v1104 = vpop.permute.xlu0 %1103
        %vm1105 = vcmask 736256
        %v1106 = vsel %vm1105, %v1098, %v1100
        %v1107 = vsel %vm1105, %v1100, %v1102
        %v1108 = vsel %vm1105, %v1102, %v1104
        %v1110 = vsel %vm353, %v1087, 0
        %v1112 = vsel %vm357, %v1106, 0
        %v1114 = vsel %vm357, %v1107, 0
        %v1116 = vsel %vm357, %v1108, 0
        %1118 = vmatpush.msra.mxu0 0.0
        %1119 = vmatpush.msra.mxu0 0.0
        %1120 = vmatpush.msra.mxu0 0.0
        %1121 = vmatpush.msra.mxu0 0.0
        %1122 = vmatpush.msra.mxu0 0.0
        %1123 = vmatpush.msra.mxu0 0.0
        %1124 = vmatpush.msra.mxu0 0.0
        %1125 = vmatpush.msra.mxu0 0.0
        %1126 = vmatpush.msra.mxu0 0.0
        %1127 = vmatpush.msra.mxu0 0.0
        %1128 = vmatpush.msra.mxu0 0.0
        %1129 = vmatpush.msra.mxu0 0.0
        %1130 = vmatpush.msra.mxu0 0.0
        %1131 = vmatpush.msra.mxu0 0.0
        %1132 = vmatpush.msra.mxu0 0.0
        %1133 = vmatpush.msra.mxu0 %v1112
        %1134 = vmatmul.f32.gmra.mxu0 %v1110
        %v1135 = vpop.f32.mrf.mxu0
        %v1136 = vadd.f32 0.0, %v1135
        %1137 = vdwg.mxu0
        %1138 = vmatpush.msra.mxu0 0.0
        %1139 = vmatpush.msra.mxu0 0.0
        %1140 = vmatpush.msra.mxu0 0.0
        %1141 = vmatpush.msra.mxu0 0.0
        %1142 = vmatpush.msra.mxu0 0.0
        %1143 = vmatpush.msra.mxu0 0.0
        %1144 = vmatpush.msra.mxu0 0.0
        %1145 = vmatpush.msra.mxu0 0.0
        %1146 = vmatpush.msra.mxu0 0.0
        %1147 = vmatpush.msra.mxu0 0.0
        %1148 = vmatpush.msra.mxu0 0.0
        %1149 = vmatpush.msra.mxu0 0.0
        %1150 = vmatpush.msra.mxu0 0.0
        %1151 = vmatpush.msra.mxu0 0.0
        %1152 = vmatpush.msra.mxu0 0.0
        %1153 = vmatpush.msra.mxu0 %v1114
        %1154 = vmatmul.f32.gmra.mxu0 %v1110
        %v1155 = vpop.f32.mrf.mxu0
        %v1156 = vadd.f32 0.0, %v1155
        %1157 = vdwg.mxu0
        %1158 = vmatpush.msra.mxu0 0.0
        %1159 = vmatpush.msra.mxu0 0.0
        %1160 = vmatpush.msra.mxu0 0.0
        %1161 = vmatpush.msra.mxu0 0.0
        %1162 = vmatpush.msra.mxu0 0.0
        %1163 = vmatpush.msra.mxu0 0.0
        %1164 = vmatpush.msra.mxu0 0.0
        %1165 = vmatpush.msra.mxu0 0.0
        %1166 = vmatpush.msra.mxu0 0.0
        %1167 = vmatpush.msra.mxu0 0.0
        %1168 = vmatpush.msra.mxu0 0.0
        %1169 = vmatpush.msra.mxu0 0.0
        %1170 = vmatpush.msra.mxu0 0.0
        %1171 = vmatpush.msra.mxu0 0.0
        %1172 = vmatpush.msra.mxu0 0.0
        %1173 = vmatpush.msra.mxu0 %v1116
        %1174 = vmatmul.f32.gmra.mxu0 %v1110
        %v1175 = vpop.f32.mrf.mxu0
        %v1176 = vadd.f32 0.0, %v1175
        %1177 = vdwg.mxu0
        %v1178 = vadd.f32 %v1081, %v1136
        %v1179 = vadd.f32 %v1082, %v1156
        %v1180 = vadd.f32 %v1083, %v1176
        %1182 = vset.pattern.permute.xlu0 4
        %1183 = vperm.xlu0 %1182, %v324
        %v1184 = vpop.permute.xlu0 %1183
        %1186 = vst [vmem:[#allocation1] ss:$2 sm:$0xff] %v695
        %s1187 = scalar_lea.vmem [#allocation1], 16
        %1188 = vst [vmem:[%s1187] ss:$2 sm:$0xff] %v696
        %v1189 = vld.sshfl [vmem:[#allocation1] sm:$0xff pattern:$0x75316420]
        %v1190 = vld.sshfl [vmem:[#allocation1 + $0x8] sm:$0xff pattern:$0x75316420]
        %v1191 = vld.sshfl [vmem:[#allocation1 + $0x10] sm:$0xff pattern:$0x75316420]
        %v1192 = vld.sshfl [vmem:[#allocation1 + $0x18] sm:$0xff pattern:$0x75316420]
        %1193 = vrot.lane.b32.xlu0 %v1189, 109
        %v1194 = vpop.permute.xlu0 %1193
        %1195 = vrot.lane.b32.xlu0 %v1190, 109
        %v1196 = vpop.permute.xlu0 %1195
        %1197 = vrot.lane.b32.xlu0 %v1191, 109
        %v1198 = vpop.permute.xlu0 %1197
        %1199 = vrot.lane.b32.xlu0 %v1192, 109
        %v1200 = vpop.permute.xlu0 %1199
        %v1201 = vsel %vm716, %v1194, %v1196
        %v1202 = vsel %vm716, %v1196, %v1198
        %v1203 = vsel %vm716, %v1198, %v1200
        %v1205 = vsel %vm353, %v792, 0
        %v1207 = vsel %vm357, %v1201, 0
        %v1209 = vsel %vm357, %v1202, 0
        %v1211 = vsel %vm357, %v1203, 0
        %1213 = vmatpush.msra.mxu0 0.0
        %1214 = vmatpush.msra.mxu0 0.0
        %1215 = vmatpush.msra.mxu0 0.0
        %1216 = vmatpush.msra.mxu0 0.0
        %1217 = vmatpush.msra.mxu0 0.0
        %1218 = vmatpush.msra.mxu0 0.0
        %1219 = vmatpush.msra.mxu0 0.0
        %1220 = vmatpush.msra.mxu0 0.0
        %1221 = vmatpush.msra.mxu0 0.0
        %1222 = vmatpush.msra.mxu0 0.0
        %1223 = vmatpush.msra.mxu0 0.0
        %1224 = vmatpush.msra.mxu0 0.0
        %1225 = vmatpush.msra.mxu0 0.0
        %1226 = vmatpush.msra.mxu0 0.0
        %1227 = vmatpush.msra.mxu0 0.0
        %1228 = vmatpush.msra.mxu0 %v1207
        %1229 = vmatmul.f32.gmra.mxu0 %v1205
        %v1230 = vpop.f32.mrf.mxu0
        %v1231 = vadd.f32 %v1184, %v1230
        %1232 = vdwg.mxu0
        %1233 = vmatpush.msra.mxu0 0.0
        %1234 = vmatpush.msra.mxu0 0.0
        %1235 = vmatpush.msra.mxu0 0.0
        %1236 = vmatpush.msra.mxu0 0.0
        %1237 = vmatpush.msra.mxu0 0.0
        %1238 = vmatpush.msra.mxu0 0.0
        %1239 = vmatpush.msra.mxu0 0.0
        %1240 = vmatpush.msra.mxu0 0.0
        %1241 = vmatpush.msra.mxu0 0.0
        %1242 = vmatpush.msra.mxu0 0.0
        %1243 = vmatpush.msra.mxu0 0.0
        %1244 = vmatpush.msra.mxu0 0.0
        %1245 = vmatpush.msra.mxu0 0.0
        %1246 = vmatpush.msra.mxu0 0.0
        %1247 = vmatpush.msra.mxu0 0.0
        %1248 = vmatpush.msra.mxu0 %v1209
        %1249 = vmatmul.f32.gmra.mxu0 %v1205
        %v1250 = vpop.f32.mrf.mxu0
        %v1251 = vadd.f32 %v1184, %v1250
        %1252 = vdwg.mxu0
        %1253 = vmatpush.msra.mxu0 0.0
        %1254 = vmatpush.msra.mxu0 0.0
        %1255 = vmatpush.msra.mxu0 0.0
        %1256 = vmatpush.msra.mxu0 0.0
        %1257 = vmatpush.msra.mxu0 0.0
        %1258 = vmatpush.msra.mxu0 0.0
        %1259 = vmatpush.msra.mxu0 0.0
        %1260 = vmatpush.msra.mxu0 0.0
        %1261 = vmatpush.msra.mxu0 0.0
        %1262 = vmatpush.msra.mxu0 0.0
        %1263 = vmatpush.msra.mxu0 0.0
        %1264 = vmatpush.msra.mxu0 0.0
        %1265 = vmatpush.msra.mxu0 0.0
        %1266 = vmatpush.msra.mxu0 0.0
        %1267 = vmatpush.msra.mxu0 0.0
        %1268 = vmatpush.msra.mxu0 %v1211
        %1269 = vmatmul.f32.gmra.mxu0 %v1205
        %v1270 = vpop.f32.mrf.mxu0
        %v1271 = vadd.f32 %v1184, %v1270
        %1272 = vdwg.mxu0
        %v1273 = vrot.slane %v1178, 4
        %v1274 = vadd.f32 %v1178, %v1273
        %v1275 = vrot.slane %v1274, 2
        %v1276 = vadd.f32 %v1274, %v1275
        %v1277 = vrot.slane %v1276, 1
        %v1278 = vadd.f32 %v1276, %v1277
        %v1279 = vrot.slane %v1179, 4
        %v1280 = vadd.f32 %v1179, %v1279
        %v1281 = vrot.slane %v1280, 2
        %v1282 = vadd.f32 %v1280, %v1281
        %v1283 = vrot.slane %v1282, 1
        %v1284 = vadd.f32 %v1282, %v1283
        %v1285 = vrot.slane %v1180, 4
        %v1286 = vadd.f32 %v1180, %v1285
        %v1287 = vrot.slane %v1286, 2
        %v1288 = vadd.f32 %v1286, %v1287
        %v1289 = vrot.slane %v1288, 1
        %v1290 = vadd.f32 %v1288, %v1289
        %v1291 = vrcp.pop 8.0
        %v1292 = vmul.f32 8.0, %v1291
        %v1293 = vsub.f32 1.0, %v1292
        %v1294 = vmul.f32 %v1291, %v1293
        %v1295 = vadd.f32 %v1291, %v1294
        %vm1296 = vweird.f32 %v1291
        %v1297 = vsel %vm1296, %v1291, %v1295
        %v1298 = vmul.f32 %v1278, %v1297
        %v1299 = vmul.f32 %v1284, %v1297
        %v1300 = vmul.f32 %v1290, %v1297
        %v1301 = vsub.f32 %v1178, %v1298
        %v1302 = vsub.f32 %v1179, %v1299
        %v1303 = vsub.f32 %v1180, %v1300
        %v1304 = vmul.f32 %v1301, %v1301
        %v1305 = vmul.f32 %v1302, %v1302
        %v1306 = vmul.f32 %v1303, %v1303
        %v1307 = vrot.slane %v1304, 4
        %v1308 = vadd.f32 %v1304, %v1307
        %v1309 = vrot.slane %v1308, 2
        %v1310 = vadd.f32 %v1308, %v1309
        %v1311 = vrot.slane %v1310, 1
        %v1312 = vadd.f32 %v1310, %v1311
        %v1313 = vrot.slane %v1305, 4
        %v1314 = vadd.f32 %v1305, %v1313
        %v1315 = vrot.slane %v1314, 2
        %v1316 = vadd.f32 %v1314, %v1315
        %v1317 = vrot.slane %v1316, 1
        %v1318 = vadd.f32 %v1316, %v1317
        %v1319 = vrot.slane %v1306, 4
        %v1320 = vadd.f32 %v1306, %v1319
        %v1321 = vrot.slane %v1320, 2
        %v1322 = vadd.f32 %v1320, %v1321
        %v1323 = vrot.slane %v1322, 1
        %v1324 = vadd.f32 %v1322, %v1323
        %v1325 = vmul.f32 %v1312, %v1297
        %v1326 = vmul.f32 %v1318, %v1297
        %v1327 = vmul.f32 %v1324, %v1297
        %v1328 = vadd.f32 %v1325, 1e-05
        %v1329 = vadd.f32 %v1326, 1e-05
        %v1330 = vadd.f32 %v1327, 1e-05
        %v1331 = vrsqrt.pop %v1328
        %v1332 = vmul.f32 %v1331, %v1328
        %v1333 = vmul.f32 %v1332, %v1331
        %v1334 = vmul.f32 0.5, %v1333
        %v1335 = vsub.f32 1.5, %v1334
        %v1336 = vmul.f32 %v1331, %v1335
        %vm1337 = vweird.f32 %v1328
        %vm1338 = vweird.f32 %v1331
        %vm1339 = vmor %vm1337, %vm1338
        %v1340 = vsel %vm1339, %v1331, %v1336
        %v1341 = vrsqrt.pop %v1329
        %v1342 = vmul.f32 %v1341, %v1329
        %v1343 = vmul.f32 %v1342, %v1341
        %v1344 = vmul.f32 0.5, %v1343
        %v1345 = vsub.f32 1.5, %v1344
        %v1346 = vmul.f32 %v1341, %v1345
        %vm1347 = vweird.f32 %v1329
        %vm1348 = vweird.f32 %v1341
        %vm1349 = vmor %vm1347, %vm1348
        %v1350 = vsel %vm1349, %v1341, %v1346
        %v1351 = vrsqrt.pop %v1330
        %v1352 = vmul.f32 %v1351, %v1330
        %v1353 = vmul.f32 %v1352, %v1351
        %v1354 = vmul.f32 0.5, %v1353
        %v1355 = vsub.f32 1.5, %v1354
        %v1356 = vmul.f32 %v1351, %v1355
        %vm1357 = vweird.f32 %v1330
        %vm1358 = vweird.f32 %v1351
        %vm1359 = vmor %vm1357, %vm1358
        %v1360 = vsel %vm1359, %v1351, %v1356
        %v1361 = vmul.f32 %v1301, %v1340
        %v1362 = vmul.f32 %v1302, %v1350
        %v1363 = vmul.f32 %v1303, %v1360
        %1364 = vset.pattern.permute.xlu0 0
        %1365 = vperm.xlu0 %1364, %v324
        %v1366 = vpop.permute.xlu0 %1365
        %v1368 = vmul.f32 %v1361, %v1366
        %v1369 = vmul.f32 %v1362, %v1366
        %v1370 = vmul.f32 %v1363, %v1366
        %1371 = vset.pattern.permute.xlu0 1
        %1372 = vperm.xlu0 %1371, %v324
        %v1373 = vpop.permute.xlu0 %1372
        %v1375 = vadd.f32 %v1368, %v1373
        %v1376 = vadd.f32 %v1369, %v1373
        %v1377 = vadd.f32 %v1370, %v1373
        %v1378 = vld [vmem:[%s7] sm:$0xff]
        %v1379 = vld [vmem:[%s323] sm:$0x3f]
        %v1381 = vperm.slane %v1379, 0
        %v1382 = vperm.slane %v1379, 2
        %v1383 = vperm.slane %v1379, 4
        %v1387 = vperm.slane %v1381, 0
        %v1388 = vperm.slane %v1382, 0
        %v1389 = vperm.slane %v1383, 0
        %1391 = vset.pattern.permute.xlu0 0
        %1392 = vperm.xlu0 %1391, %v1378
        %v1393 = vpop.permute.xlu0 %1392
        %v1395 = vmul.f32 %v1387, %v1393
        %v1396 = vmul.f32 %v1388, %v1393
        %v1397 = vmul.f32 %v1389, %v1393
        %v1398 = vperm.slane %v1379, 1
        %v1399 = vperm.slane %v1379, 3
        %v1400 = vperm.slane %v1379, 5
        %v1404 = vperm.slane %v1398, 1
        %v1405 = vperm.slane %v1399, 1
        %v1406 = vperm.slane %v1400, 1
        %v1407 = vmul.f32 %v1404, %v1393
        %v1408 = vmul.f32 %v1405, %v1393
        %v1409 = vmul.f32 %v1406, %v1393
        %v1410 = vand.u32 2147483647, %v1395
        %vm1411 = vcmp.le.f32.partialorder %v1410, 0.7853982
        %vm1412 = vcmp.lt.s32.totalorder %v1395, 0
        %v1413 = vand.u32 %v1395, 2139095040
        %v1414 = vshrl.u32 %v1413, 23
        %v1415 = vsub.s32 %v1414, 127
        %v1416 = vand.u32 2147483647, %v1395
        %v1417 = vand.u32 %v1416, 8388607
        %v1418 = vor.u32 %v1417, 8388608
        %v1419 = vsub.s32 0, %v1418
        %v1420 = vadd.s32 %v1415, 1
        %vm1421 = vcmp.gt.s32.totalorder %v1420, 0
        %v1422 = vsel %vm1421, %v1420, 0
        %v1423 = vshrl.u32 %v1422, 5
        %v1424 = vand.u32 %v1422, 31
        %v1425 = vsub.s32 32, %v1424
        %v1426 = vshrl.u32 683565275, %v1425
        %v1427 = vshll.u32 683565275, %v1424
        %v1428 = vshrl.u32 2475754826, %v1425
        %v1429 = vor.u32 %v1427, %v1428
        %v1430 = vshll.u32 2475754826, %v1424
        %v1431 = vshrl.u32 2131351028, %v1425
        %v1432 = vor.u32 %v1430, %v1431
        %v1433 = vshll.u32 2131351028, %v1424
        %v1434 = vshrl.u32 2102212464, %v1425
        %v1435 = vor.u32 %v1433, %v1434
        %v1436 = vshll.u32 2102212464, %v1424
        %v1437 = vshrl.u32 920167782, %v1425
        %v1438 = vor.u32 %v1436, %v1437
        %v1439 = vshll.u32 920167782, %v1424
        %v1440 = vshrl.u32 1326507024, %v1425
        %v1441 = vor.u32 %v1439, %v1440
        %vm1442 = vcmp.lt.s32.totalorder %v1423, 1
        %vm1443 = vcmp.lt.s32.totalorder %v1423, 2
        %vm1444 = vcmp.lt.s32.totalorder %v1423, 3
        %vm1445 = vcmp.lt.s32.totalorder %v1423, 4
        %v1446 = vsel %vm1442, %v1426, %v1429
        %v1447 = vsel %vm1445, %v1435, 2102212464
        %v1448 = vsel %vm1444, %v1432, %v1447
        %v1449 = vsel %vm1443, %v1446, %v1448
        %v1450 = vsel %vm1442, %v1429, %v1432
        %v1451 = vsel %vm1445, %v1438, 920167782
        %v1452 = vsel %vm1444, %v1435, %v1451
        %v1453 = vsel %vm1443, %v1450, %v1452
        %v1454 = vsel %vm1442, %v1432, %v1435
        %v1455 = vsel %vm1445, %v1441, 1326507024
        %v1456 = vsel %vm1444, %v1438, %v1455
        %v1457 = vsel %vm1443, %v1454, %v1456
        %v1458 = vshll.u32 %v1418, 8
        %v1459 = vand.u32 %v1458, 65535
        %v1460 = vshrl.u32 %v1458, 16
        %v1461 = vand.u32 %v1457, 65535
        %v1462 = vshrl.u32 %v1457, 16
        %v1463 = vmul.u32 %v1459, %v1461
        %v1464 = vmul.u32 %v1459, %v1462
        %v1465 = vmul.u32 %v1460, %v1461
        %v1466 = vmul.u32 %v1460, %v1462
        %v1467 = vshll.u32 %v1464, 16
        %v1468 = vshrl.u32 %v1464, 16
        %v1469 = vshll.u32 %v1465, 16
        %v1470 = vshrl.u32 %v1465, 16
        %vm1471 = vc.u32 %v1463, %v1467
        %v1472 = vsel %vm1471, 1, 0
        %v1473 = vadd.s32 %v1463, %v1467
        %v1474 = vadd.s32 %v1466, %v1472
        %vm1475 = vc.u32 %v1473, %v1469
        %v1476 = vsel %vm1475, 1, 0
        %v1477 = vadd.s32 %v1473, %v1469
        %v1478 = vadd.s32 %v1474, %v1476
        %v1479 = vadd.s32 %v1478, %v1468
        %v1480 = vadd.s32 %v1479, %v1470
        %v1481 = vand.u32 %v1458, 65535
        %v1482 = vshrl.u32 %v1458, 16
        %v1483 = vand.u32 %v1453, 65535
        %v1484 = vshrl.u32 %v1453, 16
        %v1485 = vmul.u32 %v1481, %v1483
        %v1486 = vmul.u32 %v1481, %v1484
        %v1487 = vmul.u32 %v1482, %v1483
        %v1488 = vmul.u32 %v1482, %v1484
        %v1489 = vshll.u32 %v1486, 16
        %v1490 = vshrl.u32 %v1486, 16
        %v1491 = vshll.u32 %v1487, 16
        %v1492 = vshrl.u32 %v1487, 16
        %vm1493 = vc.u32 %v1485, %v1489
        %v1494 = vsel %vm1493, 1, 0
        %v1495 = vadd.s32 %v1485, %v1489
        %v1496 = vadd.s32 %v1488, %v1494
        %vm1497 = vc.u32 %v1495, %v1491
        %v1498 = vsel %vm1497, 1, 0
        %v1499 = vadd.s32 %v1495, %v1491
        %v1500 = vadd.s32 %v1496, %v1498
        %v1501 = vadd.s32 %v1500, %v1490
        %v1502 = vadd.s32 %v1501, %v1492
        %v1503 = vmul.u32 %v1458, %v1449
        %v1504 = vadd.s32 %v1480, %v1499
        %vm1505 = vc.u32 %v1480, %v1499
        %v1506 = vadd.s32 %v1502, 1
        %v1507 = vsel %vm1505, %v1506, %v1502
        %v1508 = vadd.s32 %v1503, %v1507
        %v1509 = vadd.s32 %v1508, 536870912
        %v1510 = vshrl.u32 %v1509, 30
        %v1511 = vshll.u32 %v1510, 30
        %v1512 = vsub.s32 %v1508, %v1511
        %vm1513 = vcmp.lt.s32.totalorder %v1512, 0
        %v1514 = vsub.s32 0, %v1512
        %v1515 = vsel %vm1513, %v1514, %v1512
        %v1516 = vclz %v1515
        %v1517 = vsub.s32 %v1516, 2
        %vm1518 = vcmp.gt.s32.totalorder 0, %v1517
        %v1519 = vsel %vm1518, 0, %v1517
        %v1520 = vsub.s32 32, %v1519
        %v1521 = vshll.u32 %v1512, %v1519
        %v1522 = vshrl.u32 %v1504, %v1520
        %v1523 = vor.u32 %v1521, %v1522
        %v1524 = vsub.s32 4294967266, %v1519
        %v1525 = vadd.s32 %v1524, 127
        %v1526 = vshll.u32 %v1525, 23
        %v1527 = vor.u32 4788187, %v1526
        %v1528 = vand.u32 2147483647, %v1527
        %v1530 = vcvt.s32.f32 %v1523
        %v1531 = vmul.f32 %v1530, %v1528
        %v1532 = vxor.u32 %v1531, 2147483648
        %v1533 = vsel %vm1412, %v1532, %v1531
        %v1534 = vsub.s32 4, %v1510
        %v1535 = vsel %vm1412, %v1534, %v1510
        %v1536 = vsel %vm1411, %v1395, %v1533
        %v1537 = vsel %vm1411, 0, %v1535
        %v1538 = vmul.f32 %v1536, %v1536
        %v1539 = vmul.f32 %v1538, -0.001358992
        %v1540 = vadd.f32 %v1539, 0.041655596
        %v1541 = vmul.f32 %v1538, %v1540
        %v1542 = vadd.f32 %v1541, -0.4999988
        %v1543 = vmul.f32 %v1538, %v1542
        %v1544 = vadd.f32 1.0, %v1543
        %v1545 = vmul.f32 %v1536, %v1536
        %v1546 = vmul.f32 %v1545, -0.00019511016
        %v1547 = vadd.f32 %v1546, 0.008332121
        %v1548 = vmul.f32 %v1545, %v1547
        %v1549 = vadd.f32 %v1548, -0.16666654
        %v1550 = vmul.f32 %v1545, %v1549
        %v1551 = vadd.f32 %v1550, 1.0
        %v1552 = vmul.f32 %v1551, %v1536
        %vm1553 = vweird.f32 %v1395
        %v1554 = vadd.s32 %v1537, 3
        %v1555 = vand.u32 %v1554, 3
        %vm1556 = vcmp.lt.s32.totalorder %v1555, 2
        %vm1557 = vcmp.eq.s32.totalorder %v1555, 0
        %v1558 = vxor.u32 %v1552, 2147483648
        %v1559 = vsel %vm1557, %v1544, %v1558
        %vm1560 = vcmp.eq.s32.totalorder %v1555, 2
        %v1561 = vxor.u32 %v1544, 2147483648
        %v1562 = vsel %vm1560, %v1561, %v1552
        %v1563 = vsel %vm1556, %v1559, %v1562
        %v1564 = vsel %vm1553, nan, %v1563
        %v1565 = vand.u32 2147483647, %v1396
        %vm1566 = vcmp.le.f32.partialorder %v1565, 0.7853982
        %vm1567 = vcmp.lt.s32.totalorder %v1396, 0
        %v1568 = vand.u32 %v1396, 2139095040
        %v1569 = vshrl.u32 %v1568, 23
        %v1570 = vsub.s32 %v1569, 127
        %v1571 = vand.u32 2147483647, %v1396
        %v1572 = vand.u32 %v1571, 8388607
        %v1573 = vor.u32 %v1572, 8388608
        %v1574 = vsub.s32 0, %v1573
        %v1575 = vadd.s32 %v1570, 1
        %vm1576 = vcmp.gt.s32.totalorder %v1575, 0
        %v1577 = vsel %vm1576, %v1575, 0
        %v1578 = vshrl.u32 %v1577, 5
        %v1579 = vand.u32 %v1577, 31
        %v1580 = vsub.s32 32, %v1579
        %v1581 = vshrl.u32 683565275, %v1580
        %v1582 = vshll.u32 683565275, %v1579
        %v1583 = vshrl.u32 2475754826, %v1580
        %v1584 = vor.u32 %v1582, %v1583
        %v1585 = vshll.u32 2475754826, %v1579
        %v1586 = vshrl.u32 2131351028, %v1580
        %v1587 = vor.u32 %v1585, %v1586
        %v1588 = vshll.u32 2131351028, %v1579
        %v1589 = vshrl.u32 2102212464, %v1580
        %v1590 = vor.u32 %v1588, %v1589
        %v1591 = vshll.u32 2102212464, %v1579
        %v1592 = vshrl.u32 920167782, %v1580
        %v1593 = vor.u32 %v1591, %v1592
        %v1594 = vshll.u32 920167782, %v1579
        %v1595 = vshrl.u32 1326507024, %v1580
        %v1596 = vor.u32 %v1594, %v1595
        %vm1597 = vcmp.lt.s32.totalorder %v1578, 1
        %vm1598 = vcmp.lt.s32.totalorder %v1578, 2
        %vm1599 = vcmp.lt.s32.totalorder %v1578, 3
        %vm1600 = vcmp.lt.s32.totalorder %v1578, 4
        %v1601 = vsel %vm1597, %v1581, %v1584
        %v1602 = vsel %vm1600, %v1590, 2102212464
        %v1603 = vsel %vm1599, %v1587, %v1602
        %v1604 = vsel %vm1598, %v1601, %v1603
        %v1605 = vsel %vm1597, %v1584, %v1587
        %v1606 = vsel %vm1600, %v1593, 920167782
        %v1607 = vsel %vm1599, %v1590, %v1606
        %v1608 = vsel %vm1598, %v1605, %v1607
        %v1609 = vsel %vm1597, %v1587, %v1590
        %v1610 = vsel %vm1600, %v1596, 1326507024
        %v1611 = vsel %vm1599, %v1593, %v1610
        %v1612 = vsel %vm1598, %v1609, %v1611
        %v1613 = vshll.u32 %v1573, 8
        %v1614 = vand.u32 %v1613, 65535
        %v1615 = vshrl.u32 %v1613, 16
        %v1616 = vand.u32 %v1612, 65535
        %v1617 = vshrl.u32 %v1612, 16
        %v1618 = vmul.u32 %v1614, %v1616
        %v1619 = vmul.u32 %v1614, %v1617
        %v1620 = vmul.u32 %v1615, %v1616
        %v1621 = vmul.u32 %v1615, %v1617
        %v1622 = vshll.u32 %v1619, 16
        %v1623 = vshrl.u32 %v1619, 16
        %v1624 = vshll.u32 %v1620, 16
        %v1625 = vshrl.u32 %v1620, 16
        %vm1626 = vc.u32 %v1618, %v1622
        %v1627 = vsel %vm1626, 1, 0
        %v1628 = vadd.s32 %v1618, %v1622
        %v1629 = vadd.s32 %v1621, %v1627
        %vm1630 = vc.u32 %v1628, %v1624
        %v1631 = vsel %vm1630, 1, 0
        %v1632 = vadd.s32 %v1628, %v1624
        %v1633 = vadd.s32 %v1629, %v1631
        %v1634 = vadd.s32 %v1633, %v1623
        %v1635 = vadd.s32 %v1634, %v1625
        %v1636 = vand.u32 %v1613, 65535
        %v1637 = vshrl.u32 %v1613, 16
        %v1638 = vand.u32 %v1608, 65535
        %v1639 = vshrl.u32 %v1608, 16
        %v1640 = vmul.u32 %v1636, %v1638
        %v1641 = vmul.u32 %v1636, %v1639
        %v1642 = vmul.u32 %v1637, %v1638
        %v1643 = vmul.u32 %v1637, %v1639
        %v1644 = vshll.u32 %v1641, 16
        %v1645 = vshrl.u32 %v1641, 16
        %v1646 = vshll.u32 %v1642, 16
        %v1647 = vshrl.u32 %v1642, 16
        %vm1648 = vc.u32 %v1640, %v1644
        %v1649 = vsel %vm1648, 1, 0
        %v1650 = vadd.s32 %v1640, %v1644
        %v1651 = vadd.s32 %v1643, %v1649
        %vm1652 = vc.u32 %v1650, %v1646
        %v1653 = vsel %vm1652, 1, 0
        %v1654 = vadd.s32 %v1650, %v1646
        %v1655 = vadd.s32 %v1651, %v1653
        %v1656 = vadd.s32 %v1655, %v1645
        %v1657 = vadd.s32 %v1656, %v1647
        %v1658 = vmul.u32 %v1613, %v1604
        %v1659 = vadd.s32 %v1635, %v1654
        %vm1660 = vc.u32 %v1635, %v1654
        %v1661 = vadd.s32 %v1657, 1
        %v1662 = vsel %vm1660, %v1661, %v1657
        %v1663 = vadd.s32 %v1658, %v1662
        %v1664 = vadd.s32 %v1663, 536870912
        %v1665 = vshrl.u32 %v1664, 30
        %v1666 = vshll.u32 %v1665, 30
        %v1667 = vsub.s32 %v1663, %v1666
        %vm1668 = vcmp.lt.s32.totalorder %v1667, 0
        %v1669 = vsub.s32 0, %v1667
        %v1670 = vsel %vm1668, %v1669, %v1667
        %v1671 = vclz %v1670
        %v1672 = vsub.s32 %v1671, 2
        %vm1673 = vcmp.gt.s32.totalorder 0, %v1672
        %v1674 = vsel %vm1673, 0, %v1672
        %v1675 = vsub.s32 32, %v1674
        %v1676 = vshll.u32 %v1667, %v1674
        %v1677 = vshrl.u32 %v1659, %v1675
        %v1678 = vor.u32 %v1676, %v1677
        %v1679 = vsub.s32 4294967266, %v1674
        %v1680 = vadd.s32 %v1679, 127
        %v1681 = vshll.u32 %v1680, 23
        %v1682 = vor.u32 4788187, %v1681
        %v1683 = vand.u32 2147483647, %v1682
        %v1685 = vcvt.s32.f32 %v1678
        %v1686 = vmul.f32 %v1685, %v1683
        %v1687 = vxor.u32 %v1686, 2147483648
        %v1688 = vsel %vm1567, %v1687, %v1686
        %v1689 = vsub.s32 4, %v1665
        %v1690 = vsel %vm1567, %v1689, %v1665
        %v1691 = vsel %vm1566, %v1396, %v1688
        %v1692 = vsel %vm1566, 0, %v1690
        %v1693 = vmul.f32 %v1691, %v1691
        %v1694 = vmul.f32 %v1693, -0.001358992
        %v1695 = vadd.f32 %v1694, 0.041655596
        %v1696 = vmul.f32 %v1693, %v1695
        %v1697 = vadd.f32 %v1696, -0.4999988
        %v1698 = vmul.f32 %v1693, %v1697
        %v1699 = vadd.f32 1.0, %v1698
        %v1700 = vmul.f32 %v1691, %v1691
        %v1701 = vmul.f32 %v1700, -0.00019511016
        %v1702 = vadd.f32 %v1701, 0.008332121
        %v1703 = vmul.f32 %v1700, %v1702
        %v1704 = vadd.f32 %v1703, -0.16666654
        %v1705 = vmul.f32 %v1700, %v1704
        %v1706 = vadd.f32 %v1705, 1.0
        %v1707 = vmul.f32 %v1706, %v1691
        %vm1708 = vweird.f32 %v1396
        %v1709 = vadd.s32 %v1692, 3
        %v1710 = vand.u32 %v1709, 3
        %vm1711 = vcmp.lt.s32.totalorder %v1710, 2
        %vm1712 = vcmp.eq.s32.totalorder %v1710, 0
        %v1713 = vxor.u32 %v1707, 2147483648
        %v1714 = vsel %vm1712, %v1699, %v1713
        %vm1715 = vcmp.eq.s32.totalorder %v1710, 2
        %v1716 = vxor.u32 %v1699, 2147483648
        %v1717 = vsel %vm1715, %v1716, %v1707
        %v1718 = vsel %vm1711, %v1714, %v1717
        %v1719 = vsel %vm1708, nan, %v1718
        %v1720 = vand.u32 2147483647, %v1397
        %vm1721 = vcmp.le.f32.partialorder %v1720, 0.7853982
        %vm1722 = vcmp.lt.s32.totalorder %v1397, 0
        %v1723 = vand.u32 %v1397, 2139095040
        %v1724 = vshrl.u32 %v1723, 23
        %v1725 = vsub.s32 %v1724, 127
        %v1726 = vand.u32 2147483647, %v1397
        %v1727 = vand.u32 %v1726, 8388607
        %v1728 = vor.u32 %v1727, 8388608
        %v1729 = vsub.s32 0, %v1728
        %v1730 = vadd.s32 %v1725, 1
        %vm1731 = vcmp.gt.s32.totalorder %v1730, 0
        %v1732 = vsel %vm1731, %v1730, 0
        %v1733 = vshrl.u32 %v1732, 5
        %v1734 = vand.u32 %v1732, 31
        %v1735 = vsub.s32 32, %v1734
        %v1736 = vshrl.u32 683565275, %v1735
        %v1737 = vshll.u32 683565275, %v1734
        %v1738 = vshrl.u32 2475754826, %v1735
        %v1739 = vor.u32 %v1737, %v1738
        %v1740 = vshll.u32 2475754826, %v1734
        %v1741 = vshrl.u32 2131351028, %v1735
        %v1742 = vor.u32 %v1740, %v1741
        %v1743 = vshll.u32 2131351028, %v1734
        %v1744 = vshrl.u32 2102212464, %v1735
        %v1745 = vor.u32 %v1743, %v1744
        %v1746 = vshll.u32 2102212464, %v1734
        %v1747 = vshrl.u32 920167782, %v1735
        %v1748 = vor.u32 %v1746, %v1747
        %v1749 = vshll.u32 920167782, %v1734
        %v1750 = vshrl.u32 1326507024, %v1735
        %v1751 = vor.u32 %v1749, %v1750
        %vm1752 = vcmp.lt.s32.totalorder %v1733, 1
        %vm1753 = vcmp.lt.s32.totalorder %v1733, 2
        %vm1754 = vcmp.lt.s32.totalorder %v1733, 3
        %vm1755 = vcmp.lt.s32.totalorder %v1733, 4
        %v1756 = vsel %vm1752, %v1736, %v1739
        %v1757 = vsel %vm1755, %v1745, 2102212464
        %v1758 = vsel %vm1754, %v1742, %v1757
        %v1759 = vsel %vm1753, %v1756, %v1758
        %v1760 = vsel %vm1752, %v1739, %v1742
        %v1761 = vsel %vm1755, %v1748, 920167782
        %v1762 = vsel %vm1754, %v1745, %v1761
        %v1763 = vsel %vm1753, %v1760, %v1762
        %v1764 = vsel %vm1752, %v1742, %v1745
        %v1765 = vsel %vm1755, %v1751, 1326507024
        %v1766 = vsel %vm1754, %v1748, %v1765
        %v1767 = vsel %vm1753, %v1764, %v1766
        %v1768 = vshll.u32 %v1728, 8
        %v1769 = vand.u32 %v1768, 65535
        %v1770 = vshrl.u32 %v1768, 16
        %v1771 = vand.u32 %v1767, 65535
        %v1772 = vshrl.u32 %v1767, 16
        %v1773 = vmul.u32 %v1769, %v1771
        %v1774 = vmul.u32 %v1769, %v1772
        %v1775 = vmul.u32 %v1770, %v1771
        %v1776 = vmul.u32 %v1770, %v1772
        %v1777 = vshll.u32 %v1774, 16
        %v1778 = vshrl.u32 %v1774, 16
        %v1779 = vshll.u32 %v1775, 16
        %v1780 = vshrl.u32 %v1775, 16
        %vm1781 = vc.u32 %v1773, %v1777
        %v1782 = vsel %vm1781, 1, 0
        %v1783 = vadd.s32 %v1773, %v1777
        %v1784 = vadd.s32 %v1776, %v1782
        %vm1785 = vc.u32 %v1783, %v1779
        %v1786 = vsel %vm1785, 1, 0
        %v1787 = vadd.s32 %v1783, %v1779
        %v1788 = vadd.s32 %v1784, %v1786
        %v1789 = vadd.s32 %v1788, %v1778
        %v1790 = vadd.s32 %v1789, %v1780
        %v1791 = vand.u32 %v1768, 65535
        %v1792 = vshrl.u32 %v1768, 16
        %v1793 = vand.u32 %v1763, 65535
        %v1794 = vshrl.u32 %v1763, 16
        %v1795 = vmul.u32 %v1791, %v1793
        %v1796 = vmul.u32 %v1791, %v1794
        %v1797 = vmul.u32 %v1792, %v1793
        %v1798 = vmul.u32 %v1792, %v1794
        %v1799 = vshll.u32 %v1796, 16
        %v1800 = vshrl.u32 %v1796, 16
        %v1801 = vshll.u32 %v1797, 16
        %v1802 = vshrl.u32 %v1797, 16
        %vm1803 = vc.u32 %v1795, %v1799
        %v1804 = vsel %vm1803, 1, 0
        %v1805 = vadd.s32 %v1795, %v1799
        %v1806 = vadd.s32 %v1798, %v1804
        %vm1807 = vc.u32 %v1805, %v1801
        %v1808 = vsel %vm1807, 1, 0
        %v1809 = vadd.s32 %v1805, %v1801
        %v1810 = vadd.s32 %v1806, %v1808
        %v1811 = vadd.s32 %v1810, %v1800
        %v1812 = vadd.s32 %v1811, %v1802
        %v1813 = vmul.u32 %v1768, %v1759
        %v1814 = vadd.s32 %v1790, %v1809
        %vm1815 = vc.u32 %v1790, %v1809
        %v1816 = vadd.s32 %v1812, 1
        %v1817 = vsel %vm1815, %v1816, %v1812
        %v1818 = vadd.s32 %v1813, %v1817
        %v1819 = vadd.s32 %v1818, 536870912
        %v1820 = vshrl.u32 %v1819, 30
        %v1821 = vshll.u32 %v1820, 30
        %v1822 = vsub.s32 %v1818, %v1821
        %vm1823 = vcmp.lt.s32.totalorder %v1822, 0
        %v1824 = vsub.s32 0, %v1822
        %v1825 = vsel %vm1823, %v1824, %v1822
        %v1826 = vclz %v1825
        %v1827 = vsub.s32 %v1826, 2
        %vm1828 = vcmp.gt.s32.totalorder 0, %v1827
        %v1829 = vsel %vm1828, 0, %v1827
        %v1830 = vsub.s32 32, %v1829
        %v1831 = vshll.u32 %v1822, %v1829
        %v1832 = vshrl.u32 %v1814, %v1830
        %v1833 = vor.u32 %v1831, %v1832
        %v1834 = vsub.s32 4294967266, %v1829
        %v1835 = vadd.s32 %v1834, 127
        %v1836 = vshll.u32 %v1835, 23
        %v1837 = vor.u32 4788187, %v1836
        %v1838 = vand.u32 2147483647, %v1837
        %v1840 = vcvt.s32.f32 %v1833
        %v1841 = vmul.f32 %v1840, %v1838
        %v1842 = vxor.u32 %v1841, 2147483648
        %v1843 = vsel %vm1722, %v1842, %v1841
        %v1844 = vsub.s32 4, %v1820
        %v1845 = vsel %vm1722, %v1844, %v1820
        %v1846 = vsel %vm1721, %v1397, %v1843
        %v1847 = vsel %vm1721, 0, %v1845
        %v1848 = vmul.f32 %v1846, %v1846
        %v1849 = vmul.f32 %v1848, -0.001358992
        %v1850 = vadd.f32 %v1849, 0.041655596
        %v1851 = vmul.f32 %v1848, %v1850
        %v1852 = vadd.f32 %v1851, -0.4999988
        %v1853 = vmul.f32 %v1848, %v1852
        %v1854 = vadd.f32 1.0, %v1853
        %v1855 = vmul.f32 %v1846, %v1846
        %v1856 = vmul.f32 %v1855, -0.00019511016
        %v1857 = vadd.f32 %v1856, 0.008332121
        %v1858 = vmul.f32 %v1855, %v1857
        %v1859 = vadd.f32 %v1858, -0.16666654
        %v1860 = vmul.f32 %v1855, %v1859
        %v1861 = vadd.f32 %v1860, 1.0
        %v1862 = vmul.f32 %v1861, %v1846
        %vm1863 = vweird.f32 %v1397
        %v1864 = vadd.s32 %v1847, 3
        %v1865 = vand.u32 %v1864, 3
        %vm1866 = vcmp.lt.s32.totalorder %v1865, 2
        %vm1867 = vcmp.eq.s32.totalorder %v1865, 0
        %v1868 = vxor.u32 %v1862, 2147483648
        %v1869 = vsel %vm1867, %v1854, %v1868
        %vm1870 = vcmp.eq.s32.totalorder %v1865, 2
        %v1871 = vxor.u32 %v1854, 2147483648
        %v1872 = vsel %vm1870, %v1871, %v1862
        %v1873 = vsel %vm1866, %v1869, %v1872
        %v1874 = vsel %vm1863, nan, %v1873
        %v1875 = vand.u32 2147483647, %v1407
        %vm1876 = vcmp.le.f32.partialorder %v1875, 0.7853982
        %vm1877 = vcmp.lt.s32.totalorder %v1407, 0
        %v1878 = vand.u32 %v1407, 2139095040
        %v1879 = vshrl.u32 %v1878, 23
        %v1880 = vsub.s32 %v1879, 127
        %v1881 = vand.u32 2147483647, %v1407
        %v1882 = vand.u32 %v1881, 8388607
        %v1883 = vor.u32 %v1882, 8388608
        %v1884 = vsub.s32 0, %v1883
        %v1885 = vadd.s32 %v1880, 1
        %vm1886 = vcmp.gt.s32.totalorder %v1885, 0
        %v1887 = vsel %vm1886, %v1885, 0
        %v1888 = vshrl.u32 %v1887, 5
        %v1889 = vand.u32 %v1887, 31
        %v1890 = vsub.s32 32, %v1889
        %v1891 = vshrl.u32 683565275, %v1890
        %v1892 = vshll.u32 683565275, %v1889
        %v1893 = vshrl.u32 2475754826, %v1890
        %v1894 = vor.u32 %v1892, %v1893
        %v1895 = vshll.u32 2475754826, %v1889
        %v1896 = vshrl.u32 2131351028, %v1890
        %v1897 = vor.u32 %v1895, %v1896
        %v1898 = vshll.u32 2131351028, %v1889
        %v1899 = vshrl.u32 2102212464, %v1890
        %v1900 = vor.u32 %v1898, %v1899
        %v1901 = vshll.u32 2102212464, %v1889
        %v1902 = vshrl.u32 920167782, %v1890
        %v1903 = vor.u32 %v1901, %v1902
        %v1904 = vshll.u32 920167782, %v1889
        %v1905 = vshrl.u32 1326507024, %v1890
        %v1906 = vor.u32 %v1904, %v1905
        %vm1907 = vcmp.lt.s32.totalorder %v1888, 1
        %vm1908 = vcmp.lt.s32.totalorder %v1888, 2
        %vm1909 = vcmp.lt.s32.totalorder %v1888, 3
        %vm1910 = vcmp.lt.s32.totalorder %v1888, 4
        %v1911 = vsel %vm1907, %v1891, %v1894
        %v1912 = vsel %vm1910, %v1900, 2102212464
        %v1913 = vsel %vm1909, %v1897, %v1912
        %v1914 = vsel %vm1908, %v1911, %v1913
        %v1915 = vsel %vm1907, %v1894, %v1897
        %v1916 = vsel %vm1910, %v1903, 920167782
        %v1917 = vsel %vm1909, %v1900, %v1916
        %v1918 = vsel %vm1908, %v1915, %v1917
        %v1919 = vsel %vm1907, %v1897, %v1900
        %v1920 = vsel %vm1910, %v1906, 1326507024
        %v1921 = vsel %vm1909, %v1903, %v1920
        %v1922 = vsel %vm1908, %v1919, %v1921
        %v1923 = vshll.u32 %v1883, 8
        %v1924 = vand.u32 %v1923, 65535
        %v1925 = vshrl.u32 %v1923, 16
        %v1926 = vand.u32 %v1922, 65535
        %v1927 = vshrl.u32 %v1922, 16
        %v1928 = vmul.u32 %v1924, %v1926
        %v1929 = vmul.u32 %v1924, %v1927
        %v1930 = vmul.u32 %v1925, %v1926
        %v1931 = vmul.u32 %v1925, %v1927
        %v1932 = vshll.u32 %v1929, 16
        %v1933 = vshrl.u32 %v1929, 16
        %v1934 = vshll.u32 %v1930, 16
        %v1935 = vshrl.u32 %v1930, 16
        %vm1936 = vc.u32 %v1928, %v1932
        %v1937 = vsel %vm1936, 1, 0
        %v1938 = vadd.s32 %v1928, %v1932
        %v1939 = vadd.s32 %v1931, %v1937
        %vm1940 = vc.u32 %v1938, %v1934
        %v1941 = vsel %vm1940, 1, 0
        %v1942 = vadd.s32 %v1938, %v1934
        %v1943 = vadd.s32 %v1939, %v1941
        %v1944 = vadd.s32 %v1943, %v1933
        %v1945 = vadd.s32 %v1944, %v1935
        %v1946 = vand.u32 %v1923, 65535
        %v1947 = vshrl.u32 %v1923, 16
        %v1948 = vand.u32 %v1918, 65535
        %v1949 = vshrl.u32 %v1918, 16
        %v1950 = vmul.u32 %v1946, %v1948
        %v1951 = vmul.u32 %v1946, %v1949
        %v1952 = vmul.u32 %v1947, %v1948
        %v1953 = vmul.u32 %v1947, %v1949
        %v1954 = vshll.u32 %v1951, 16
        %v1955 = vshrl.u32 %v1951, 16
        %v1956 = vshll.u32 %v1952, 16
        %v1957 = vshrl.u32 %v1952, 16
        %vm1958 = vc.u32 %v1950, %v1954
        %v1959 = vsel %vm1958, 1, 0
        %v1960 = vadd.s32 %v1950, %v1954
        %v1961 = vadd.s32 %v1953, %v1959
        %vm1962 = vc.u32 %v1960, %v1956
        %v1963 = vsel %vm1962, 1, 0
        %v1964 = vadd.s32 %v1960, %v1956
        %v1965 = vadd.s32 %v1961, %v1963
        %v1966 = vadd.s32 %v1965, %v1955
        %v1967 = vadd.s32 %v1966, %v1957
        %v1968 = vmul.u32 %v1923, %v1914
        %v1969 = vadd.s32 %v1945, %v1964
        %vm1970 = vc.u32 %v1945, %v1964
        %v1971 = vadd.s32 %v1967, 1
        %v1972 = vsel %vm1970, %v1971, %v1967
        %v1973 = vadd.s32 %v1968, %v1972
        %v1974 = vadd.s32 %v1973, 536870912
        %v1975 = vshrl.u32 %v1974, 30
        %v1976 = vshll.u32 %v1975, 30
        %v1977 = vsub.s32 %v1973, %v1976
        %vm1978 = vcmp.lt.s32.totalorder %v1977, 0
        %v1979 = vsub.s32 0, %v1977
        %v1980 = vsel %vm1978, %v1979, %v1977
        %v1981 = vclz %v1980
        %v1982 = vsub.s32 %v1981, 2
        %vm1983 = vcmp.gt.s32.totalorder 0, %v1982
        %v1984 = vsel %vm1983, 0, %v1982
        %v1985 = vsub.s32 32, %v1984
        %v1986 = vshll.u32 %v1977, %v1984
        %v1987 = vshrl.u32 %v1969, %v1985
        %v1988 = vor.u32 %v1986, %v1987
        %v1989 = vsub.s32 4294967266, %v1984
        %v1990 = vadd.s32 %v1989, 127
        %v1991 = vshll.u32 %v1990, 23
        %v1992 = vor.u32 4788187, %v1991
        %v1993 = vand.u32 2147483647, %v1992
        %v1995 = vcvt.s32.f32 %v1988
        %v1996 = vmul.f32 %v1995, %v1993
        %v1997 = vxor.u32 %v1996, 2147483648
        %v1998 = vsel %vm1877, %v1997, %v1996
        %v1999 = vsub.s32 4, %v1975
        %v2000 = vsel %vm1877, %v1999, %v1975
        %v2001 = vsel %vm1876, %v1407, %v1998
        %v2002 = vsel %vm1876, 0, %v2000
        %v2003 = vmul.f32 %v2001, %v2001
        %v2004 = vmul.f32 %v2003, -0.001358992
        %v2005 = vadd.f32 %v2004, 0.041655596
        %v2006 = vmul.f32 %v2003, %v2005
        %v2007 = vadd.f32 %v2006, -0.4999988
        %v2008 = vmul.f32 %v2003, %v2007
        %v2009 = vadd.f32 1.0, %v2008
        %v2010 = vmul.f32 %v2001, %v2001
        %v2011 = vmul.f32 %v2010, -0.00019511016
        %v2012 = vadd.f32 %v2011, 0.008332121
        %v2013 = vmul.f32 %v2010, %v2012
        %v2014 = vadd.f32 %v2013, -0.16666654
        %v2015 = vmul.f32 %v2010, %v2014
        %v2016 = vadd.f32 %v2015, 1.0
        %v2017 = vmul.f32 %v2016, %v2001
        %vm2018 = vweird.f32 %v1407
        %v2019 = vadd.s32 %v2002, 3
        %v2020 = vand.u32 %v2019, 3
        %vm2021 = vcmp.lt.s32.totalorder %v2020, 2
        %vm2022 = vcmp.eq.s32.totalorder %v2020, 0
        %v2023 = vxor.u32 %v2017, 2147483648
        %v2024 = vsel %vm2022, %v2009, %v2023
        %vm2025 = vcmp.eq.s32.totalorder %v2020, 2
        %v2026 = vxor.u32 %v2009, 2147483648
        %v2027 = vsel %vm2025, %v2026, %v2017
        %v2028 = vsel %vm2021, %v2024, %v2027
        %v2029 = vsel %vm2018, nan, %v2028
        %v2030 = vand.u32 2147483647, %v1408
        %vm2031 = vcmp.le.f32.partialorder %v2030, 0.7853982
        %vm2032 = vcmp.lt.s32.totalorder %v1408, 0
        %v2033 = vand.u32 %v1408, 2139095040
        %v2034 = vshrl.u32 %v2033, 23
        %v2035 = vsub.s32 %v2034, 127
        %v2036 = vand.u32 2147483647, %v1408
        %v2037 = vand.u32 %v2036, 8388607
        %v2038 = vor.u32 %v2037, 8388608
        %v2039 = vsub.s32 0, %v2038
        %v2040 = vadd.s32 %v2035, 1
        %vm2041 = vcmp.gt.s32.totalorder %v2040, 0
        %v2042 = vsel %vm2041, %v2040, 0
        %v2043 = vshrl.u32 %v2042, 5
        %v2044 = vand.u32 %v2042, 31
        %v2045 = vsub.s32 32, %v2044
        %v2046 = vshrl.u32 683565275, %v2045
        %v2047 = vshll.u32 683565275, %v2044
        %v2048 = vshrl.u32 2475754826, %v2045
        %v2049 = vor.u32 %v2047, %v2048
        %v2050 = vshll.u32 2475754826, %v2044
        %v2051 = vshrl.u32 2131351028, %v2045
        %v2052 = vor.u32 %v2050, %v2051
        %v2053 = vshll.u32 2131351028, %v2044
        %v2054 = vshrl.u32 2102212464, %v2045
        %v2055 = vor.u32 %v2053, %v2054
        %v2056 = vshll.u32 2102212464, %v2044
        %v2057 = vshrl.u32 920167782, %v2045
        %v2058 = vor.u32 %v2056, %v2057
        %v2059 = vshll.u32 920167782, %v2044
        %v2060 = vshrl.u32 1326507024, %v2045
        %v2061 = vor.u32 %v2059, %v2060
        %vm2062 = vcmp.lt.s32.totalorder %v2043, 1
        %vm2063 = vcmp.lt.s32.totalorder %v2043, 2
        %vm2064 = vcmp.lt.s32.totalorder %v2043, 3
        %vm2065 = vcmp.lt.s32.totalorder %v2043, 4
        %v2066 = vsel %vm2062, %v2046, %v2049
        %v2067 = vsel %vm2065, %v2055, 2102212464
        %v2068 = vsel %vm2064, %v2052, %v2067
        %v2069 = vsel %vm2063, %v2066, %v2068
        %v2070 = vsel %vm2062, %v2049, %v2052
        %v2071 = vsel %vm2065, %v2058, 920167782
        %v2072 = vsel %vm2064, %v2055, %v2071
        %v2073 = vsel %vm2063, %v2070, %v2072
        %v2074 = vsel %vm2062, %v2052, %v2055
        %v2075 = vsel %vm2065, %v2061, 1326507024
        %v2076 = vsel %vm2064, %v2058, %v2075
        %v2077 = vsel %vm2063, %v2074, %v2076
        %v2078 = vshll.u32 %v2038, 8
        %v2079 = vand.u32 %v2078, 65535
        %v2080 = vshrl.u32 %v2078, 16
        %v2081 = vand.u32 %v2077, 65535
        %v2082 = vshrl.u32 %v2077, 16
        %v2083 = vmul.u32 %v2079, %v2081
        %v2084 = vmul.u32 %v2079, %v2082
        %v2085 = vmul.u32 %v2080, %v2081
        %v2086 = vmul.u32 %v2080, %v2082
        %v2087 = vshll.u32 %v2084, 16
        %v2088 = vshrl.u32 %v2084, 16
        %v2089 = vshll.u32 %v2085, 16
        %v2090 = vshrl.u32 %v2085, 16
        %vm2091 = vc.u32 %v2083, %v2087
        %v2092 = vsel %vm2091, 1, 0
        %v2093 = vadd.s32 %v2083, %v2087
        %v2094 = vadd.s32 %v2086, %v2092
        %vm2095 = vc.u32 %v2093, %v2089
        %v2096 = vsel %vm2095, 1, 0
        %v2097 = vadd.s32 %v2093, %v2089
        %v2098 = vadd.s32 %v2094, %v2096
        %v2099 = vadd.s32 %v2098, %v2088
        %v2100 = vadd.s32 %v2099, %v2090
        %v2101 = vand.u32 %v2078, 65535
        %v2102 = vshrl.u32 %v2078, 16
        %v2103 = vand.u32 %v2073, 65535
        %v2104 = vshrl.u32 %v2073, 16
        %v2105 = vmul.u32 %v2101, %v2103
        %v2106 = vmul.u32 %v2101, %v2104
        %v2107 = vmul.u32 %v2102, %v2103
        %v2108 = vmul.u32 %v2102, %v2104
        %v2109 = vshll.u32 %v2106, 16
        %v2110 = vshrl.u32 %v2106, 16
        %v2111 = vshll.u32 %v2107, 16
        %v2112 = vshrl.u32 %v2107, 16
        %vm2113 = vc.u32 %v2105, %v2109
        %v2114 = vsel %vm2113, 1, 0
        %v2115 = vadd.s32 %v2105, %v2109
        %v2116 = vadd.s32 %v2108, %v2114
        %vm2117 = vc.u32 %v2115, %v2111
        %v2118 = vsel %vm2117, 1, 0
        %v2119 = vadd.s32 %v2115, %v2111
        %v2120 = vadd.s32 %v2116, %v2118
        %v2121 = vadd.s32 %v2120, %v2110
        %v2122 = vadd.s32 %v2121, %v2112
        %v2123 = vmul.u32 %v2078, %v2069
        %v2124 = vadd.s32 %v2100, %v2119
        %vm2125 = vc.u32 %v2100, %v2119
        %v2126 = vadd.s32 %v2122, 1
        %v2127 = vsel %vm2125, %v2126, %v2122
        %v2128 = vadd.s32 %v2123, %v2127
        %v2129 = vadd.s32 %v2128, 536870912
        %v2130 = vshrl.u32 %v2129, 30
        %v2131 = vshll.u32 %v2130, 30
        %v2132 = vsub.s32 %v2128, %v2131
        %vm2133 = vcmp.lt.s32.totalorder %v2132, 0
        %v2134 = vsub.s32 0, %v2132
        %v2135 = vsel %vm2133, %v2134, %v2132
        %v2136 = vclz %v2135
        %v2137 = vsub.s32 %v2136, 2
        %vm2138 = vcmp.gt.s32.totalorder 0, %v2137
        %v2139 = vsel %vm2138, 0, %v2137
        %v2140 = vsub.s32 32, %v2139
        %v2141 = vshll.u32 %v2132, %v2139
        %v2142 = vshrl.u32 %v2124, %v2140
        %v2143 = vor.u32 %v2141, %v2142
        %v2144 = vsub.s32 4294967266, %v2139
        %v2145 = vadd.s32 %v2144, 127
        %v2146 = vshll.u32 %v2145, 23
        %v2147 = vor.u32 4788187, %v2146
        %v2148 = vand.u32 2147483647, %v2147
        %v2150 = vcvt.s32.f32 %v2143
        %v2151 = vmul.f32 %v2150, %v2148
        %v2152 = vxor.u32 %v2151, 2147483648
        %v2153 = vsel %vm2032, %v2152, %v2151
        %v2154 = vsub.s32 4, %v2130
        %v2155 = vsel %vm2032, %v2154, %v2130
        %v2156 = vsel %vm2031, %v1408, %v2153
        %v2157 = vsel %vm2031, 0, %v2155
        %v2158 = vmul.f32 %v2156, %v2156
        %v2159 = vmul.f32 %v2158, -0.001358992
        %v2160 = vadd.f32 %v2159, 0.041655596
        %v2161 = vmul.f32 %v2158, %v2160
        %v2162 = vadd.f32 %v2161, -0.4999988
        %v2163 = vmul.f32 %v2158, %v2162
        %v2164 = vadd.f32 1.0, %v2163
        %v2165 = vmul.f32 %v2156, %v2156
        %v2166 = vmul.f32 %v2165, -0.00019511016
        %v2167 = vadd.f32 %v2166, 0.008332121
        %v2168 = vmul.f32 %v2165, %v2167
        %v2169 = vadd.f32 %v2168, -0.16666654
        %v2170 = vmul.f32 %v2165, %v2169
        %v2171 = vadd.f32 %v2170, 1.0
        %v2172 = vmul.f32 %v2171, %v2156
        %vm2173 = vweird.f32 %v1408
        %v2174 = vadd.s32 %v2157, 3
        %v2175 = vand.u32 %v2174, 3
        %vm2176 = vcmp.lt.s32.totalorder %v2175, 2
        %vm2177 = vcmp.eq.s32.totalorder %v2175, 0
        %v2178 = vxor.u32 %v2172, 2147483648
        %v2179 = vsel %vm2177, %v2164, %v2178
        %vm2180 = vcmp.eq.s32.totalorder %v2175, 2
        %v2181 = vxor.u32 %v2164, 2147483648
        %v2182 = vsel %vm2180, %v2181, %v2172
        %v2183 = vsel %vm2176, %v2179, %v2182
        %v2184 = vsel %vm2173, nan, %v2183
        %v2185 = vand.u32 2147483647, %v1409
        %vm2186 = vcmp.le.f32.partialorder %v2185, 0.7853982
        %vm2187 = vcmp.lt.s32.totalorder %v1409, 0
        %v2188 = vand.u32 %v1409, 2139095040
        %v2189 = vshrl.u32 %v2188, 23
        %v2190 = vsub.s32 %v2189, 127
        %v2191 = vand.u32 2147483647, %v1409
        %v2192 = vand.u32 %v2191, 8388607
        %v2193 = vor.u32 %v2192, 8388608
        %v2194 = vsub.s32 0, %v2193
        %v2195 = vadd.s32 %v2190, 1
        %vm2196 = vcmp.gt.s32.totalorder %v2195, 0
        %v2197 = vsel %vm2196, %v2195, 0
        %v2198 = vshrl.u32 %v2197, 5
        %v2199 = vand.u32 %v2197, 31
        %v2200 = vsub.s32 32, %v2199
        %v2201 = vshrl.u32 683565275, %v2200
        %v2202 = vshll.u32 683565275, %v2199
        %v2203 = vshrl.u32 2475754826, %v2200
        %v2204 = vor.u32 %v2202, %v2203
        %v2205 = vshll.u32 2475754826, %v2199
        %v2206 = vshrl.u32 2131351028, %v2200
        %v2207 = vor.u32 %v2205, %v2206
        %v2208 = vshll.u32 2131351028, %v2199
        %v2209 = vshrl.u32 2102212464, %v2200
        %v2210 = vor.u32 %v2208, %v2209
        %v2211 = vshll.u32 2102212464, %v2199
        %v2212 = vshrl.u32 920167782, %v2200
        %v2213 = vor.u32 %v2211, %v2212
        %v2214 = vshll.u32 920167782, %v2199
        %v2215 = vshrl.u32 1326507024, %v2200
        %v2216 = vor.u32 %v2214, %v2215
        %vm2217 = vcmp.lt.s32.totalorder %v2198, 1
        %vm2218 = vcmp.lt.s32.totalorder %v2198, 2
        %vm2219 = vcmp.lt.s32.totalorder %v2198, 3
        %vm2220 = vcmp.lt.s32.totalorder %v2198, 4
        %v2221 = vsel %vm2217, %v2201, %v2204
        %v2222 = vsel %vm2220, %v2210, 2102212464
        %v2223 = vsel %vm2219, %v2207, %v2222
        %v2224 = vsel %vm2218, %v2221, %v2223
        %v2225 = vsel %vm2217, %v2204, %v2207
        %v2226 = vsel %vm2220, %v2213, 920167782
        %v2227 = vsel %vm2219, %v2210, %v2226
        %v2228 = vsel %vm2218, %v2225, %v2227
        %v2229 = vsel %vm2217, %v2207, %v2210
        %v2230 = vsel %vm2220, %v2216, 1326507024
        %v2231 = vsel %vm2219, %v2213, %v2230
        %v2232 = vsel %vm2218, %v2229, %v2231
        %v2233 = vshll.u32 %v2193, 8
        %v2234 = vand.u32 %v2233, 65535
        %v2235 = vshrl.u32 %v2233, 16
        %v2236 = vand.u32 %v2232, 65535
        %v2237 = vshrl.u32 %v2232, 16
        %v2238 = vmul.u32 %v2234, %v2236
        %v2239 = vmul.u32 %v2234, %v2237
        %v2240 = vmul.u32 %v2235, %v2236
        %v2241 = vmul.u32 %v2235, %v2237
        %v2242 = vshll.u32 %v2239, 16
        %v2243 = vshrl.u32 %v2239, 16
        %v2244 = vshll.u32 %v2240, 16
        %v2245 = vshrl.u32 %v2240, 16
        %vm2246 = vc.u32 %v2238, %v2242
        %v2247 = vsel %vm2246, 1, 0
        %v2248 = vadd.s32 %v2238, %v2242
        %v2249 = vadd.s32 %v2241, %v2247
        %vm2250 = vc.u32 %v2248, %v2244
        %v2251 = vsel %vm2250, 1, 0
        %v2252 = vadd.s32 %v2248, %v2244
        %v2253 = vadd.s32 %v2249, %v2251
        %v2254 = vadd.s32 %v2253, %v2243
        %v2255 = vadd.s32 %v2254, %v2245
        %v2256 = vand.u32 %v2233, 65535
        %v2257 = vshrl.u32 %v2233, 16
        %v2258 = vand.u32 %v2228, 65535
        %v2259 = vshrl.u32 %v2228, 16
        %v2260 = vmul.u32 %v2256, %v2258
        %v2261 = vmul.u32 %v2256, %v2259
        %v2262 = vmul.u32 %v2257, %v2258
        %v2263 = vmul.u32 %v2257, %v2259
        %v2264 = vshll.u32 %v2261, 16
        %v2265 = vshrl.u32 %v2261, 16
        %v2266 = vshll.u32 %v2262, 16
        %v2267 = vshrl.u32 %v2262, 16
        %vm2268 = vc.u32 %v2260, %v2264
        %v2269 = vsel %vm2268, 1, 0
        %v2270 = vadd.s32 %v2260, %v2264
        %v2271 = vadd.s32 %v2263, %v2269
        %vm2272 = vc.u32 %v2270, %v2266
        %v2273 = vsel %vm2272, 1, 0
        %v2274 = vadd.s32 %v2270, %v2266
        %v2275 = vadd.s32 %v2271, %v2273
        %v2276 = vadd.s32 %v2275, %v2265
        %v2277 = vadd.s32 %v2276, %v2267
        %v2278 = vmul.u32 %v2233, %v2224
        %v2279 = vadd.s32 %v2255, %v2274
        %vm2280 = vc.u32 %v2255, %v2274
        %v2281 = vadd.s32 %v2277, 1
        %v2282 = vsel %vm2280, %v2281, %v2277
        %v2283 = vadd.s32 %v2278, %v2282
        %v2284 = vadd.s32 %v2283, 536870912
        %v2285 = vshrl.u32 %v2284, 30
        %v2286 = vshll.u32 %v2285, 30
        %v2287 = vsub.s32 %v2283, %v2286
        %vm2288 = vcmp.lt.s32.totalorder %v2287, 0
        %v2289 = vsub.s32 0, %v2287
        %v2290 = vsel %vm2288, %v2289, %v2287
        %v2291 = vclz %v2290
        %v2292 = vsub.s32 %v2291, 2
        %vm2293 = vcmp.gt.s32.totalorder 0, %v2292
        %v2294 = vsel %vm2293, 0, %v2292
        %v2295 = vsub.s32 32, %v2294
        %v2296 = vshll.u32 %v2287, %v2294
        %v2297 = vshrl.u32 %v2279, %v2295
        %v2298 = vor.u32 %v2296, %v2297
        %v2299 = vsub.s32 4294967266, %v2294
        %v2300 = vadd.s32 %v2299, 127
        %v2301 = vshll.u32 %v2300, 23
        %v2302 = vor.u32 4788187, %v2301
        %v2303 = vand.u32 2147483647, %v2302
        %v2305 = vcvt.s32.f32 %v2298
        %v2306 = vmul.f32 %v2305, %v2303
        %v2307 = vxor.u32 %v2306, 2147483648
        %v2308 = vsel %vm2187, %v2307, %v2306
        %v2309 = vsub.s32 4, %v2285
        %v2310 = vsel %vm2187, %v2309, %v2285
        %v2311 = vsel %vm2186, %v1409, %v2308
        %v2312 = vsel %vm2186, 0, %v2310
        %v2313 = vmul.f32 %v2311, %v2311
        %v2314 = vmul.f32 %v2313, -0.001358992
        %v2315 = vadd.f32 %v2314, 0.041655596
        %v2316 = vmul.f32 %v2313, %v2315
        %v2317 = vadd.f32 %v2316, -0.4999988
        %v2318 = vmul.f32 %v2313, %v2317
        %v2319 = vadd.f32 1.0, %v2318
        %v2320 = vmul.f32 %v2311, %v2311
        %v2321 = vmul.f32 %v2320, -0.00019511016
        %v2322 = vadd.f32 %v2321, 0.008332121
        %v2323 = vmul.f32 %v2320, %v2322
        %v2324 = vadd.f32 %v2323, -0.16666654
        %v2325 = vmul.f32 %v2320, %v2324
        %v2326 = vadd.f32 %v2325, 1.0
        %v2327 = vmul.f32 %v2326, %v2311
        %vm2328 = vweird.f32 %v1409
        %v2329 = vadd.s32 %v2312, 3
        %v2330 = vand.u32 %v2329, 3
        %vm2331 = vcmp.lt.s32.totalorder %v2330, 2
        %vm2332 = vcmp.eq.s32.totalorder %v2330, 0
        %v2333 = vxor.u32 %v2327, 2147483648
        %v2334 = vsel %vm2332, %v2319, %v2333
        %vm2335 = vcmp.eq.s32.totalorder %v2330, 2
        %v2336 = vxor.u32 %v2319, 2147483648
        %v2337 = vsel %vm2335, %v2336, %v2327
        %v2338 = vsel %vm2331, %v2334, %v2337
        %v2339 = vsel %vm2328, nan, %v2338
        %v2340 = vand.u32 2147483647, %v1395
        %vm2341 = vcmp.le.f32.partialorder %v2340, 0.7853982
        %vm2342 = vcmp.lt.s32.totalorder %v1395, 0
        %v2343 = vand.u32 %v1395, 2139095040
        %v2344 = vshrl.u32 %v2343, 23
        %v2345 = vsub.s32 %v2344, 127
        %v2346 = vand.u32 2147483647, %v1395
        %v2347 = vand.u32 %v2346, 8388607
        %v2348 = vor.u32 %v2347, 8388608
        %v2349 = vsub.s32 0, %v2348
        %v2350 = vadd.s32 %v2345, 1
        %vm2351 = vcmp.gt.s32.totalorder %v2350, 0
        %v2352 = vsel %vm2351, %v2350, 0
        %v2353 = vshrl.u32 %v2352, 5
        %v2354 = vand.u32 %v2352, 31
        %v2355 = vsub.s32 32, %v2354
        %v2356 = vshrl.u32 683565275, %v2355
        %v2357 = vshll.u32 683565275, %v2354
        %v2358 = vshrl.u32 2475754826, %v2355
        %v2359 = vor.u32 %v2357, %v2358
        %v2360 = vshll.u32 2475754826, %v2354
        %v2361 = vshrl.u32 2131351028, %v2355
        %v2362 = vor.u32 %v2360, %v2361
        %v2363 = vshll.u32 2131351028, %v2354
        %v2364 = vshrl.u32 2102212464, %v2355
        %v2365 = vor.u32 %v2363, %v2364
        %v2366 = vshll.u32 2102212464, %v2354
        %v2367 = vshrl.u32 920167782, %v2355
        %v2368 = vor.u32 %v2366, %v2367
        %v2369 = vshll.u32 920167782, %v2354
        %v2370 = vshrl.u32 1326507024, %v2355
        %v2371 = vor.u32 %v2369, %v2370
        %vm2372 = vcmp.lt.s32.totalorder %v2353, 1
        %vm2373 = vcmp.lt.s32.totalorder %v2353, 2
        %vm2374 = vcmp.lt.s32.totalorder %v2353, 3
        %vm2375 = vcmp.lt.s32.totalorder %v2353, 4
        %v2376 = vsel %vm2372, %v2356, %v2359
        %v2377 = vsel %vm2375, %v2365, 2102212464
        %v2378 = vsel %vm2374, %v2362, %v2377
        %v2379 = vsel %vm2373, %v2376, %v2378
        %v2380 = vsel %vm2372, %v2359, %v2362
        %v2381 = vsel %vm2375, %v2368, 920167782
        %v2382 = vsel %vm2374, %v2365, %v2381
        %v2383 = vsel %vm2373, %v2380, %v2382
        %v2384 = vsel %vm2372, %v2362, %v2365
        %v2385 = vsel %vm2375, %v2371, 1326507024
        %v2386 = vsel %vm2374, %v2368, %v2385
        %v2387 = vsel %vm2373, %v2384, %v2386
        %v2388 = vshll.u32 %v2348, 8
        %v2389 = vand.u32 %v2388, 65535
        %v2390 = vshrl.u32 %v2388, 16
        %v2391 = vand.u32 %v2387, 65535
        %v2392 = vshrl.u32 %v2387, 16
        %v2393 = vmul.u32 %v2389, %v2391
        %v2394 = vmul.u32 %v2389, %v2392
        %v2395 = vmul.u32 %v2390, %v2391
        %v2396 = vmul.u32 %v2390, %v2392
        %v2397 = vshll.u32 %v2394, 16
        %v2398 = vshrl.u32 %v2394, 16
        %v2399 = vshll.u32 %v2395, 16
        %v2400 = vshrl.u32 %v2395, 16
        %vm2401 = vc.u32 %v2393, %v2397
        %v2402 = vsel %vm2401, 1, 0
        %v2403 = vadd.s32 %v2393, %v2397
        %v2404 = vadd.s32 %v2396, %v2402
        %vm2405 = vc.u32 %v2403, %v2399
        %v2406 = vsel %vm2405, 1, 0
        %v2407 = vadd.s32 %v2403, %v2399
        %v2408 = vadd.s32 %v2404, %v2406
        %v2409 = vadd.s32 %v2408, %v2398
        %v2410 = vadd.s32 %v2409, %v2400
        %v2411 = vand.u32 %v2388, 65535
        %v2412 = vshrl.u32 %v2388, 16
        %v2413 = vand.u32 %v2383, 65535
        %v2414 = vshrl.u32 %v2383, 16
        %v2415 = vmul.u32 %v2411, %v2413
        %v2416 = vmul.u32 %v2411, %v2414
        %v2417 = vmul.u32 %v2412, %v2413
        %v2418 = vmul.u32 %v2412, %v2414
        %v2419 = vshll.u32 %v2416, 16
        %v2420 = vshrl.u32 %v2416, 16
        %v2421 = vshll.u32 %v2417, 16
        %v2422 = vshrl.u32 %v2417, 16
        %vm2423 = vc.u32 %v2415, %v2419
        %v2424 = vsel %vm2423, 1, 0
        %v2425 = vadd.s32 %v2415, %v2419
        %v2426 = vadd.s32 %v2418, %v2424
        %vm2427 = vc.u32 %v2425, %v2421
        %v2428 = vsel %vm2427, 1, 0
        %v2429 = vadd.s32 %v2425, %v2421
        %v2430 = vadd.s32 %v2426, %v2428
        %v2431 = vadd.s32 %v2430, %v2420
        %v2432 = vadd.s32 %v2431, %v2422
        %v2433 = vmul.u32 %v2388, %v2379
        %v2434 = vadd.s32 %v2410, %v2429
        %vm2435 = vc.u32 %v2410, %v2429
        %v2436 = vadd.s32 %v2432, 1
        %v2437 = vsel %vm2435, %v2436, %v2432
        %v2438 = vadd.s32 %v2433, %v2437
        %v2439 = vadd.s32 %v2438, 536870912
        %v2440 = vshrl.u32 %v2439, 30
        %v2441 = vshll.u32 %v2440, 30
        %v2442 = vsub.s32 %v2438, %v2441
        %vm2443 = vcmp.lt.s32.totalorder %v2442, 0
        %v2444 = vsub.s32 0, %v2442
        %v2445 = vsel %vm2443, %v2444, %v2442
        %v2446 = vclz %v2445
        %v2447 = vsub.s32 %v2446, 2
        %vm2448 = vcmp.gt.s32.totalorder 0, %v2447
        %v2449 = vsel %vm2448, 0, %v2447
        %v2450 = vsub.s32 32, %v2449
        %v2451 = vshll.u32 %v2442, %v2449
        %v2452 = vshrl.u32 %v2434, %v2450
        %v2453 = vor.u32 %v2451, %v2452
        %v2454 = vsub.s32 4294967266, %v2449
        %v2455 = vadd.s32 %v2454, 127
        %v2456 = vshll.u32 %v2455, 23
        %v2457 = vor.u32 4788187, %v2456
        %v2458 = vand.u32 2147483647, %v2457
        %v2460 = vcvt.s32.f32 %v2453
        %v2461 = vmul.f32 %v2460, %v2458
        %v2462 = vxor.u32 %v2461, 2147483648
        %v2463 = vsel %vm2342, %v2462, %v2461
        %v2464 = vsub.s32 4, %v2440
        %v2465 = vsel %vm2342, %v2464, %v2440
        %v2466 = vsel %vm2341, %v1395, %v2463
        %v2467 = vsel %vm2341, 0, %v2465
        %v2468 = vmul.f32 %v2466, %v2466
        %v2469 = vmul.f32 %v2468, -0.001358992
        %v2470 = vadd.f32 %v2469, 0.041655596
        %v2471 = vmul.f32 %v2468, %v2470
        %v2472 = vadd.f32 %v2471, -0.4999988
        %v2473 = vmul.f32 %v2468, %v2472
        %v2474 = vadd.f32 1.0, %v2473
        %v2475 = vmul.f32 %v2466, %v2466
        %v2476 = vmul.f32 %v2475, -0.00019511016
        %v2477 = vadd.f32 %v2476, 0.008332121
        %v2478 = vmul.f32 %v2475, %v2477
        %v2479 = vadd.f32 %v2478, -0.16666654
        %v2480 = vmul.f32 %v2475, %v2479
        %v2481 = vadd.f32 %v2480, 1.0
        %v2482 = vmul.f32 %v2481, %v2466
        %vm2483 = vweird.f32 %v1395
        %v2484 = vand.u32 %v2467, 3
        %vm2485 = vcmp.lt.s32.totalorder %v2484, 2
        %vm2486 = vcmp.eq.s32.totalorder %v2484, 0
        %v2487 = vxor.u32 %v2482, 2147483648
        %v2488 = vsel %vm2486, %v2474, %v2487
        %vm2489 = vcmp.eq.s32.totalorder %v2484, 2
        %v2490 = vxor.u32 %v2474, 2147483648
        %v2491 = vsel %vm2489, %v2490, %v2482
        %v2492 = vsel %vm2485, %v2488, %v2491
        %v2493 = vsel %vm2483, nan, %v2492
        %v2494 = vand.u32 2147483647, %v1396
        %vm2495 = vcmp.le.f32.partialorder %v2494, 0.7853982
        %vm2496 = vcmp.lt.s32.totalorder %v1396, 0
        %v2497 = vand.u32 %v1396, 2139095040
        %v2498 = vshrl.u32 %v2497, 23
        %v2499 = vsub.s32 %v2498, 127
        %v2500 = vand.u32 2147483647, %v1396
        %v2501 = vand.u32 %v2500, 8388607
        %v2502 = vor.u32 %v2501, 8388608
        %v2503 = vsub.s32 0, %v2502
        %v2504 = vadd.s32 %v2499, 1
        %vm2505 = vcmp.gt.s32.totalorder %v2504, 0
        %v2506 = vsel %vm2505, %v2504, 0
        %v2507 = vshrl.u32 %v2506, 5
        %v2508 = vand.u32 %v2506, 31
        %v2509 = vsub.s32 32, %v2508
        %v2510 = vshrl.u32 683565275, %v2509
        %v2511 = vshll.u32 683565275, %v2508
        %v2512 = vshrl.u32 2475754826, %v2509
        %v2513 = vor.u32 %v2511, %v2512
        %v2514 = vshll.u32 2475754826, %v2508
        %v2515 = vshrl.u32 2131351028, %v2509
        %v2516 = vor.u32 %v2514, %v2515
        %v2517 = vshll.u32 2131351028, %v2508
        %v2518 = vshrl.u32 2102212464, %v2509
        %v2519 = vor.u32 %v2517, %v2518
        %v2520 = vshll.u32 2102212464, %v2508
        %v2521 = vshrl.u32 920167782, %v2509
        %v2522 = vor.u32 %v2520, %v2521
        %v2523 = vshll.u32 920167782, %v2508
        %v2524 = vshrl.u32 1326507024, %v2509
        %v2525 = vor.u32 %v2523, %v2524
        %vm2526 = vcmp.lt.s32.totalorder %v2507, 1
        %vm2527 = vcmp.lt.s32.totalorder %v2507, 2
        %vm2528 = vcmp.lt.s32.totalorder %v2507, 3
        %vm2529 = vcmp.lt.s32.totalorder %v2507, 4
        %v2530 = vsel %vm2526, %v2510, %v2513
        %v2531 = vsel %vm2529, %v2519, 2102212464
        %v2532 = vsel %vm2528, %v2516, %v2531
        %v2533 = vsel %vm2527, %v2530, %v2532
        %v2534 = vsel %vm2526, %v2513, %v2516
        %v2535 = vsel %vm2529, %v2522, 920167782
        %v2536 = vsel %vm2528, %v2519, %v2535
        %v2537 = vsel %vm2527, %v2534, %v2536
        %v2538 = vsel %vm2526, %v2516, %v2519
        %v2539 = vsel %vm2529, %v2525, 1326507024
        %v2540 = vsel %vm2528, %v2522, %v2539
        %v2541 = vsel %vm2527, %v2538, %v2540
        %v2542 = vshll.u32 %v2502, 8
        %v2543 = vand.u32 %v2542, 65535
        %v2544 = vshrl.u32 %v2542, 16
        %v2545 = vand.u32 %v2541, 65535
        %v2546 = vshrl.u32 %v2541, 16
        %v2547 = vmul.u32 %v2543, %v2545
        %v2548 = vmul.u32 %v2543, %v2546
        %v2549 = vmul.u32 %v2544, %v2545
        %v2550 = vmul.u32 %v2544, %v2546
        %v2551 = vshll.u32 %v2548, 16
        %v2552 = vshrl.u32 %v2548, 16
        %v2553 = vshll.u32 %v2549, 16
        %v2554 = vshrl.u32 %v2549, 16
        %vm2555 = vc.u32 %v2547, %v2551
        %v2556 = vsel %vm2555, 1, 0
        %v2557 = vadd.s32 %v2547, %v2551
        %v2558 = vadd.s32 %v2550, %v2556
        %vm2559 = vc.u32 %v2557, %v2553
        %v2560 = vsel %vm2559, 1, 0
        %v2561 = vadd.s32 %v2557, %v2553
        %v2562 = vadd.s32 %v2558, %v2560
        %v2563 = vadd.s32 %v2562, %v2552
        %v2564 = vadd.s32 %v2563, %v2554
        %v2565 = vand.u32 %v2542, 65535
        %v2566 = vshrl.u32 %v2542, 16
        %v2567 = vand.u32 %v2537, 65535
        %v2568 = vshrl.u32 %v2537, 16
        %v2569 = vmul.u32 %v2565, %v2567
        %v2570 = vmul.u32 %v2565, %v2568
        %v2571 = vmul.u32 %v2566, %v2567
        %v2572 = vmul.u32 %v2566, %v2568
        %v2573 = vshll.u32 %v2570, 16
        %v2574 = vshrl.u32 %v2570, 16
        %v2575 = vshll.u32 %v2571, 16
        %v2576 = vshrl.u32 %v2571, 16
        %vm2577 = vc.u32 %v2569, %v2573
        %v2578 = vsel %vm2577, 1, 0
        %v2579 = vadd.s32 %v2569, %v2573
        %v2580 = vadd.s32 %v2572, %v2578
        %vm2581 = vc.u32 %v2579, %v2575
        %v2582 = vsel %vm2581, 1, 0
        %v2583 = vadd.s32 %v2579, %v2575
        %v2584 = vadd.s32 %v2580, %v2582
        %v2585 = vadd.s32 %v2584, %v2574
        %v2586 = vadd.s32 %v2585, %v2576
        %v2587 = vmul.u32 %v2542, %v2533
        %v2588 = vadd.s32 %v2564, %v2583
        %vm2589 = vc.u32 %v2564, %v2583
        %v2590 = vadd.s32 %v2586, 1
        %v2591 = vsel %vm2589, %v2590, %v2586
        %v2592 = vadd.s32 %v2587, %v2591
        %v2593 = vadd.s32 %v2592, 536870912
        %v2594 = vshrl.u32 %v2593, 30
        %v2595 = vshll.u32 %v2594, 30
        %v2596 = vsub.s32 %v2592, %v2595
        %vm2597 = vcmp.lt.s32.totalorder %v2596, 0
        %v2598 = vsub.s32 0, %v2596
        %v2599 = vsel %vm2597, %v2598, %v2596
        %v2600 = vclz %v2599
        %v2601 = vsub.s32 %v2600, 2
        %vm2602 = vcmp.gt.s32.totalorder 0, %v2601
        %v2603 = vsel %vm2602, 0, %v2601
        %v2604 = vsub.s32 32, %v2603
        %v2605 = vshll.u32 %v2596, %v2603
        %v2606 = vshrl.u32 %v2588, %v2604
        %v2607 = vor.u32 %v2605, %v2606
        %v2608 = vsub.s32 4294967266, %v2603
        %v2609 = vadd.s32 %v2608, 127
        %v2610 = vshll.u32 %v2609, 23
        %v2611 = vor.u32 4788187, %v2610
        %v2612 = vand.u32 2147483647, %v2611
        %v2614 = vcvt.s32.f32 %v2607
        %v2615 = vmul.f32 %v2614, %v2612
        %v2616 = vxor.u32 %v2615, 2147483648
        %v2617 = vsel %vm2496, %v2616, %v2615
        %v2618 = vsub.s32 4, %v2594
        %v2619 = vsel %vm2496, %v2618, %v2594
        %v2620 = vsel %vm2495, %v1396, %v2617
        %v2621 = vsel %vm2495, 0, %v2619
        %v2622 = vmul.f32 %v2620, %v2620
        %v2623 = vmul.f32 %v2622, -0.001358992
        %v2624 = vadd.f32 %v2623, 0.041655596
        %v2625 = vmul.f32 %v2622, %v2624
        %v2626 = vadd.f32 %v2625, -0.4999988
        %v2627 = vmul.f32 %v2622, %v2626
        %v2628 = vadd.f32 1.0, %v2627
        %v2629 = vmul.f32 %v2620, %v2620
        %v2630 = vmul.f32 %v2629, -0.00019511016
        %v2631 = vadd.f32 %v2630, 0.008332121
        %v2632 = vmul.f32 %v2629, %v2631
        %v2633 = vadd.f32 %v2632, -0.16666654
        %v2634 = vmul.f32 %v2629, %v2633
        %v2635 = vadd.f32 %v2634, 1.0
        %v2636 = vmul.f32 %v2635, %v2620
        %vm2637 = vweird.f32 %v1396
        %v2638 = vand.u32 %v2621, 3
        %vm2639 = vcmp.lt.s32.totalorder %v2638, 2
        %vm2640 = vcmp.eq.s32.totalorder %v2638, 0
        %v2641 = vxor.u32 %v2636, 2147483648
        %v2642 = vsel %vm2640, %v2628, %v2641
        %vm2643 = vcmp.eq.s32.totalorder %v2638, 2
        %v2644 = vxor.u32 %v2628, 2147483648
        %v2645 = vsel %vm2643, %v2644, %v2636
        %v2646 = vsel %vm2639, %v2642, %v2645
        %v2647 = vsel %vm2637, nan, %v2646
        %v2648 = vand.u32 2147483647, %v1397
        %vm2649 = vcmp.le.f32.partialorder %v2648, 0.7853982
        %vm2650 = vcmp.lt.s32.totalorder %v1397, 0
        %v2651 = vand.u32 %v1397, 2139095040
        %v2652 = vshrl.u32 %v2651, 23
        %v2653 = vsub.s32 %v2652, 127
        %v2654 = vand.u32 2147483647, %v1397
        %v2655 = vand.u32 %v2654, 8388607
        %v2656 = vor.u32 %v2655, 8388608
        %v2657 = vsub.s32 0, %v2656
        %v2658 = vadd.s32 %v2653, 1
        %vm2659 = vcmp.gt.s32.totalorder %v2658, 0
        %v2660 = vsel %vm2659, %v2658, 0
        %v2661 = vshrl.u32 %v2660, 5
        %v2662 = vand.u32 %v2660, 31
        %v2663 = vsub.s32 32, %v2662
        %v2664 = vshrl.u32 683565275, %v2663
        %v2665 = vshll.u32 683565275, %v2662
        %v2666 = vshrl.u32 2475754826, %v2663
        %v2667 = vor.u32 %v2665, %v2666
        %v2668 = vshll.u32 2475754826, %v2662
        %v2669 = vshrl.u32 2131351028, %v2663
        %v2670 = vor.u32 %v2668, %v2669
        %v2671 = vshll.u32 2131351028, %v2662
        %v2672 = vshrl.u32 2102212464, %v2663
        %v2673 = vor.u32 %v2671, %v2672
        %v2674 = vshll.u32 2102212464, %v2662
        %v2675 = vshrl.u32 920167782, %v2663
        %v2676 = vor.u32 %v2674, %v2675
        %v2677 = vshll.u32 920167782, %v2662
        %v2678 = vshrl.u32 1326507024, %v2663
        %v2679 = vor.u32 %v2677, %v2678
        %vm2680 = vcmp.lt.s32.totalorder %v2661, 1
        %vm2681 = vcmp.lt.s32.totalorder %v2661, 2
        %vm2682 = vcmp.lt.s32.totalorder %v2661, 3
        %vm2683 = vcmp.lt.s32.totalorder %v2661, 4
        %v2684 = vsel %vm2680, %v2664, %v2667
        %v2685 = vsel %vm2683, %v2673, 2102212464
        %v2686 = vsel %vm2682, %v2670, %v2685
        %v2687 = vsel %vm2681, %v2684, %v2686
        %v2688 = vsel %vm2680, %v2667, %v2670
        %v2689 = vsel %vm2683, %v2676, 920167782
        %v2690 = vsel %vm2682, %v2673, %v2689
        %v2691 = vsel %vm2681, %v2688, %v2690
        %v2692 = vsel %vm2680, %v2670, %v2673
        %v2693 = vsel %vm2683, %v2679, 1326507024
        %v2694 = vsel %vm2682, %v2676, %v2693
        %v2695 = vsel %vm2681, %v2692, %v2694
        %v2696 = vshll.u32 %v2656, 8
        %v2697 = vand.u32 %v2696, 65535
        %v2698 = vshrl.u32 %v2696, 16
        %v2699 = vand.u32 %v2695, 65535
        %v2700 = vshrl.u32 %v2695, 16
        %v2701 = vmul.u32 %v2697, %v2699
        %v2702 = vmul.u32 %v2697, %v2700
        %v2703 = vmul.u32 %v2698, %v2699
        %v2704 = vmul.u32 %v2698, %v2700
        %v2705 = vshll.u32 %v2702, 16
        %v2706 = vshrl.u32 %v2702, 16
        %v2707 = vshll.u32 %v2703, 16
        %v2708 = vshrl.u32 %v2703, 16
        %vm2709 = vc.u32 %v2701, %v2705
        %v2710 = vsel %vm2709, 1, 0
        %v2711 = vadd.s32 %v2701, %v2705
        %v2712 = vadd.s32 %v2704, %v2710
        %vm2713 = vc.u32 %v2711, %v2707
        %v2714 = vsel %vm2713, 1, 0
        %v2715 = vadd.s32 %v2711, %v2707
        %v2716 = vadd.s32 %v2712, %v2714
        %v2717 = vadd.s32 %v2716, %v2706
        %v2718 = vadd.s32 %v2717, %v2708
        %v2719 = vand.u32 %v2696, 65535
        %v2720 = vshrl.u32 %v2696, 16
        %v2721 = vand.u32 %v2691, 65535
        %v2722 = vshrl.u32 %v2691, 16
        %v2723 = vmul.u32 %v2719, %v2721
        %v2724 = vmul.u32 %v2719, %v2722
        %v2725 = vmul.u32 %v2720, %v2721
        %v2726 = vmul.u32 %v2720, %v2722
        %v2727 = vshll.u32 %v2724, 16
        %v2728 = vshrl.u32 %v2724, 16
        %v2729 = vshll.u32 %v2725, 16
        %v2730 = vshrl.u32 %v2725, 16
        %vm2731 = vc.u32 %v2723, %v2727
        %v2732 = vsel %vm2731, 1, 0
        %v2733 = vadd.s32 %v2723, %v2727
        %v2734 = vadd.s32 %v2726, %v2732
        %vm2735 = vc.u32 %v2733, %v2729
        %v2736 = vsel %vm2735, 1, 0
        %v2737 = vadd.s32 %v2733, %v2729
        %v2738 = vadd.s32 %v2734, %v2736
        %v2739 = vadd.s32 %v2738, %v2728
        %v2740 = vadd.s32 %v2739, %v2730
        %v2741 = vmul.u32 %v2696, %v2687
        %v2742 = vadd.s32 %v2718, %v2737
        %vm2743 = vc.u32 %v2718, %v2737
        %v2744 = vadd.s32 %v2740, 1
        %v2745 = vsel %vm2743, %v2744, %v2740
        %v2746 = vadd.s32 %v2741, %v2745
        %v2747 = vadd.s32 %v2746, 536870912
        %v2748 = vshrl.u32 %v2747, 30
        %v2749 = vshll.u32 %v2748, 30
        %v2750 = vsub.s32 %v2746, %v2749
        %vm2751 = vcmp.lt.s32.totalorder %v2750, 0
        %v2752 = vsub.s32 0, %v2750
        %v2753 = vsel %vm2751, %v2752, %v2750
        %v2754 = vclz %v2753
        %v2755 = vsub.s32 %v2754, 2
        %vm2756 = vcmp.gt.s32.totalorder 0, %v2755
        %v2757 = vsel %vm2756, 0, %v2755
        %v2758 = vsub.s32 32, %v2757
        %v2759 = vshll.u32 %v2750, %v2757
        %v2760 = vshrl.u32 %v2742, %v2758
        %v2761 = vor.u32 %v2759, %v2760
        %v2762 = vsub.s32 4294967266, %v2757
        %v2763 = vadd.s32 %v2762, 127
        %v2764 = vshll.u32 %v2763, 23
        %v2765 = vor.u32 4788187, %v2764
        %v2766 = vand.u32 2147483647, %v2765
        %v2768 = vcvt.s32.f32 %v2761
        %v2769 = vmul.f32 %v2768, %v2766
        %v2770 = vxor.u32 %v2769, 2147483648
        %v2771 = vsel %vm2650, %v2770, %v2769
        %v2772 = vsub.s32 4, %v2748
        %v2773 = vsel %vm2650, %v2772, %v2748
        %v2774 = vsel %vm2649, %v1397, %v2771
        %v2775 = vsel %vm2649, 0, %v2773
        %v2776 = vmul.f32 %v2774, %v2774
        %v2777 = vmul.f32 %v2776, -0.001358992
        %v2778 = vadd.f32 %v2777, 0.041655596
        %v2779 = vmul.f32 %v2776, %v2778
        %v2780 = vadd.f32 %v2779, -0.4999988
        %v2781 = vmul.f32 %v2776, %v2780
        %v2782 = vadd.f32 1.0, %v2781
        %v2783 = vmul.f32 %v2774, %v2774
        %v2784 = vmul.f32 %v2783, -0.00019511016
        %v2785 = vadd.f32 %v2784, 0.008332121
        %v2786 = vmul.f32 %v2783, %v2785
        %v2787 = vadd.f32 %v2786, -0.16666654
        %v2788 = vmul.f32 %v2783, %v2787
        %v2789 = vadd.f32 %v2788, 1.0
        %v2790 = vmul.f32 %v2789, %v2774
        %vm2791 = vweird.f32 %v1397
        %v2792 = vand.u32 %v2775, 3
        %vm2793 = vcmp.lt.s32.totalorder %v2792, 2
        %vm2794 = vcmp.eq.s32.totalorder %v2792, 0
        %v2795 = vxor.u32 %v2790, 2147483648
        %v2796 = vsel %vm2794, %v2782, %v2795
        %vm2797 = vcmp.eq.s32.totalorder %v2792, 2
        %v2798 = vxor.u32 %v2782, 2147483648
        %v2799 = vsel %vm2797, %v2798, %v2790
        %v2800 = vsel %vm2793, %v2796, %v2799
        %v2801 = vsel %vm2791, nan, %v2800
        %v2802 = vand.u32 2147483647, %v1407
        %vm2803 = vcmp.le.f32.partialorder %v2802, 0.7853982
        %vm2804 = vcmp.lt.s32.totalorder %v1407, 0
        %v2805 = vand.u32 %v1407, 2139095040
        %v2806 = vshrl.u32 %v2805, 23
        %v2807 = vsub.s32 %v2806, 127
        %v2808 = vand.u32 2147483647, %v1407
        %v2809 = vand.u32 %v2808, 8388607
        %v2810 = vor.u32 %v2809, 8388608
        %v2811 = vsub.s32 0, %v2810
        %v2812 = vadd.s32 %v2807, 1
        %vm2813 = vcmp.gt.s32.totalorder %v2812, 0
        %v2814 = vsel %vm2813, %v2812, 0
        %v2815 = vshrl.u32 %v2814, 5
        %v2816 = vand.u32 %v2814, 31
        %v2817 = vsub.s32 32, %v2816
        %v2818 = vshrl.u32 683565275, %v2817
        %v2819 = vshll.u32 683565275, %v2816
        %v2820 = vshrl.u32 2475754826, %v2817
        %v2821 = vor.u32 %v2819, %v2820
        %v2822 = vshll.u32 2475754826, %v2816
        %v2823 = vshrl.u32 2131351028, %v2817
        %v2824 = vor.u32 %v2822, %v2823
        %v2825 = vshll.u32 2131351028, %v2816
        %v2826 = vshrl.u32 2102212464, %v2817
        %v2827 = vor.u32 %v2825, %v2826
        %v2828 = vshll.u32 2102212464, %v2816
        %v2829 = vshrl.u32 920167782, %v2817
        %v2830 = vor.u32 %v2828, %v2829
        %v2831 = vshll.u32 920167782, %v2816
        %v2832 = vshrl.u32 1326507024, %v2817
        %v2833 = vor.u32 %v2831, %v2832
        %vm2834 = vcmp.lt.s32.totalorder %v2815, 1
        %vm2835 = vcmp.lt.s32.totalorder %v2815, 2
        %vm2836 = vcmp.lt.s32.totalorder %v2815, 3
        %vm2837 = vcmp.lt.s32.totalorder %v2815, 4
        %v2838 = vsel %vm2834, %v2818, %v2821
        %v2839 = vsel %vm2837, %v2827, 2102212464
        %v2840 = vsel %vm2836, %v2824, %v2839
        %v2841 = vsel %vm2835, %v2838, %v2840
        %v2842 = vsel %vm2834, %v2821, %v2824
        %v2843 = vsel %vm2837, %v2830, 920167782
        %v2844 = vsel %vm2836, %v2827, %v2843
        %v2845 = vsel %vm2835, %v2842, %v2844
        %v2846 = vsel %vm2834, %v2824, %v2827
        %v2847 = vsel %vm2837, %v2833, 1326507024
        %v2848 = vsel %vm2836, %v2830, %v2847
        %v2849 = vsel %vm2835, %v2846, %v2848
        %v2850 = vshll.u32 %v2810, 8
        %v2851 = vand.u32 %v2850, 65535
        %v2852 = vshrl.u32 %v2850, 16
        %v2853 = vand.u32 %v2849, 65535
        %v2854 = vshrl.u32 %v2849, 16
        %v2855 = vmul.u32 %v2851, %v2853
        %v2856 = vmul.u32 %v2851, %v2854
        %v2857 = vmul.u32 %v2852, %v2853
        %v2858 = vmul.u32 %v2852, %v2854
        %v2859 = vshll.u32 %v2856, 16
        %v2860 = vshrl.u32 %v2856, 16
        %v2861 = vshll.u32 %v2857, 16
        %v2862 = vshrl.u32 %v2857, 16
        %vm2863 = vc.u32 %v2855, %v2859
        %v2864 = vsel %vm2863, 1, 0
        %v2865 = vadd.s32 %v2855, %v2859
        %v2866 = vadd.s32 %v2858, %v2864
        %vm2867 = vc.u32 %v2865, %v2861
        %v2868 = vsel %vm2867, 1, 0
        %v2869 = vadd.s32 %v2865, %v2861
        %v2870 = vadd.s32 %v2866, %v2868
        %v2871 = vadd.s32 %v2870, %v2860
        %v2872 = vadd.s32 %v2871, %v2862
        %v2873 = vand.u32 %v2850, 65535
        %v2874 = vshrl.u32 %v2850, 16
        %v2875 = vand.u32 %v2845, 65535
        %v2876 = vshrl.u32 %v2845, 16
        %v2877 = vmul.u32 %v2873, %v2875
        %v2878 = vmul.u32 %v2873, %v2876
        %v2879 = vmul.u32 %v2874, %v2875
        %v2880 = vmul.u32 %v2874, %v2876
        %v2881 = vshll.u32 %v2878, 16
        %v2882 = vshrl.u32 %v2878, 16
        %v2883 = vshll.u32 %v2879, 16
        %v2884 = vshrl.u32 %v2879, 16
        %vm2885 = vc.u32 %v2877, %v2881
        %v2886 = vsel %vm2885, 1, 0
        %v2887 = vadd.s32 %v2877, %v2881
        %v2888 = vadd.s32 %v2880, %v2886
        %vm2889 = vc.u32 %v2887, %v2883
        %v2890 = vsel %vm2889, 1, 0
        %v2891 = vadd.s32 %v2887, %v2883
        %v2892 = vadd.s32 %v2888, %v2890
        %v2893 = vadd.s32 %v2892, %v2882
        %v2894 = vadd.s32 %v2893, %v2884
        %v2895 = vmul.u32 %v2850, %v2841
        %v2896 = vadd.s32 %v2872, %v2891
        %vm2897 = vc.u32 %v2872, %v2891
        %v2898 = vadd.s32 %v2894, 1
        %v2899 = vsel %vm2897, %v2898, %v2894
        %v2900 = vadd.s32 %v2895, %v2899
        %v2901 = vadd.s32 %v2900, 536870912
        %v2902 = vshrl.u32 %v2901, 30
        %v2903 = vshll.u32 %v2902, 30
        %v2904 = vsub.s32 %v2900, %v2903
        %vm2905 = vcmp.lt.s32.totalorder %v2904, 0
        %v2906 = vsub.s32 0, %v2904
        %v2907 = vsel %vm2905, %v2906, %v2904
        %v2908 = vclz %v2907
        %v2909 = vsub.s32 %v2908, 2
        %vm2910 = vcmp.gt.s32.totalorder 0, %v2909
        %v2911 = vsel %vm2910, 0, %v2909
        %v2912 = vsub.s32 32, %v2911
        %v2913 = vshll.u32 %v2904, %v2911
        %v2914 = vshrl.u32 %v2896, %v2912
        %v2915 = vor.u32 %v2913, %v2914
        %v2916 = vsub.s32 4294967266, %v2911
        %v2917 = vadd.s32 %v2916, 127
        %v2918 = vshll.u32 %v2917, 23
        %v2919 = vor.u32 4788187, %v2918
        %v2920 = vand.u32 2147483647, %v2919
        %v2922 = vcvt.s32.f32 %v2915
        %v2923 = vmul.f32 %v2922, %v2920
        %v2924 = vxor.u32 %v2923, 2147483648
        %v2925 = vsel %vm2804, %v2924, %v2923
        %v2926 = vsub.s32 4, %v2902
        %v2927 = vsel %vm2804, %v2926, %v2902
        %v2928 = vsel %vm2803, %v1407, %v2925
        %v2929 = vsel %vm2803, 0, %v2927
        %v2930 = vmul.f32 %v2928, %v2928
        %v2931 = vmul.f32 %v2930, -0.001358992
        %v2932 = vadd.f32 %v2931, 0.041655596
        %v2933 = vmul.f32 %v2930, %v2932
        %v2934 = vadd.f32 %v2933, -0.4999988
        %v2935 = vmul.f32 %v2930, %v2934
        %v2936 = vadd.f32 1.0, %v2935
        %v2937 = vmul.f32 %v2928, %v2928
        %v2938 = vmul.f32 %v2937, -0.00019511016
        %v2939 = vadd.f32 %v2938, 0.008332121
        %v2940 = vmul.f32 %v2937, %v2939
        %v2941 = vadd.f32 %v2940, -0.16666654
        %v2942 = vmul.f32 %v2937, %v2941
        %v2943 = vadd.f32 %v2942, 1.0
        %v2944 = vmul.f32 %v2943, %v2928
        %vm2945 = vweird.f32 %v1407
        %v2946 = vand.u32 %v2929, 3
        %vm2947 = vcmp.lt.s32.totalorder %v2946, 2
        %vm2948 = vcmp.eq.s32.totalorder %v2946, 0
        %v2949 = vxor.u32 %v2944, 2147483648
        %v2950 = vsel %vm2948, %v2936, %v2949
        %vm2951 = vcmp.eq.s32.totalorder %v2946, 2
        %v2952 = vxor.u32 %v2936, 2147483648
        %v2953 = vsel %vm2951, %v2952, %v2944
        %v2954 = vsel %vm2947, %v2950, %v2953
        %v2955 = vsel %vm2945, nan, %v2954
        %v2956 = vand.u32 2147483647, %v1408
        %vm2957 = vcmp.le.f32.partialorder %v2956, 0.7853982
        %vm2958 = vcmp.lt.s32.totalorder %v1408, 0
        %v2959 = vand.u32 %v1408, 2139095040
        %v2960 = vshrl.u32 %v2959, 23
        %v2961 = vsub.s32 %v2960, 127
        %v2962 = vand.u32 2147483647, %v1408
        %v2963 = vand.u32 %v2962, 8388607
        %v2964 = vor.u32 %v2963, 8388608
        %v2965 = vsub.s32 0, %v2964
        %v2966 = vadd.s32 %v2961, 1
        %vm2967 = vcmp.gt.s32.totalorder %v2966, 0
        %v2968 = vsel %vm2967, %v2966, 0
        %v2969 = vshrl.u32 %v2968, 5
        %v2970 = vand.u32 %v2968, 31
        %v2971 = vsub.s32 32, %v2970
        %v2972 = vshrl.u32 683565275, %v2971
        %v2973 = vshll.u32 683565275, %v2970
        %v2974 = vshrl.u32 2475754826, %v2971
        %v2975 = vor.u32 %v2973, %v2974
        %v2976 = vshll.u32 2475754826, %v2970
        %v2977 = vshrl.u32 2131351028, %v2971
        %v2978 = vor.u32 %v2976, %v2977
        %v2979 = vshll.u32 2131351028, %v2970
        %v2980 = vshrl.u32 2102212464, %v2971
        %v2981 = vor.u32 %v2979, %v2980
        %v2982 = vshll.u32 2102212464, %v2970
        %v2983 = vshrl.u32 920167782, %v2971
        %v2984 = vor.u32 %v2982, %v2983
        %v2985 = vshll.u32 920167782, %v2970
        %v2986 = vshrl.u32 1326507024, %v2971
        %v2987 = vor.u32 %v2985, %v2986
        %vm2988 = vcmp.lt.s32.totalorder %v2969, 1
        %vm2989 = vcmp.lt.s32.totalorder %v2969, 2
        %vm2990 = vcmp.lt.s32.totalorder %v2969, 3
        %vm2991 = vcmp.lt.s32.totalorder %v2969, 4
        %v2992 = vsel %vm2988, %v2972, %v2975
        %v2993 = vsel %vm2991, %v2981, 2102212464
        %v2994 = vsel %vm2990, %v2978, %v2993
        %v2995 = vsel %vm2989, %v2992, %v2994
        %v2996 = vsel %vm2988, %v2975, %v2978
        %v2997 = vsel %vm2991, %v2984, 920167782
        %v2998 = vsel %vm2990, %v2981, %v2997
        %v2999 = vsel %vm2989, %v2996, %v2998
        %v3000 = vsel %vm2988, %v2978, %v2981
        %v3001 = vsel %vm2991, %v2987, 1326507024
        %v3002 = vsel %vm2990, %v2984, %v3001
        %v3003 = vsel %vm2989, %v3000, %v3002
        %v3004 = vshll.u32 %v2964, 8
        %v3005 = vand.u32 %v3004, 65535
        %v3006 = vshrl.u32 %v3004, 16
        %v3007 = vand.u32 %v3003, 65535
        %v3008 = vshrl.u32 %v3003, 16
        %v3009 = vmul.u32 %v3005, %v3007
        %v3010 = vmul.u32 %v3005, %v3008
        %v3011 = vmul.u32 %v3006, %v3007
        %v3012 = vmul.u32 %v3006, %v3008
        %v3013 = vshll.u32 %v3010, 16
        %v3014 = vshrl.u32 %v3010, 16
        %v3015 = vshll.u32 %v3011, 16
        %v3016 = vshrl.u32 %v3011, 16
        %vm3017 = vc.u32 %v3009, %v3013
        %v3018 = vsel %vm3017, 1, 0
        %v3019 = vadd.s32 %v3009, %v3013
        %v3020 = vadd.s32 %v3012, %v3018
        %vm3021 = vc.u32 %v3019, %v3015
        %v3022 = vsel %vm3021, 1, 0
        %v3023 = vadd.s32 %v3019, %v3015
        %v3024 = vadd.s32 %v3020, %v3022
        %v3025 = vadd.s32 %v3024, %v3014
        %v3026 = vadd.s32 %v3025, %v3016
        %v3027 = vand.u32 %v3004, 65535
        %v3028 = vshrl.u32 %v3004, 16
        %v3029 = vand.u32 %v2999, 65535
        %v3030 = vshrl.u32 %v2999, 16
        %v3031 = vmul.u32 %v3027, %v3029
        %v3032 = vmul.u32 %v3027, %v3030
        %v3033 = vmul.u32 %v3028, %v3029
        %v3034 = vmul.u32 %v3028, %v3030
        %v3035 = vshll.u32 %v3032, 16
        %v3036 = vshrl.u32 %v3032, 16
        %v3037 = vshll.u32 %v3033, 16
        %v3038 = vshrl.u32 %v3033, 16
        %vm3039 = vc.u32 %v3031, %v3035
        %v3040 = vsel %vm3039, 1, 0
        %v3041 = vadd.s32 %v3031, %v3035
        %v3042 = vadd.s32 %v3034, %v3040
        %vm3043 = vc.u32 %v3041, %v3037
        %v3044 = vsel %vm3043, 1, 0
        %v3045 = vadd.s32 %v3041, %v3037
        %v3046 = vadd.s32 %v3042, %v3044
        %v3047 = vadd.s32 %v3046, %v3036
        %v3048 = vadd.s32 %v3047, %v3038
        %v3049 = vmul.u32 %v3004, %v2995
        %v3050 = vadd.s32 %v3026, %v3045
        %vm3051 = vc.u32 %v3026, %v3045
        %v3052 = vadd.s32 %v3048, 1
        %v3053 = vsel %vm3051, %v3052, %v3048
        %v3054 = vadd.s32 %v3049, %v3053
        %v3055 = vadd.s32 %v3054, 536870912
        %v3056 = vshrl.u32 %v3055, 30
        %v3057 = vshll.u32 %v3056, 30
        %v3058 = vsub.s32 %v3054, %v3057
        %vm3059 = vcmp.lt.s32.totalorder %v3058, 0
        %v3060 = vsub.s32 0, %v3058
        %v3061 = vsel %vm3059, %v3060, %v3058
        %v3062 = vclz %v3061
        %v3063 = vsub.s32 %v3062, 2
        %vm3064 = vcmp.gt.s32.totalorder 0, %v3063
        %v3065 = vsel %vm3064, 0, %v3063
        %v3066 = vsub.s32 32, %v3065
        %v3067 = vshll.u32 %v3058, %v3065
        %v3068 = vshrl.u32 %v3050, %v3066
        %v3069 = vor.u32 %v3067, %v3068
        %v3070 = vsub.s32 4294967266, %v3065
        %v3071 = vadd.s32 %v3070, 127
        %v3072 = vshll.u32 %v3071, 23
        %v3073 = vor.u32 4788187, %v3072
        %v3074 = vand.u32 2147483647, %v3073
        %v3076 = vcvt.s32.f32 %v3069
        %v3077 = vmul.f32 %v3076, %v3074
        %v3078 = vxor.u32 %v3077, 2147483648
        %v3079 = vsel %vm2958, %v3078, %v3077
        %v3080 = vsub.s32 4, %v3056
        %v3081 = vsel %vm2958, %v3080, %v3056
        %v3082 = vsel %vm2957, %v1408, %v3079
        %v3083 = vsel %vm2957, 0, %v3081
        %v3084 = vmul.f32 %v3082, %v3082
        %v3085 = vmul.f32 %v3084, -0.001358992
        %v3086 = vadd.f32 %v3085, 0.041655596
        %v3087 = vmul.f32 %v3084, %v3086
        %v3088 = vadd.f32 %v3087, -0.4999988
        %v3089 = vmul.f32 %v3084, %v3088
        %v3090 = vadd.f32 1.0, %v3089
        %v3091 = vmul.f32 %v3082, %v3082
        %v3092 = vmul.f32 %v3091, -0.00019511016
        %v3093 = vadd.f32 %v3092, 0.008332121
        %v3094 = vmul.f32 %v3091, %v3093
        %v3095 = vadd.f32 %v3094, -0.16666654
        %v3096 = vmul.f32 %v3091, %v3095
        %v3097 = vadd.f32 %v3096, 1.0
        %v3098 = vmul.f32 %v3097, %v3082
        %vm3099 = vweird.f32 %v1408
        %v3100 = vand.u32 %v3083, 3
        %vm3101 = vcmp.lt.s32.totalorder %v3100, 2
        %vm3102 = vcmp.eq.s32.totalorder %v3100, 0
        %v3103 = vxor.u32 %v3098, 2147483648
        %v3104 = vsel %vm3102, %v3090, %v3103
        %vm3105 = vcmp.eq.s32.totalorder %v3100, 2
        %v3106 = vxor.u32 %v3090, 2147483648
        %v3107 = vsel %vm3105, %v3106, %v3098
        %v3108 = vsel %vm3101, %v3104, %v3107
        %v3109 = vsel %vm3099, nan, %v3108
        %v3110 = vand.u32 2147483647, %v1409
        %vm3111 = vcmp.le.f32.partialorder %v3110, 0.7853982
        %vm3112 = vcmp.lt.s32.totalorder %v1409, 0
        %v3113 = vand.u32 %v1409, 2139095040
        %v3114 = vshrl.u32 %v3113, 23
        %v3115 = vsub.s32 %v3114, 127
        %v3116 = vand.u32 2147483647, %v1409
        %v3117 = vand.u32 %v3116, 8388607
        %v3118 = vor.u32 %v3117, 8388608
        %v3119 = vsub.s32 0, %v3118
        %v3120 = vadd.s32 %v3115, 1
        %vm3121 = vcmp.gt.s32.totalorder %v3120, 0
        %v3122 = vsel %vm3121, %v3120, 0
        %v3123 = vshrl.u32 %v3122, 5
        %v3124 = vand.u32 %v3122, 31
        %v3125 = vsub.s32 32, %v3124
        %v3126 = vshrl.u32 683565275, %v3125
        %v3127 = vshll.u32 683565275, %v3124
        %v3128 = vshrl.u32 2475754826, %v3125
        %v3129 = vor.u32 %v3127, %v3128
        %v3130 = vshll.u32 2475754826, %v3124
        %v3131 = vshrl.u32 2131351028, %v3125
        %v3132 = vor.u32 %v3130, %v3131
        %v3133 = vshll.u32 2131351028, %v3124
        %v3134 = vshrl.u32 2102212464, %v3125
        %v3135 = vor.u32 %v3133, %v3134
        %v3136 = vshll.u32 2102212464, %v3124
        %v3137 = vshrl.u32 920167782, %v3125
        %v3138 = vor.u32 %v3136, %v3137
        %v3139 = vshll.u32 920167782, %v3124
        %v3140 = vshrl.u32 1326507024, %v3125
        %v3141 = vor.u32 %v3139, %v3140
        %vm3142 = vcmp.lt.s32.totalorder %v3123, 1
        %vm3143 = vcmp.lt.s32.totalorder %v3123, 2
        %vm3144 = vcmp.lt.s32.totalorder %v3123, 3
        %vm3145 = vcmp.lt.s32.totalorder %v3123, 4
        %v3146 = vsel %vm3142, %v3126, %v3129
        %v3147 = vsel %vm3145, %v3135, 2102212464
        %v3148 = vsel %vm3144, %v3132, %v3147
        %v3149 = vsel %vm3143, %v3146, %v3148
        %v3150 = vsel %vm3142, %v3129, %v3132
        %v3151 = vsel %vm3145, %v3138, 920167782
        %v3152 = vsel %vm3144, %v3135, %v3151
        %v3153 = vsel %vm3143, %v3150, %v3152
        %v3154 = vsel %vm3142, %v3132, %v3135
        %v3155 = vsel %vm3145, %v3141, 1326507024
        %v3156 = vsel %vm3144, %v3138, %v3155
        %v3157 = vsel %vm3143, %v3154, %v3156
        %v3158 = vshll.u32 %v3118, 8
        %v3159 = vand.u32 %v3158, 65535
        %v3160 = vshrl.u32 %v3158, 16
        %v3161 = vand.u32 %v3157, 65535
        %v3162 = vshrl.u32 %v3157, 16
        %v3163 = vmul.u32 %v3159, %v3161
        %v3164 = vmul.u32 %v3159, %v3162
        %v3165 = vmul.u32 %v3160, %v3161
        %v3166 = vmul.u32 %v3160, %v3162
        %v3167 = vshll.u32 %v3164, 16
        %v3168 = vshrl.u32 %v3164, 16
        %v3169 = vshll.u32 %v3165, 16
        %v3170 = vshrl.u32 %v3165, 16
        %vm3171 = vc.u32 %v3163, %v3167
        %v3172 = vsel %vm3171, 1, 0
        %v3173 = vadd.s32 %v3163, %v3167
        %v3174 = vadd.s32 %v3166, %v3172
        %vm3175 = vc.u32 %v3173, %v3169
        %v3176 = vsel %vm3175, 1, 0
        %v3177 = vadd.s32 %v3173, %v3169
        %v3178 = vadd.s32 %v3174, %v3176
        %v3179 = vadd.s32 %v3178, %v3168
        %v3180 = vadd.s32 %v3179, %v3170
        %v3181 = vand.u32 %v3158, 65535
        %v3182 = vshrl.u32 %v3158, 16
        %v3183 = vand.u32 %v3153, 65535
        %v3184 = vshrl.u32 %v3153, 16
        %v3185 = vmul.u32 %v3181, %v3183
        %v3186 = vmul.u32 %v3181, %v3184
        %v3187 = vmul.u32 %v3182, %v3183
        %v3188 = vmul.u32 %v3182, %v3184
        %v3189 = vshll.u32 %v3186, 16
        %v3190 = vshrl.u32 %v3186, 16
        %v3191 = vshll.u32 %v3187, 16
        %v3192 = vshrl.u32 %v3187, 16
        %vm3193 = vc.u32 %v3185, %v3189
        %v3194 = vsel %vm3193, 1, 0
        %v3195 = vadd.s32 %v3185, %v3189
        %v3196 = vadd.s32 %v3188, %v3194
        %vm3197 = vc.u32 %v3195, %v3191
        %v3198 = vsel %vm3197, 1, 0
        %v3199 = vadd.s32 %v3195, %v3191
        %v3200 = vadd.s32 %v3196, %v3198
        %v3201 = vadd.s32 %v3200, %v3190
        %v3202 = vadd.s32 %v3201, %v3192
        %v3203 = vmul.u32 %v3158, %v3149
        %v3204 = vadd.s32 %v3180, %v3199
        %vm3205 = vc.u32 %v3180, %v3199
        %v3206 = vadd.s32 %v3202, 1
        %v3207 = vsel %vm3205, %v3206, %v3202
        %v3208 = vadd.s32 %v3203, %v3207
        %v3209 = vadd.s32 %v3208, 536870912
        %v3210 = vshrl.u32 %v3209, 30
        %v3211 = vshll.u32 %v3210, 30
        %v3212 = vsub.s32 %v3208, %v3211
        %vm3213 = vcmp.lt.s32.totalorder %v3212, 0
        %v3214 = vsub.s32 0, %v3212
        %v3215 = vsel %vm3213, %v3214, %v3212
        %v3216 = vclz %v3215
        %v3217 = vsub.s32 %v3216, 2
        %vm3218 = vcmp.gt.s32.totalorder 0, %v3217
        %v3219 = vsel %vm3218, 0, %v3217
        %v3220 = vsub.s32 32, %v3219
        %v3221 = vshll.u32 %v3212, %v3219
        %v3222 = vshrl.u32 %v3204, %v3220
        %v3223 = vor.u32 %v3221, %v3222
        %v3224 = vsub.s32 4294967266, %v3219
        %v3225 = vadd.s32 %v3224, 127
        %v3226 = vshll.u32 %v3225, 23
        %v3227 = vor.u32 4788187, %v3226
        %v3228 = vand.u32 2147483647, %v3227
        %v3230 = vcvt.s32.f32 %v3223
        %v3231 = vmul.f32 %v3230, %v3228
        %v3232 = vxor.u32 %v3231, 2147483648
        %v3233 = vsel %vm3112, %v3232, %v3231
        %v3234 = vsub.s32 4, %v3210
        %v3235 = vsel %vm3112, %v3234, %v3210
        %v3236 = vsel %vm3111, %v1409, %v3233
        %v3237 = vsel %vm3111, 0, %v3235
        %v3238 = vmul.f32 %v3236, %v3236
        %v3239 = vmul.f32 %v3238, -0.001358992
        %v3240 = vadd.f32 %v3239, 0.041655596
        %v3241 = vmul.f32 %v3238, %v3240
        %v3242 = vadd.f32 %v3241, -0.4999988
        %v3243 = vmul.f32 %v3238, %v3242
        %v3244 = vadd.f32 1.0, %v3243
        %v3245 = vmul.f32 %v3236, %v3236
        %v3246 = vmul.f32 %v3245, -0.00019511016
        %v3247 = vadd.f32 %v3246, 0.008332121
        %v3248 = vmul.f32 %v3245, %v3247
        %v3249 = vadd.f32 %v3248, -0.16666654
        %v3250 = vmul.f32 %v3245, %v3249
        %v3251 = vadd.f32 %v3250, 1.0
        %v3252 = vmul.f32 %v3251, %v3236
        %vm3253 = vweird.f32 %v1409
        %v3254 = vand.u32 %v3237, 3
        %vm3255 = vcmp.lt.s32.totalorder %v3254, 2
        %vm3256 = vcmp.eq.s32.totalorder %v3254, 0
        %v3257 = vxor.u32 %v3252, 2147483648
        %v3258 = vsel %vm3256, %v3244, %v3257
        %vm3259 = vcmp.eq.s32.totalorder %v3254, 2
        %v3260 = vxor.u32 %v3244, 2147483648
        %v3261 = vsel %vm3259, %v3260, %v3252
        %v3262 = vsel %vm3255, %v3258, %v3261
        %v3263 = vsel %vm3253, nan, %v3262
        %v3264 = vld [vmem:[%s4] sm:$0xff]
        %3265 = vset.pattern.permute.xlu0 2
        %3266 = vperm.xlu0 %3265, %v324
        %v3267 = vpop.permute.xlu0 %3266
        %vm3269 = vcmask 261120
        %v3271 = vsel %vm3269, %v3264, 0
        %3273 = vmatpush.msra.mxu0 0.0
        %3274 = vmatpush.msra.mxu0 0.0
        %3275 = vmatpush.msra.mxu0 0.0
        %3276 = vmatpush.msra.mxu0 0.0
        %3277 = vmatpush.msra.mxu0 0.0
        %3278 = vmatpush.msra.mxu0 0.0
        %3279 = vmatpush.msra.mxu0 0.0
        %3280 = vmatpush.msra.mxu0 0.0
        %3281 = vmatpush.msra.mxu0 0.0
        %3282 = vmatpush.msra.mxu0 0.0
        %3283 = vmatpush.msra.mxu0 0.0
        %3284 = vmatpush.msra.mxu0 0.0
        %3285 = vmatpush.msra.mxu0 %v2955
        %3286 = vmatpush.msra.mxu0 %v2493
        %3287 = vmatpush.msra.mxu0 %v2029
        %3288 = vmatpush.msra.mxu0 %v1564
        %3289 = vmatmul.f32.gmra.mxu0 %v3271
        %v3290 = vpop.f32.mrf.mxu0
        %v3291 = vadd.f32 %v3267, %v3290
        %3292 = vdwg.mxu0
        %3293 = vmatpush.msra.mxu0 0.0
        %3294 = vmatpush.msra.mxu0 0.0
        %3295 = vmatpush.msra.mxu0 0.0
        %3296 = vmatpush.msra.mxu0 0.0
        %3297 = vmatpush.msra.mxu0 0.0
        %3298 = vmatpush.msra.mxu0 0.0
        %3299 = vmatpush.msra.mxu0 0.0
        %3300 = vmatpush.msra.mxu0 0.0
        %3301 = vmatpush.msra.mxu0 0.0
        %3302 = vmatpush.msra.mxu0 0.0
        %3303 = vmatpush.msra.mxu0 0.0
        %3304 = vmatpush.msra.mxu0 0.0
        %3305 = vmatpush.msra.mxu0 %v3109
        %3306 = vmatpush.msra.mxu0 %v2647
        %3307 = vmatpush.msra.mxu0 %v2184
        %3308 = vmatpush.msra.mxu0 %v1719
        %3309 = vmatmul.f32.gmra.mxu0 %v3271
        %v3310 = vpop.f32.mrf.mxu0
        %v3311 = vadd.f32 %v3267, %v3310
        %3312 = vdwg.mxu0
        %3313 = vmatpush.msra.mxu0 0.0
        %3314 = vmatpush.msra.mxu0 0.0
        %3315 = vmatpush.msra.mxu0 0.0
        %3316 = vmatpush.msra.mxu0 0.0
        %3317 = vmatpush.msra.mxu0 0.0
        %3318 = vmatpush.msra.mxu0 0.0
        %3319 = vmatpush.msra.mxu0 0.0
        %3320 = vmatpush.msra.mxu0 0.0
        %3321 = vmatpush.msra.mxu0 0.0
        %3322 = vmatpush.msra.mxu0 0.0
        %3323 = vmatpush.msra.mxu0 0.0
        %3324 = vmatpush.msra.mxu0 0.0
        %3325 = vmatpush.msra.mxu0 %v3263
        %3326 = vmatpush.msra.mxu0 %v2801
        %3327 = vmatpush.msra.mxu0 %v2339
        %3328 = vmatpush.msra.mxu0 %v1874
        %3329 = vmatmul.f32.gmra.mxu0 %v3271
        %v3330 = vpop.f32.mrf.mxu0
        %v3331 = vadd.f32 %v3267, %v3330
        %3332 = vdwg.mxu0
        %v3333 = vmul.f32 %v3291, 0.5
        %v3334 = vmul.f32 %v3311, 0.5
        %v3335 = vmul.f32 %v3331, 0.5
        %v3336 = vmul.f32 %v3291, 0.70710677
        %v3337 = vmul.f32 %v3311, 0.70710677
        %v3338 = vmul.f32 %v3331, 0.70710677
        %vm3339 = vcmp.ge.f32.partialorder %v3336, 0.0
        %vm3340 = vcmp.ge.f32.partialorder %v3337, 0.0
        %vm3341 = vcmp.ge.f32.partialorder %v3338, 0.0
        %v3342 = vsel %vm3339, 1.0, -1.0
        %v3343 = vsel %vm3340, 1.0, -1.0
        %v3344 = vsel %vm3341, 1.0, -1.0
        %v3345 = vand.u32 2147483647, %v3336
        %v3346 = vand.u32 2147483647, %v3337
        %v3347 = vand.u32 2147483647, %v3338
        %v3348 = vmul.f32 %v3345, 0.3275911
        %v3349 = vmul.f32 %v3346, 0.3275911
        %v3350 = vmul.f32 %v3347, 0.3275911
        %v3351 = vadd.f32 %v3348, 1.0
        %v3352 = vadd.f32 %v3349, 1.0
        %v3353 = vadd.f32 %v3350, 1.0
        %v3354 = vrcp.pop %v3351
        %v3355 = vmul.f32 %v3351, %v3354
        %v3356 = vsub.f32 1.0, %v3355
        %v3357 = vmul.f32 %v3354, %v3356
        %v3358 = vadd.f32 %v3354, %v3357
        %vm3359 = vweird.f32 %v3351
        %vm3360 = vweird.f32 %v3354
        %vm3361 = vmor %vm3359, %vm3360
        %v3362 = vsel %vm3361, %v3354, %v3358
        %v3363 = vand.u32 2147483647, %v3351
        %vm3364 = vcmp.eq.f32.partialorder %v3363, 8.507059e+37
        %v3365 = vand.u32 %v3351, 2147483648
        %v3366 = vor.u32 1.1754944e-38, %v3365
        %v3367 = vsel %vm3364, %v3366, %v3362
        %v3368 = vmul.f32 1.0, %v3367
        %v3369 = vrcp.pop %v3352
        %v3370 = vmul.f32 %v3352, %v3369
        %v3371 = vsub.f32 1.0, %v3370
        %v3372 = vmul.f32 %v3369, %v3371
        %v3373 = vadd.f32 %v3369, %v3372
        %vm3374 = vweird.f32 %v3352
        %vm3375 = vweird.f32 %v3369
        %vm3376 = vmor %vm3374, %vm3375
        %v3377 = vsel %vm3376, %v3369, %v3373
        %v3378 = vand.u32 2147483647, %v3352
        %vm3379 = vcmp.eq.f32.partialorder %v3378, 8.507059e+37
        %v3380 = vand.u32 %v3352, 2147483648
        %v3381 = vor.u32 1.1754944e-38, %v3380
        %v3382 = vsel %vm3379, %v3381, %v3377
        %v3383 = vmul.f32 1.0, %v3382
        %v3384 = vrcp.pop %v3353
        %v3385 = vmul.f32 %v3353, %v3384
        %v3386 = vsub.f32 1.0, %v3385
        %v3387 = vmul.f32 %v3384, %v3386
        %v3388 = vadd.f32 %v3384, %v3387
        %vm3389 = vweird.f32 %v3353
        %vm3390 = vweird.f32 %v3384
        %vm3391 = vmor %vm3389, %vm3390
        %v3392 = vsel %vm3391, %v3384, %v3388
        %v3393 = vand.u32 2147483647, %v3353
        %vm3394 = vcmp.eq.f32.partialorder %v3393, 8.507059e+37
        %v3395 = vand.u32 %v3353, 2147483648
        %v3396 = vor.u32 1.1754944e-38, %v3395
        %v3397 = vsel %vm3394, %v3396, %v3392
        %v3398 = vmul.f32 1.0, %v3397
        %v3399 = vmul.f32 %v3368, 1.0614054
        %v3400 = vmul.f32 %v3383, 1.0614054
        %v3401 = vmul.f32 %v3398, 1.0614054
        %v3402 = vadd.f32 %v3399, -1.4531521
        %v3403 = vadd.f32 %v3400, -1.4531521
        %v3404 = vadd.f32 %v3401, -1.4531521
        %v3405 = vmul.f32 %v3402, %v3368
        %v3406 = vmul.f32 %v3403, %v3383
        %v3407 = vmul.f32 %v3404, %v3398
        %v3408 = vadd.f32 %v3405, 1.4214138
        %v3409 = vadd.f32 %v3406, 1.4214138
        %v3410 = vadd.f32 %v3407, 1.4214138
        %v3411 = vmul.f32 %v3408, %v3368
        %v3412 = vmul.f32 %v3409, %v3383
        %v3413 = vmul.f32 %v3410, %v3398
        %v3414 = vadd.f32 %v3411, -0.28449672
        %v3415 = vadd.f32 %v3412, -0.28449672
        %v3416 = vadd.f32 %v3413, -0.28449672
        %v3417 = vmul.f32 %v3414, %v3368
        %v3418 = vmul.f32 %v3415, %v3383
        %v3419 = vmul.f32 %v3416, %v3398
        %v3420 = vadd.f32 %v3417, 0.2548296
        %v3421 = vadd.f32 %v3418, 0.2548296
        %v3422 = vadd.f32 %v3419, 0.2548296
        %v3423 = vmul.f32 %v3420, %v3368
        %v3424 = vmul.f32 %v3421, %v3383
        %v3425 = vmul.f32 %v3422, %v3398
        %v3426 = vsub.f32 0.0, %v3345
        %v3427 = vsub.f32 0.0, %v3346
        %v3428 = vsub.f32 0.0, %v3347
        %v3429 = vmul.f32 %v3426, %v3345
        %v3430 = vmul.f32 %v3427, %v3346
        %v3431 = vmul.f32 %v3428, %v3347
        %v3432 = vmul.f32 %v3429, 1.442695
        %v3433 = vpow.pop %v3432
        %v3434 = vmul.f32 %v3430, 1.442695
        %v3435 = vpow.pop %v3434
        %v3436 = vmul.f32 %v3431, 1.442695
        %v3437 = vpow.pop %v3436
        %v3438 = vmul.f32 %v3423, %v3433
        %v3439 = vmul.f32 %v3424, %v3435
        %v3440 = vmul.f32 %v3425, %v3437
        %v3441 = vsub.f32 1.0, %v3438
        %v3442 = vsub.f32 1.0, %v3439
        %v3443 = vsub.f32 1.0, %v3440
        %v3444 = vmul.f32 %v3342, %v3441
        %v3445 = vmul.f32 %v3343, %v3442
        %v3446 = vmul.f32 %v3344, %v3443
        %v3447 = vadd.f32 %v3444, 1.0
        %v3448 = vadd.f32 %v3445, 1.0
        %v3449 = vadd.f32 %v3446, 1.0
        %v3450 = vmul.f32 %v3333, %v3447
        %v3451 = vmul.f32 %v3334, %v3448
        %v3452 = vmul.f32 %v3335, %v3449
        %v3453 = vld [vmem:[%s5] sm:$0xff]
        %3454 = vset.pattern.permute.xlu0 3
        %3455 = vperm.xlu0 %3454, %v324
        %v3456 = vpop.permute.xlu0 %3455
        %vm3458 = vcmask 64512
        %v3460 = vsel %vm3458, %v3453, 0
        %3462 = vmatpush.msra.mxu0 0.0
        %3463 = vmatpush.msra.mxu0 0.0
        %3464 = vmatpush.msra.mxu0 0.0
        %3465 = vmatpush.msra.mxu0 0.0
        %3466 = vmatpush.msra.mxu0 0.0
        %3467 = vmatpush.msra.mxu0 0.0
        %3468 = vmatpush.msra.mxu0 0.0
        %3469 = vmatpush.msra.mxu0 0.0
        %3470 = vmatpush.msra.mxu0 0.0
        %3471 = vmatpush.msra.mxu0 0.0
        %3472 = vmatpush.msra.mxu0 0.0
        %3473 = vmatpush.msra.mxu0 0.0
        %3474 = vmatpush.msra.mxu0 0.0
        %3475 = vmatpush.msra.mxu0 0.0
        %3476 = vmatpush.msra.mxu0 0.0
        %3477 = vmatpush.msra.mxu0 %v3450
        %3478 = vmatmul.f32.gmra.mxu0 %v3460
        %v3479 = vpop.f32.mrf.mxu0
        %v3480 = vadd.f32 %v3456, %v3479
        %3481 = vdwg.mxu0
        %3482 = vmatpush.msra.mxu0 0.0
        %3483 = vmatpush.msra.mxu0 0.0
        %3484 = vmatpush.msra.mxu0 0.0
        %3485 = vmatpush.msra.mxu0 0.0
        %3486 = vmatpush.msra.mxu0 0.0
        %3487 = vmatpush.msra.mxu0 0.0
        %3488 = vmatpush.msra.mxu0 0.0
        %3489 = vmatpush.msra.mxu0 0.0
        %3490 = vmatpush.msra.mxu0 0.0
        %3491 = vmatpush.msra.mxu0 0.0
        %3492 = vmatpush.msra.mxu0 0.0
        %3493 = vmatpush.msra.mxu0 0.0
        %3494 = vmatpush.msra.mxu0 0.0
        %3495 = vmatpush.msra.mxu0 0.0
        %3496 = vmatpush.msra.mxu0 0.0
        %3497 = vmatpush.msra.mxu0 %v3451
        %3498 = vmatmul.f32.gmra.mxu0 %v3460
        %v3499 = vpop.f32.mrf.mxu0
        %v3500 = vadd.f32 %v3456, %v3499
        %3501 = vdwg.mxu0
        %3502 = vmatpush.msra.mxu0 0.0
        %3503 = vmatpush.msra.mxu0 0.0
        %3504 = vmatpush.msra.mxu0 0.0
        %3505 = vmatpush.msra.mxu0 0.0
        %3506 = vmatpush.msra.mxu0 0.0
        %3507 = vmatpush.msra.mxu0 0.0
        %3508 = vmatpush.msra.mxu0 0.0
        %3509 = vmatpush.msra.mxu0 0.0
        %3510 = vmatpush.msra.mxu0 0.0
        %3511 = vmatpush.msra.mxu0 0.0
        %3512 = vmatpush.msra.mxu0 0.0
        %3513 = vmatpush.msra.mxu0 0.0
        %3514 = vmatpush.msra.mxu0 0.0
        %3515 = vmatpush.msra.mxu0 0.0
        %3516 = vmatpush.msra.mxu0 0.0
        %3517 = vmatpush.msra.mxu0 %v3452
        %3518 = vmatmul.f32.gmra.mxu0 %v3460
        %v3519 = vpop.f32.mrf.mxu0
        %v3520 = vadd.f32 %v3456, %v3519
        %3521 = vdwg.mxu0
        %v3522 = vadd.f32 %v1375, %v3480
        %v3523 = vadd.f32 %v1376, %v3500
        %v3524 = vadd.f32 %v1377, %v3520
        %v3525 = vmax.f32 %v3522, 0.0
        %v3526 = vmax.f32 %v3523, 0.0
        %v3527 = vmax.f32 %v3524, 0.0
        %v3528 = vadd.f32 %v3525, %v1231
        %v3529 = vadd.f32 %v3526, %v1251
        %v3530 = vadd.f32 %v3527, %v1271
        %3531 = vst [vmem:[%s313] sm:$0xff] %v3528
        %3532 = vst [vmem:[%s313 + $0x8] sm:$0xff] %v3529
        %3533 = vst [vmem:[%s313 + $0x10] sm:$0xff] %v3530
        %s3534 = sand.u32 %s208, 1
        %s3535 = scalar_lea.sflag [#allocation3], %s3534
        %s3536 = sand.u32 %s208, 1
        %s3537 = smul.addr %s3536, 24
        %s3538 = scalar_lea.vmem [#allocation2], %s3537
        // Predicated region
        $region53: #{tpu_custom_call.1} parent=51 // pred_check
          %p3539 = pneg %p218
        $region54: #{tpu_custom_call.1} parent=51 // pred_check_branch
          %3541 = sbr.rel (%p3539) target = $region56
        $region55: #{tpu_custom_call.1} parent=51 // pred_region
          %3543 = vsyncadd %s3535, 0
          %s3544 = smul.addr %s22, 3
          %s3545 = smul.addr %s3544, 8
          %s3546 = scalar_lea.hbm %s8, %s3545
          %s3548 = sshll.u32 %s3538, 4
          %s3549 = int_to_ptr.vmem [resolvable:$true] %s3548
          %s3550 = sshll.u32 %s3546, 4
          %s3551 = int_to_ptr.hbm [resolvable:$true] %s3550
          %3553 = dma.vmem_to_hbm [thread:$0]  %s3549, 384, %s3551, %s3535
        $region56: #{tpu_custom_call.1} parent=51 // pred_fallthru
          _
      $region52: #{tpu_custom_call.1} parent=5 // pred_fallthru
        _
      %p3554 = scmp.le.s32.totalorder 2, %s17
      // Predicated region
      $region57: #{tpu_custom_call.1} parent=5 // pred_check
        %p3555 = pneg %p3554
      $region58: #{tpu_custom_call.1} parent=5 // pred_check_branch
        %3557 = sbr.rel (%p3555) target = $region60
      $region59: #{tpu_custom_call.1} parent=5 // pred_region
        %s3558 = ssub.s32 %s17, 2
        // Predicated region
        $region61: #{tpu_custom_call.1} parent=59 // pred_check
          %p3559 = pneg %p224
        $region62: #{tpu_custom_call.1} parent=59 // pred_check_branch
          %3561 = sbr.rel (%p3559) target = $region64
        $region63: #{tpu_custom_call.1} parent=59 // pred_region
          %s3562 = sand.u32 %s209, 1
          %s3563 = scalar_lea.sflag [#allocation3], %s3562
          %s3564 = sand.u32 %s209, 1
          %s3565 = smul.addr %s3564, 24
          %s3566 = scalar_lea.vmem [#allocation2], %s3565
          %3568 = dma.done %s3563, 384
        $region64: #{tpu_custom_call.1} parent=59 // pred_fallthru
          _
      $region60: #{tpu_custom_call.1} parent=5 // pred_fallthru
        _
    $region6: #{tpu_custom_call.1} parent=1 // loop_footer
      %s21 = sadd.s32 1, %s17
    $region7: #{tpu_custom_call.1} parent=1 // loop_footer_branch
      %16 = sbr.rel target = $region3
    $region8: #{tpu_custom_call.1} parent=1 // loop_exit
      _
    %3569 = vsyncpa [#allocation3], 1
    %s3570 = scalar_lea.sflag [#allocation3], 1
    %3571 = vsyncpa %s3570, 1

</llo_original>
